<compile_context>
chip_gen: v6e
topology: v6e:2x2x1
jax: 0.10.0
libtpu: 0.0.40
codegen_flags: <defaults>
</compile_context>

<pallas_src>
import jax
import jax.numpy as jnp
import numpy as np
from jax.experimental import pallas as pl
from jax.experimental.pallas import tpu as pltpu

EPS = 1e-5  # nn.LayerNorm default eps


def _layer_norm(x, g, b):
    mu = jnp.mean(x, axis=-1, keepdims=True)
    var = jnp.mean((x - mu) ** 2, axis=-1, keepdims=True)
    return (x - mu) * jax.lax.rsqrt(var + EPS) * g + b


def doc_encoder_kernel(x_ref, neg_ref,
                       wq_ref, bq_ref, wk_ref, bk_ref, wv_ref, bv_ref,
                       wo_ref, bo_ref, g1_ref, b1_ref,
                       wf1_ref, bf1_ref, wf2_ref, bf2_ref,
                       g2_ref, b2_ref, o_ref):
    """All L TransformerEncoderLayers (post-norm) for one batch element."""
    L, H, D, hd = wq_ref.shape
    x = x_ref[0].astype(jnp.float32)            # (S, D), resident across layers
    S = x.shape[0]
    neg = neg_ref[0][None]                      # (1, 1, S), already * -1e9
    scale = 1.0 / (hd ** 0.5)

    for l in range(L):                          # static unroll; L (ctx_layer) is small
        # ---- multi-head self-attention, batched over heads -----------------
        xb = x.astype(jnp.bfloat16)
        xh = jnp.broadcast_to(xb[None], (H, S, D))                 # (H, S, D)

        q = jnp.einsum('hsd,hde->hse', xh, wq_ref[l],
                       preferred_element_type=jnp.float32)
        q = (q + bq_ref[l]) * scale                                 # fairseq q-scaling
        k = jnp.einsum('hsd,hde->hse', xh, wk_ref[l],
                       preferred_element_type=jnp.float32) + bk_ref[l]
        v = jnp.einsum('hsd,hde->hse', xh, wv_ref[l],
                       preferred_element_type=jnp.float32) + bv_ref[l]

        s = jnp.einsum('hqe,hke->hqk',
                       q.astype(jnp.bfloat16), k.astype(jnp.bfloat16),
                       preferred_element_type=jnp.float32) + neg    # (H, S, S)
        m = jnp.max(s, axis=-1, keepdims=True)
        p = jnp.exp(s - m)
        p = p * pl.reciprocal(jnp.sum(p, axis=-1, keepdims=True), approx=True)

        ctx = jnp.einsum('hqk,hke->hqe',
                         p.astype(jnp.bfloat16), v.astype(jnp.bfloat16),
                         preferred_element_type=jnp.float32)        # (H, S, hd)
        outh = jnp.einsum('hqe,hed->hqd',
                          ctx.astype(jnp.bfloat16), wo_ref[l],
                          preferred_element_type=jnp.float32)       # (H, S, D)
        # head merge: sum_h ctx_h @ Wo_h  ==  concat_h(ctx_h) @ Wo
        attn = outh[0]
        for h in range(1, H):
            attn = attn + outh[h]
        attn = attn + bo_ref[l]

        # residual + LayerNorm (normalize_before=False, i.e. post-norm default)
        x = _layer_norm(x + attn, g1_ref[l], b1_ref[l])

        # ---- feed-forward: relu(x W1 + b1) W2 + b2, residual + LayerNorm ---
        h1 = jnp.maximum(
            jnp.dot(x.astype(jnp.bfloat16), wf1_ref[l],
                    preferred_element_type=jnp.float32) + bf1_ref[l], 0.0)
        h2 = jnp.dot(h1.astype(jnp.bfloat16), wf2_ref[l],
                     preferred_element_type=jnp.float32) + bf2_ref[l]
        x = _layer_norm(x + h2, g2_ref[l], b2_ref[l])

    o_ref[0] = x.astype(o_ref.dtype)


def doc_encoder_forward(inputs, ctx_mask, layer_params, num_heads):
    """DocEncoder.forward.

    inputs: (B, S, D).  The PyTorch module transposes to (S, B, D) and runs the
    layers in (T, B, C) convention; attention/LN are per-batch so we run in
    (B, S, D) (mathematically identical) and transpose to (S, B, D) at the end,
    matching the module's returned layout.  The final transpose stays outside
    the kernel so the per-batch grid axis remains "parallel" and output blocks
    stay full-dim aligned.
    ctx_mask: optional (B, S) bool key_padding_mask, True = pad.
    share_ctx_layer=True is expressed by passing the same params dict L times.
    """
    B, S, D = inputs.shape
    H = num_heads
    hd = D // H

    x = inputs.astype(jnp.float32)
    if ctx_mask is None:
        neg = jnp.zeros((B, 1, S), jnp.float32)
    else:
        neg = ctx_mask.astype(jnp.float32).reshape(B, 1, S) * (-1e9)

    # --- wrapper-side weight prep: stack layers, split heads, cast to bf16 ---
    def stack(name, dtype=jnp.float32):
        return jnp.stack([p[name] for p in layer_params]).astype(dtype)

    def qkv_w(name):   # (L, H, D, hd) bf16
        return jnp.stack([p[name].reshape(D, H, hd).transpose(1, 0, 2)
                          for p in layer_params]).astype(jnp.bfloat16)

    def qkv_b(name):   # (L, H, 1, hd) f32
        return jnp.stack([p[name].reshape(H, hd)[:, None, :] for p in layer_params])

    wq, wk, wv = qkv_w('wq'), qkv_w('wk'), qkv_w('wv')
    bq, bk, bv = qkv_b('bq'), qkv_b('bk'), qkv_b('bv')
    wo = jnp.stack([p['wo'].reshape(H, hd, D)
                    for p in layer_params]).astype(jnp.bfloat16)    # (L, H, hd, D)
    bo = stack('bo')
    g1, b1, g2, b2 = stack('g1'), stack('b1'), stack('g2'), stack('b2')
    wf1, wf2 = stack('wf1', jnp.bfloat16), stack('wf2', jnp.bfloat16)
    bf1, bf2 = stack('bf1'), stack('bf2')

    weights = (wq, bq, wk, bk, wv, bv, wo, bo, g1, b1,
               wf1, bf1, wf2, bf2, g2, b2)

    def full_spec(arr):  # whole stacked array resident in VMEM (constant index)
        n = arr.ndim
        return pl.BlockSpec(arr.shape, lambda b, _n=n: (0,) * _n)

    out = pl.pallas_call(
        doc_encoder_kernel,
        out_shape=jax.ShapeDtypeStruct((B, S, D), jnp.float32),
        grid=(B,),
        in_specs=[
            pl.BlockSpec((1, S, D), lambda b: (b, 0, 0)),   # activations, per-batch tile
            pl.BlockSpec((1, 1, S), lambda b: (b, 0, 0)),   # additive key-padding mask
        ] + [full_spec(w) for w in weights],
        out_specs=pl.BlockSpec((1, S, D), lambda b: (b, 0, 0)),
        compiler_params=pltpu.CompilerParams(
            dimension_semantics=("parallel",),
            # v5e scoped-VMEM default is only 16 MiB; keep the all-layer
            # resident-weight plan with headroom (fits every generation).
            vmem_limit_bytes=32 * 1024 * 1024,
        ),
    )(x, neg, *weights)

    return jnp.transpose(out, (1, 0, 2))        # (S, B, D), module's return layout


# ------------------------- pure-JAX reference (f32) -------------------------
def ref_forward(inputs, ctx_mask, layer_params, num_heads):
    B, S, D = inputs.shape
    hd = D // num_heads
    x = inputs.astype(jnp.float32)
    if ctx_mask is None:
        neg = jnp.zeros((B, 1, 1, S), jnp.float32)
    else:
        neg = ctx_mask.astype(jnp.float32)[:, None, None, :] * (-1e9)
    for p in layer_params:
        q = ((x @ p['wq'] + p['bq']) / jnp.sqrt(hd)).reshape(B, S, num_heads, hd).transpose(0, 2, 1, 3)
        k = (x @ p['wk'] + p['bk']).reshape(B, S, num_heads, hd).transpose(0, 2, 1, 3)
        v = (x @ p['wv'] + p['bv']).reshape(B, S, num_heads, hd).transpose(0, 2, 1, 3)
        s = q @ jnp.swapaxes(k, -1, -2) + neg
        a = jax.nn.softmax(s, axis=-1)
        o = (a @ v).transpose(0, 2, 1, 3).reshape(B, S, D)
        o = o @ p['wo'] + p['bo']
        x = _layer_norm(x + o, p['g1'], p['b1'])
        h = jax.nn.relu(x @ p['wf1'] + p['bf1'])
        h = h @ p['wf2'] + p['bf2']
        x = _layer_norm(x + h, p['g2'], p['b2'])
    return jnp.transpose(x, (1, 0, 2))


# --------------------------- param construction -----------------------------
def init_layer_params(key, d_model, d_ffn):
    ks = jax.random.split(key, 6)
    sd = 1.0 / np.sqrt(d_model)
    sf = 1.0 / np.sqrt(d_ffn)
    return {
        'wq': jax.random.normal(ks[0], (d_model, d_model), jnp.float32) * sd,
        'bq': jnp.zeros((1, d_model), jnp.float32),
        'wk': jax.random.normal(ks[1], (d_model, d_model), jnp.float32) * sd,
        'bk': jnp.zeros((1, d_model), jnp.float32),
        'wv': jax.random.normal(ks[2], (d_model, d_model), jnp.float32) * sd,
        'bv': jnp.zeros((1, d_model), jnp.float32),
        'wo': jax.random.normal(ks[3], (d_model, d_model), jnp.float32) * sd,
        'bo': jnp.zeros((1, d_model), jnp.float32),
        'g1': jnp.ones((1, d_model), jnp.float32),
        'b1': jnp.zeros((1, d_model), jnp.float32),
        'wf1': jax.random.normal(ks[4], (d_model, d_ffn), jnp.float32) * sd,
        'bf1': jnp.zeros((1, d_ffn), jnp.float32),
        'wf2': jax.random.normal(ks[5], (d_ffn, d_model), jnp.float32) * sf,
        'bf2': jnp.zeros((1, d_model), jnp.float32),
        'g2': jnp.ones((1, d_model), jnp.float32),
        'b2': jnp.zeros((1, d_model), jnp.float32),
    }


if __name__ == "__main__":
    # args.ctx_layer = 2, args.share_ctx_layer = False, 4 attention heads
    B, S, D, H, F, L = 2, 8, 32, 4, 64, 2

    key = jax.random.PRNGKey(0)
    k_x, k_p = jax.random.split(key)
    inputs = jax.random.normal(k_x, (B, S, D), jnp.float32)

    # key_padding_mask (ctx_mask): pad the last 2 positions of batch item 1
    ctx_mask = jnp.zeros((B, S), bool).at[1, -2:].set(True)

    layer_keys = jax.random.split(k_p, L)
    layer_params = [init_layer_params(layer_keys[i], D, F) for i in range(L)]

    out = doc_encoder_forward(inputs, ctx_mask, layer_params, H)
    out = jax.block_until_ready(out)

    ref = jax.block_until_ready(ref_forward(inputs, ctx_mask, layer_params, H))

    assert out.shape == (S, B, D), out.shape
    # bf16 matmuls vs f32 reference => loosened tolerance (review note).
    np.testing.assert_allclose(np.asarray(out), np.asarray(ref), rtol=5e-2, atol=5e-2)
    print("KERNEL_OK")
</pallas_src>

<mosaic_0001>
module attributes {stable_mosaic.version = 11 : i64} {
  func.func @doc_encoder_kernel(%arg0: i32, %arg1: memref<1x8x32xf32, #tpu.memory_space<vmem>>, %arg2: memref<1x1x8xf32, #tpu.memory_space<vmem>>, %arg3: memref<2x4x32x8xbf16, #tpu.memory_space<vmem>>, %arg4: memref<2x4x1x8xf32, #tpu.memory_space<vmem>>, %arg5: memref<2x4x32x8xbf16, #tpu.memory_space<vmem>>, %arg6: memref<2x4x1x8xf32, #tpu.memory_space<vmem>>, %arg7: memref<2x4x32x8xbf16, #tpu.memory_space<vmem>>, %arg8: memref<2x4x1x8xf32, #tpu.memory_space<vmem>>, %arg9: memref<2x4x8x32xbf16, #tpu.memory_space<vmem>>, %arg10: memref<2x1x32xf32, #tpu.memory_space<vmem>>, %arg11: memref<2x1x32xf32, #tpu.memory_space<vmem>>, %arg12: memref<2x1x32xf32, #tpu.memory_space<vmem>>, %arg13: memref<2x32x64xbf16, #tpu.memory_space<vmem>>, %arg14: memref<2x1x64xf32, #tpu.memory_space<vmem>>, %arg15: memref<2x64x32xbf16, #tpu.memory_space<vmem>>, %arg16: memref<2x1x32xf32, #tpu.memory_space<vmem>>, %arg17: memref<2x1x32xf32, #tpu.memory_space<vmem>>, %arg18: memref<2x1x32xf32, #tpu.memory_space<vmem>>, %arg19: memref<1x8x32xf32, #tpu.memory_space<vmem>>) attributes {dimension_semantics = [#tpu.dimension_semantics<parallel>], iteration_bounds = array<i64: 2>, scalar_prefetch = 0 : i64, scratch_operands = 0 : i64, tpu.core_type = #tpu.core_type<tc>, window_params = [{transform_indices = @transform_0, window_bounds = array<i64: 1, 8, 32>}, {transform_indices = @transform_1, window_bounds = array<i64: 1, 1, 8>}, {pipeline_mode = #tpu.pipeline_mode<synchronous>, transform_indices = @transform_2, window_bounds = array<i64: 2, 4, 32, 8>}, {pipeline_mode = #tpu.pipeline_mode<synchronous>, transform_indices = @transform_3, window_bounds = array<i64: 2, 4, 1, 8>}, {pipeline_mode = #tpu.pipeline_mode<synchronous>, transform_indices = @transform_4, window_bounds = array<i64: 2, 4, 32, 8>}, {pipeline_mode = #tpu.pipeline_mode<synchronous>, transform_indices = @transform_5, window_bounds = array<i64: 2, 4, 1, 8>}, {pipeline_mode = #tpu.pipeline_mode<synchronous>, transform_indices = @transform_6, window_bounds = array<i64: 2, 4, 32, 8>}, {pipeline_mode = #tpu.pipeline_mode<synchronous>, transform_indices = @transform_7, window_bounds = array<i64: 2, 4, 1, 8>}, {pipeline_mode = #tpu.pipeline_mode<synchronous>, transform_indices = @transform_8, window_bounds = array<i64: 2, 4, 8, 32>}, {pipeline_mode = #tpu.pipeline_mode<synchronous>, transform_indices = @transform_9, window_bounds = array<i64: 2, 1, 32>}, {pipeline_mode = #tpu.pipeline_mode<synchronous>, transform_indices = @transform_10, window_bounds = array<i64: 2, 1, 32>}, {pipeline_mode = #tpu.pipeline_mode<synchronous>, transform_indices = @transform_11, window_bounds = array<i64: 2, 1, 32>}, {pipeline_mode = #tpu.pipeline_mode<synchronous>, transform_indices = @transform_12, window_bounds = array<i64: 2, 32, 64>}, {pipeline_mode = #tpu.pipeline_mode<synchronous>, transform_indices = @transform_13, window_bounds = array<i64: 2, 1, 64>}, {pipeline_mode = #tpu.pipeline_mode<synchronous>, transform_indices = @transform_14, window_bounds = array<i64: 2, 64, 32>}, {pipeline_mode = #tpu.pipeline_mode<synchronous>, transform_indices = @transform_15, window_bounds = array<i64: 2, 1, 32>}, {pipeline_mode = #tpu.pipeline_mode<synchronous>, transform_indices = @transform_16, window_bounds = array<i64: 2, 1, 32>}, {pipeline_mode = #tpu.pipeline_mode<synchronous>, transform_indices = @transform_17, window_bounds = array<i64: 2, 1, 32>}, {transform_indices = @transform_18, window_bounds = array<i64: 1, 8, 32>}]} {
    %c0 = arith.constant 0 : index
    %c0_0 = arith.constant 0 : index
    %c0_1 = arith.constant 0 : index
    %0 = vector.load %arg1[%c0, %c0_0, %c0_1] : memref<1x8x32xf32, #tpu.memory_space<vmem>>, vector<1x8x32xf32>
    %1 = vector.shape_cast %0 : vector<1x8x32xf32> to vector<8x32xf32>
    %c0_2 = arith.constant 0 : index
    %c0_3 = arith.constant 0 : index
    %c0_4 = arith.constant 0 : index
    %2 = vector.load %arg2[%c0_2, %c0_3, %c0_4] : memref<1x1x8xf32, #tpu.memory_space<vmem>>, vector<1x1x8xf32>
    %3 = vector.shape_cast %2 : vector<1x1x8xf32> to vector<1x8xf32>
    %4 = vector.shape_cast %3 : vector<1x8xf32> to vector<1x1x8xf32>
    %5 = arith.truncf %1 : vector<8x32xf32> to vector<8x32xbf16>
    %6 = vector.shape_cast %5 : vector<8x32xbf16> to vector<1x8x32xbf16>
    %7 = vector.shape_cast %6 : vector<1x8x32xbf16> to vector<1x8x32xbf16>
    %8 = vector.broadcast %7 : vector<1x8x32xbf16> to vector<4x8x32xbf16>
    %c0_5 = arith.constant 0 : index
    %c0_6 = arith.constant 0 : index
    %c0_7 = arith.constant 0 : index
    %c0_8 = arith.constant 0 : index
    %9 = vector.load %arg3[%c0_5, %c0_6, %c0_7, %c0_8] : memref<2x4x32x8xbf16, #tpu.memory_space<vmem>>, vector<1x4x32x8xbf16>
    %10 = vector.shape_cast %9 : vector<1x4x32x8xbf16> to vector<4x32x8xbf16>
    "tpu.trace_start"() <{level = 10 : i32, message = "hsd,hde->hse"}> : () -> ()
    %cst = arith.constant dense<0.000000e+00> : vector<4x8x8xf32>
    %11 = tpu.matmul %8, %10, %cst {dimension_numbers = #tpu.dot_dimension_numbers<[2], [1], [1], [2], [0, 0, 0, 1, 1, 2], [0], [0]>} : vector<4x8x32xbf16>, vector<4x32x8xbf16>, vector<4x8x8xf32> -> vector<4x8x8xf32>
    "tpu.trace_stop"() : () -> ()
    %c0_9 = arith.constant 0 : index
    %c0_10 = arith.constant 0 : index
    %c0_11 = arith.constant 0 : index
    %c0_12 = arith.constant 0 : index
    %12 = vector.load %arg4[%c0_9, %c0_10, %c0_11, %c0_12] : memref<2x4x1x8xf32, #tpu.memory_space<vmem>>, vector<1x4x1x8xf32>
    %13 = vector.shape_cast %12 : vector<1x4x1x8xf32> to vector<4x1x8xf32>
    %14 = vector.broadcast %13 : vector<4x1x8xf32> to vector<4x8x8xf32>
    %15 = arith.addf %11, %14 : vector<4x8x8xf32>
    %cst_13 = arith.constant 0.353553385 : f32
    %16 = vector.broadcast %cst_13 : f32 to vector<4x8x8xf32>
    %17 = arith.mulf %15, %16 : vector<4x8x8xf32>
    %c0_14 = arith.constant 0 : index
    %c0_15 = arith.constant 0 : index
    %c0_16 = arith.constant 0 : index
    %c0_17 = arith.constant 0 : index
    %18 = vector.load %arg5[%c0_14, %c0_15, %c0_16, %c0_17] : memref<2x4x32x8xbf16, #tpu.memory_space<vmem>>, vector<1x4x32x8xbf16>
    %19 = vector.shape_cast %18 : vector<1x4x32x8xbf16> to vector<4x32x8xbf16>
    "tpu.trace_start"() <{level = 10 : i32, message = "hsd,hde->hse"}> : () -> ()
    %cst_18 = arith.constant dense<0.000000e+00> : vector<4x8x8xf32>
    %20 = tpu.matmul %8, %19, %cst_18 {dimension_numbers = #tpu.dot_dimension_numbers<[2], [1], [1], [2], [0, 0, 0, 1, 1, 2], [0], [0]>} : vector<4x8x32xbf16>, vector<4x32x8xbf16>, vector<4x8x8xf32> -> vector<4x8x8xf32>
    "tpu.trace_stop"() : () -> ()
    %c0_19 = arith.constant 0 : index
    %c0_20 = arith.constant 0 : index
    %c0_21 = arith.constant 0 : index
    %c0_22 = arith.constant 0 : index
    %21 = vector.load %arg6[%c0_19, %c0_20, %c0_21, %c0_22] : memref<2x4x1x8xf32, #tpu.memory_space<vmem>>, vector<1x4x1x8xf32>
    %22 = vector.shape_cast %21 : vector<1x4x1x8xf32> to vector<4x1x8xf32>
    %23 = vector.broadcast %22 : vector<4x1x8xf32> to vector<4x8x8xf32>
    %24 = arith.addf %20, %23 : vector<4x8x8xf32>
    %c0_23 = arith.constant 0 : index
    %c0_24 = arith.constant 0 : index
    %c0_25 = arith.constant 0 : index
    %c0_26 = arith.constant 0 : index
    %25 = vector.load %arg7[%c0_23, %c0_24, %c0_25, %c0_26] : memref<2x4x32x8xbf16, #tpu.memory_space<vmem>>, vector<1x4x32x8xbf16>
    %26 = vector.shape_cast %25 : vector<1x4x32x8xbf16> to vector<4x32x8xbf16>
    "tpu.trace_start"() <{level = 10 : i32, message = "hsd,hde->hse"}> : () -> ()
    %cst_27 = arith.constant dense<0.000000e+00> : vector<4x8x8xf32>
    %27 = tpu.matmul %8, %26, %cst_27 {dimension_numbers = #tpu.dot_dimension_numbers<[2], [1], [1], [2], [0, 0, 0, 1, 1, 2], [0], [0]>} : vector<4x8x32xbf16>, vector<4x32x8xbf16>, vector<4x8x8xf32> -> vector<4x8x8xf32>
    "tpu.trace_stop"() : () -> ()
    %c0_28 = arith.constant 0 : index
    %c0_29 = arith.constant 0 : index
    %c0_30 = arith.constant 0 : index
    %c0_31 = arith.constant 0 : index
    %28 = vector.load %arg8[%c0_28, %c0_29, %c0_30, %c0_31] : memref<2x4x1x8xf32, #tpu.memory_space<vmem>>, vector<1x4x1x8xf32>
    %29 = vector.shape_cast %28 : vector<1x4x1x8xf32> to vector<4x1x8xf32>
    %30 = vector.broadcast %29 : vector<4x1x8xf32> to vector<4x8x8xf32>
    %31 = arith.addf %27, %30 : vector<4x8x8xf32>
    %32 = arith.truncf %17 : vector<4x8x8xf32> to vector<4x8x8xbf16>
    %33 = arith.truncf %24 : vector<4x8x8xf32> to vector<4x8x8xbf16>
    "tpu.trace_start"() <{level = 10 : i32, message = "hqe,hke->hqk"}> : () -> ()
    %cst_32 = arith.constant dense<0.000000e+00> : vector<4x8x8xf32>
    %34 = tpu.matmul %32, %33, %cst_32 {dimension_numbers = #tpu.dot_dimension_numbers<[2], [2], [1], [1], [0, 0, 0, 1, 1, 1], [0], [0]>} : vector<4x8x8xbf16>, vector<4x8x8xbf16>, vector<4x8x8xf32> -> vector<4x8x8xf32>
    "tpu.trace_stop"() : () -> ()
    %35 = vector.broadcast %4 : vector<1x1x8xf32> to vector<4x8x8xf32>
    %36 = arith.addf %34, %35 : vector<4x8x8xf32>
    %cst_33 = arith.constant dense<0xFF800000> : vector<4x8xf32>
    %37 = vector.multi_reduction <maximumf>, %36, %cst_33 [2] : vector<4x8x8xf32> to vector<4x8xf32>
    %38 = vector.shape_cast %37 : vector<4x8xf32> to vector<4x8x1xf32>
    %39 = vector.broadcast %38 : vector<4x8x1xf32> to vector<4x8x8xf32>
    %40 = arith.subf %36, %39 : vector<4x8x8xf32>
    %41 = math.exp %40 : vector<4x8x8xf32>
    %cst_34 = arith.constant dense<0.000000e+00> : vector<4x8xf32>
    %42 = vector.multi_reduction <add>, %41, %cst_34 [2] : vector<4x8x8xf32> to vector<4x8xf32>
    %43 = vector.shape_cast %42 : vector<4x8xf32> to vector<4x8x1xf32>
    %44 = tpu.reciprocal %43 {approx = true} : vector<4x8x1xf32> -> vector<4x8x1xf32>
    %45 = vector.broadcast %44 : vector<4x8x1xf32> to vector<4x8x8xf32>
    %46 = arith.mulf %41, %45 : vector<4x8x8xf32>
    %47 = arith.truncf %46 : vector<4x8x8xf32> to vector<4x8x8xbf16>
    %48 = arith.truncf %31 : vector<4x8x8xf32> to vector<4x8x8xbf16>
    "tpu.trace_start"() <{level = 10 : i32, message = "hqk,hke->hqe"}> : () -> ()
    %cst_35 = arith.constant dense<0.000000e+00> : vector<4x8x8xf32>
    %49 = tpu.matmul %47, %48, %cst_35 {dimension_numbers = #tpu.dot_dimension_numbers<[2], [1], [1], [2], [0, 0, 0, 1, 1, 2], [0], [0]>} : vector<4x8x8xbf16>, vector<4x8x8xbf16>, vector<4x8x8xf32> -> vector<4x8x8xf32>
    "tpu.trace_stop"() : () -> ()
    %50 = arith.truncf %49 : vector<4x8x8xf32> to vector<4x8x8xbf16>
    %c0_36 = arith.constant 0 : index
    %c0_37 = arith.constant 0 : index
    %c0_38 = arith.constant 0 : index
    %c0_39 = arith.constant 0 : index
    %51 = vector.load %arg9[%c0_36, %c0_37, %c0_38, %c0_39] : memref<2x4x8x32xbf16, #tpu.memory_space<vmem>>, vector<1x4x8x32xbf16>
    %52 = vector.shape_cast %51 : vector<1x4x8x32xbf16> to vector<4x8x32xbf16>
    "tpu.trace_start"() <{level = 10 : i32, message = "hqe,hed->hqd"}> : () -> ()
    %cst_40 = arith.constant dense<0.000000e+00> : vector<4x8x32xf32>
    %53 = tpu.matmul %50, %52, %cst_40 {dimension_numbers = #tpu.dot_dimension_numbers<[2], [1], [1], [2], [0, 0, 0, 1, 1, 2], [0], [0]>} : vector<4x8x8xbf16>, vector<4x8x32xbf16>, vector<4x8x32xf32> -> vector<4x8x32xf32>
    "tpu.trace_stop"() : () -> ()
    %54 = vector.extract_strided_slice %53 {offsets = [0, 0, 0], sizes = [1, 8, 32], strides = [1, 1, 1]} : vector<4x8x32xf32> to vector<1x8x32xf32>
    %55 = vector.shape_cast %54 : vector<1x8x32xf32> to vector<8x32xf32>
    %56 = vector.extract_strided_slice %53 {offsets = [1, 0, 0], sizes = [1, 8, 32], strides = [1, 1, 1]} : vector<4x8x32xf32> to vector<1x8x32xf32>
    %57 = vector.shape_cast %56 : vector<1x8x32xf32> to vector<8x32xf32>
    %58 = arith.addf %55, %57 : vector<8x32xf32>
    %59 = vector.extract_strided_slice %53 {offsets = [2, 0, 0], sizes = [1, 8, 32], strides = [1, 1, 1]} : vector<4x8x32xf32> to vector<1x8x32xf32>
    %60 = vector.shape_cast %59 : vector<1x8x32xf32> to vector<8x32xf32>
    %61 = arith.addf %58, %60 : vector<8x32xf32>
    %62 = vector.extract_strided_slice %53 {offsets = [3, 0, 0], sizes = [1, 8, 32], strides = [1, 1, 1]} : vector<4x8x32xf32> to vector<1x8x32xf32>
    %63 = vector.shape_cast %62 : vector<1x8x32xf32> to vector<8x32xf32>
    %64 = arith.addf %61, %63 : vector<8x32xf32>
    %c0_41 = arith.constant 0 : index
    %c0_42 = arith.constant 0 : index
    %c0_43 = arith.constant 0 : index
    %65 = vector.load %arg10[%c0_41, %c0_42, %c0_43] : memref<2x1x32xf32, #tpu.memory_space<vmem>>, vector<1x1x32xf32>
    %66 = vector.shape_cast %65 : vector<1x1x32xf32> to vector<1x32xf32>
    %67 = vector.broadcast %66 : vector<1x32xf32> to vector<8x32xf32>
    %68 = arith.addf %64, %67 : vector<8x32xf32>
    %69 = arith.addf %1, %68 : vector<8x32xf32>
    %c0_44 = arith.constant 0 : index
    %c0_45 = arith.constant 0 : index
    %c0_46 = arith.constant 0 : index
    %70 = vector.load %arg11[%c0_44, %c0_45, %c0_46] : memref<2x1x32xf32, #tpu.memory_space<vmem>>, vector<1x1x32xf32>
    %71 = vector.shape_cast %70 : vector<1x1x32xf32> to vector<1x32xf32>
    %c0_47 = arith.constant 0 : index
    %c0_48 = arith.constant 0 : index
    %c0_49 = arith.constant 0 : index
    %72 = vector.load %arg12[%c0_47, %c0_48, %c0_49] : memref<2x1x32xf32, #tpu.memory_space<vmem>>, vector<1x1x32xf32>
    %73 = vector.shape_cast %72 : vector<1x1x32xf32> to vector<1x32xf32>
    %cst_50 = arith.constant dense<0.000000e+00> : vector<8xf32>
    %74 = vector.multi_reduction <add>, %69, %cst_50 [1] : vector<8x32xf32> to vector<8xf32>
    %75 = vector.shape_cast %74 : vector<8xf32> to vector<8x1xf32>
    %cst_51 = arith.constant 3.200000e+01 : f32
    %76 = vector.broadcast %cst_51 : f32 to vector<8x1xf32>
    %77 = arith.divf %75, %76 : vector<8x1xf32>
    %78 = vector.broadcast %77 : vector<8x1xf32> to vector<8x32xf32>
    %79 = arith.subf %69, %78 : vector<8x32xf32>
    %80 = arith.mulf %79, %79 : vector<8x32xf32>
    %cst_52 = arith.constant dense<0.000000e+00> : vector<8xf32>
    %81 = vector.multi_reduction <add>, %80, %cst_52 [1] : vector<8x32xf32> to vector<8xf32>
    %82 = vector.shape_cast %81 : vector<8xf32> to vector<8x1xf32>
    %cst_53 = arith.constant 3.200000e+01 : f32
    %83 = vector.broadcast %cst_53 : f32 to vector<8x1xf32>
    %84 = arith.divf %82, %83 : vector<8x1xf32>
    %85 = vector.broadcast %77 : vector<8x1xf32> to vector<8x32xf32>
    %86 = arith.subf %69, %85 : vector<8x32xf32>
    %cst_54 = arith.constant 9.99999974E-6 : f32
    %87 = vector.broadcast %cst_54 : f32 to vector<8x1xf32>
    %88 = arith.addf %84, %87 : vector<8x1xf32>
    %89 = math.rsqrt %88 : vector<8x1xf32>
    %90 = vector.broadcast %89 : vector<8x1xf32> to vector<8x32xf32>
    %91 = arith.mulf %86, %90 : vector<8x32xf32>
    %92 = vector.broadcast %71 : vector<1x32xf32> to vector<8x32xf32>
    %93 = arith.mulf %91, %92 : vector<8x32xf32>
    %94 = vector.broadcast %73 : vector<1x32xf32> to vector<8x32xf32>
    %95 = arith.addf %93, %94 : vector<8x32xf32>
    %96 = arith.truncf %95 : vector<8x32xf32> to vector<8x32xbf16>
    %c0_55 = arith.constant 0 : index
    %c0_56 = arith.constant 0 : index
    %c0_57 = arith.constant 0 : index
    %97 = vector.load %arg13[%c0_55, %c0_56, %c0_57] : memref<2x32x64xbf16, #tpu.memory_space<vmem>>, vector<1x32x64xbf16>
    %98 = vector.shape_cast %97 : vector<1x32x64xbf16> to vector<32x64xbf16>
    %cst_58 = arith.constant dense<0.000000e+00> : vector<8x64xf32>
    %99 = tpu.matmul %96, %98, %cst_58 {dimension_numbers = #tpu.dot_dimension_numbers<[1], [0], [0], [1], [0, 0, 1, 1], [], []>} : vector<8x32xbf16>, vector<32x64xbf16>, vector<8x64xf32> -> vector<8x64xf32>
    %c0_59 = arith.constant 0 : index
    %c0_60 = arith.constant 0 : index
    %c0_61 = arith.constant 0 : index
    %100 = vector.load %arg14[%c0_59, %c0_60, %c0_61] : memref<2x1x64xf32, #tpu.memory_space<vmem>>, vector<1x1x64xf32>
    %101 = vector.shape_cast %100 : vector<1x1x64xf32> to vector<1x64xf32>
    %102 = vector.broadcast %101 : vector<1x64xf32> to vector<8x64xf32>
    %103 = arith.addf %99, %102 : vector<8x64xf32>
    %cst_62 = arith.constant 0.000000e+00 : f32
    %104 = vector.broadcast %cst_62 : f32 to vector<8x64xf32>
    %105 = arith.maximumf %103, %104 : vector<8x64xf32>
    %106 = arith.truncf %105 : vector<8x64xf32> to vector<8x64xbf16>
    %c0_63 = arith.constant 0 : index
    %c0_64 = arith.constant 0 : index
    %c0_65 = arith.constant 0 : index
    %107 = vector.load %arg15[%c0_63, %c0_64, %c0_65] : memref<2x64x32xbf16, #tpu.memory_space<vmem>>, vector<1x64x32xbf16>
    %108 = vector.shape_cast %107 : vector<1x64x32xbf16> to vector<64x32xbf16>
    %cst_66 = arith.constant dense<0.000000e+00> : vector<8x32xf32>
    %109 = tpu.matmul %106, %108, %cst_66 {dimension_numbers = #tpu.dot_dimension_numbers<[1], [0], [0], [1], [0, 0, 1, 1], [], []>} : vector<8x64xbf16>, vector<64x32xbf16>, vector<8x32xf32> -> vector<8x32xf32>
    %c0_67 = arith.constant 0 : index
    %c0_68 = arith.constant 0 : index
    %c0_69 = arith.constant 0 : index
    %110 = vector.load %arg16[%c0_67, %c0_68, %c0_69] : memref<2x1x32xf32, #tpu.memory_space<vmem>>, vector<1x1x32xf32>
    %111 = vector.shape_cast %110 : vector<1x1x32xf32> to vector<1x32xf32>
    %112 = vector.broadcast %111 : vector<1x32xf32> to vector<8x32xf32>
    %113 = arith.addf %109, %112 : vector<8x32xf32>
    %114 = arith.addf %95, %113 : vector<8x32xf32>
    %c0_70 = arith.constant 0 : index
    %c0_71 = arith.constant 0 : index
    %c0_72 = arith.constant 0 : index
    %115 = vector.load %arg17[%c0_70, %c0_71, %c0_72] : memref<2x1x32xf32, #tpu.memory_space<vmem>>, vector<1x1x32xf32>
    %116 = vector.shape_cast %115 : vector<1x1x32xf32> to vector<1x32xf32>
    %c0_73 = arith.constant 0 : index
    %c0_74 = arith.constant 0 : index
    %c0_75 = arith.constant 0 : index
    %117 = vector.load %arg18[%c0_73, %c0_74, %c0_75] : memref<2x1x32xf32, #tpu.memory_space<vmem>>, vector<1x1x32xf32>
    %118 = vector.shape_cast %117 : vector<1x1x32xf32> to vector<1x32xf32>
    %cst_76 = arith.constant dense<0.000000e+00> : vector<8xf32>
    %119 = vector.multi_reduction <add>, %114, %cst_76 [1] : vector<8x32xf32> to vector<8xf32>
    %120 = vector.shape_cast %119 : vector<8xf32> to vector<8x1xf32>
    %cst_77 = arith.constant 3.200000e+01 : f32
    %121 = vector.broadcast %cst_77 : f32 to vector<8x1xf32>
    %122 = arith.divf %120, %121 : vector<8x1xf32>
    %123 = vector.broadcast %122 : vector<8x1xf32> to vector<8x32xf32>
    %124 = arith.subf %114, %123 : vector<8x32xf32>
    %125 = arith.mulf %124, %124 : vector<8x32xf32>
    %cst_78 = arith.constant dense<0.000000e+00> : vector<8xf32>
    %126 = vector.multi_reduction <add>, %125, %cst_78 [1] : vector<8x32xf32> to vector<8xf32>
    %127 = vector.shape_cast %126 : vector<8xf32> to vector<8x1xf32>
    %cst_79 = arith.constant 3.200000e+01 : f32
    %128 = vector.broadcast %cst_79 : f32 to vector<8x1xf32>
    %129 = arith.divf %127, %128 : vector<8x1xf32>
    %130 = vector.broadcast %122 : vector<8x1xf32> to vector<8x32xf32>
    %131 = arith.subf %114, %130 : vector<8x32xf32>
    %cst_80 = arith.constant 9.99999974E-6 : f32
    %132 = vector.broadcast %cst_80 : f32 to vector<8x1xf32>
    %133 = arith.addf %129, %132 : vector<8x1xf32>
    %134 = math.rsqrt %133 : vector<8x1xf32>
    %135 = vector.broadcast %134 : vector<8x1xf32> to vector<8x32xf32>
    %136 = arith.mulf %131, %135 : vector<8x32xf32>
    %137 = vector.broadcast %116 : vector<1x32xf32> to vector<8x32xf32>
    %138 = arith.mulf %136, %137 : vector<8x32xf32>
    %139 = vector.broadcast %118 : vector<1x32xf32> to vector<8x32xf32>
    %140 = arith.addf %138, %139 : vector<8x32xf32>
    %141 = arith.truncf %140 : vector<8x32xf32> to vector<8x32xbf16>
    %142 = vector.shape_cast %141 : vector<8x32xbf16> to vector<1x8x32xbf16>
    %143 = vector.shape_cast %142 : vector<1x8x32xbf16> to vector<1x8x32xbf16>
    %144 = vector.broadcast %143 : vector<1x8x32xbf16> to vector<4x8x32xbf16>
    %c1 = arith.constant 1 : index
    %c0_81 = arith.constant 0 : index
    %c0_82 = arith.constant 0 : index
    %c0_83 = arith.constant 0 : index
    %145 = vector.load %arg3[%c1, %c0_81, %c0_82, %c0_83] : memref<2x4x32x8xbf16, #tpu.memory_space<vmem>>, vector<1x4x32x8xbf16>
    %146 = vector.shape_cast %145 : vector<1x4x32x8xbf16> to vector<4x32x8xbf16>
    "tpu.trace_start"() <{level = 10 : i32, message = "hsd,hde->hse"}> : () -> ()
    %cst_84 = arith.constant dense<0.000000e+00> : vector<4x8x8xf32>
    %147 = tpu.matmul %144, %146, %cst_84 {dimension_numbers = #tpu.dot_dimension_numbers<[2], [1], [1], [2], [0, 0, 0, 1, 1, 2], [0], [0]>} : vector<4x8x32xbf16>, vector<4x32x8xbf16>, vector<4x8x8xf32> -> vector<4x8x8xf32>
    "tpu.trace_stop"() : () -> ()
    %c1_85 = arith.constant 1 : index
    %c0_86 = arith.constant 0 : index
    %c0_87 = arith.constant 0 : index
    %c0_88 = arith.constant 0 : index
    %148 = vector.load %arg4[%c1_85, %c0_86, %c0_87, %c0_88] : memref<2x4x1x8xf32, #tpu.memory_space<vmem>>, vector<1x4x1x8xf32>
    %149 = vector.shape_cast %148 : vector<1x4x1x8xf32> to vector<4x1x8xf32>
    %150 = vector.broadcast %149 : vector<4x1x8xf32> to vector<4x8x8xf32>
    %151 = arith.addf %147, %150 : vector<4x8x8xf32>
    %cst_89 = arith.constant 0.353553385 : f32
    %152 = vector.broadcast %cst_89 : f32 to vector<4x8x8xf32>
    %153 = arith.mulf %151, %152 : vector<4x8x8xf32>
    %c1_90 = arith.constant 1 : index
    %c0_91 = arith.constant 0 : index
    %c0_92 = arith.constant 0 : index
    %c0_93 = arith.constant 0 : index
    %154 = vector.load %arg5[%c1_90, %c0_91, %c0_92, %c0_93] : memref<2x4x32x8xbf16, #tpu.memory_space<vmem>>, vector<1x4x32x8xbf16>
    %155 = vector.shape_cast %154 : vector<1x4x32x8xbf16> to vector<4x32x8xbf16>
    "tpu.trace_start"() <{level = 10 : i32, message = "hsd,hde->hse"}> : () -> ()
    %cst_94 = arith.constant dense<0.000000e+00> : vector<4x8x8xf32>
    %156 = tpu.matmul %144, %155, %cst_94 {dimension_numbers = #tpu.dot_dimension_numbers<[2], [1], [1], [2], [0, 0, 0, 1, 1, 2], [0], [0]>} : vector<4x8x32xbf16>, vector<4x32x8xbf16>, vector<4x8x8xf32> -> vector<4x8x8xf32>
    "tpu.trace_stop"() : () -> ()
    %c1_95 = arith.constant 1 : index
    %c0_96 = arith.constant 0 : index
    %c0_97 = arith.constant 0 : index
    %c0_98 = arith.constant 0 : index
    %157 = vector.load %arg6[%c1_95, %c0_96, %c0_97, %c0_98] : memref<2x4x1x8xf32, #tpu.memory_space<vmem>>, vector<1x4x1x8xf32>
    %158 = vector.shape_cast %157 : vector<1x4x1x8xf32> to vector<4x1x8xf32>
    %159 = vector.broadcast %158 : vector<4x1x8xf32> to vector<4x8x8xf32>
    %160 = arith.addf %156, %159 : vector<4x8x8xf32>
    %c1_99 = arith.constant 1 : index
    %c0_100 = arith.constant 0 : index
    %c0_101 = arith.constant 0 : index
    %c0_102 = arith.constant 0 : index
    %161 = vector.load %arg7[%c1_99, %c0_100, %c0_101, %c0_102] : memref<2x4x32x8xbf16, #tpu.memory_space<vmem>>, vector<1x4x32x8xbf16>
    %162 = vector.shape_cast %161 : vector<1x4x32x8xbf16> to vector<4x32x8xbf16>
    "tpu.trace_start"() <{level = 10 : i32, message = "hsd,hde->hse"}> : () -> ()
    %cst_103 = arith.constant dense<0.000000e+00> : vector<4x8x8xf32>
    %163 = tpu.matmul %144, %162, %cst_103 {dimension_numbers = #tpu.dot_dimension_numbers<[2], [1], [1], [2], [0, 0, 0, 1, 1, 2], [0], [0]>} : vector<4x8x32xbf16>, vector<4x32x8xbf16>, vector<4x8x8xf32> -> vector<4x8x8xf32>
    "tpu.trace_stop"() : () -> ()
    %c1_104 = arith.constant 1 : index
    %c0_105 = arith.constant 0 : index
    %c0_106 = arith.constant 0 : index
    %c0_107 = arith.constant 0 : index
    %164 = vector.load %arg8[%c1_104, %c0_105, %c0_106, %c0_107] : memref<2x4x1x8xf32, #tpu.memory_space<vmem>>, vector<1x4x1x8xf32>
    %165 = vector.shape_cast %164 : vector<1x4x1x8xf32> to vector<4x1x8xf32>
    %166 = vector.broadcast %165 : vector<4x1x8xf32> to vector<4x8x8xf32>
    %167 = arith.addf %163, %166 : vector<4x8x8xf32>
    %168 = arith.truncf %153 : vector<4x8x8xf32> to vector<4x8x8xbf16>
    %169 = arith.truncf %160 : vector<4x8x8xf32> to vector<4x8x8xbf16>
    "tpu.trace_start"() <{level = 10 : i32, message = "hqe,hke->hqk"}> : () -> ()
    %cst_108 = arith.constant dense<0.000000e+00> : vector<4x8x8xf32>
    %170 = tpu.matmul %168, %169, %cst_108 {dimension_numbers = #tpu.dot_dimension_numbers<[2], [2], [1], [1], [0, 0, 0, 1, 1, 1], [0], [0]>} : vector<4x8x8xbf16>, vector<4x8x8xbf16>, vector<4x8x8xf32> -> vector<4x8x8xf32>
    "tpu.trace_stop"() : () -> ()
    %171 = vector.broadcast %4 : vector<1x1x8xf32> to vector<4x8x8xf32>
    %172 = arith.addf %170, %171 : vector<4x8x8xf32>
    %cst_109 = arith.constant dense<0xFF800000> : vector<4x8xf32>
    %173 = vector.multi_reduction <maximumf>, %172, %cst_109 [2] : vector<4x8x8xf32> to vector<4x8xf32>
    %174 = vector.shape_cast %173 : vector<4x8xf32> to vector<4x8x1xf32>
    %175 = vector.broadcast %174 : vector<4x8x1xf32> to vector<4x8x8xf32>
    %176 = arith.subf %172, %175 : vector<4x8x8xf32>
    %177 = math.exp %176 : vector<4x8x8xf32>
    %cst_110 = arith.constant dense<0.000000e+00> : vector<4x8xf32>
    %178 = vector.multi_reduction <add>, %177, %cst_110 [2] : vector<4x8x8xf32> to vector<4x8xf32>
    %179 = vector.shape_cast %178 : vector<4x8xf32> to vector<4x8x1xf32>
    %180 = tpu.reciprocal %179 {approx = true} : vector<4x8x1xf32> -> vector<4x8x1xf32>
    %181 = vector.broadcast %180 : vector<4x8x1xf32> to vector<4x8x8xf32>
    %182 = arith.mulf %177, %181 : vector<4x8x8xf32>
    %183 = arith.truncf %182 : vector<4x8x8xf32> to vector<4x8x8xbf16>
    %184 = arith.truncf %167 : vector<4x8x8xf32> to vector<4x8x8xbf16>
    "tpu.trace_start"() <{level = 10 : i32, message = "hqk,hke->hqe"}> : () -> ()
    %cst_111 = arith.constant dense<0.000000e+00> : vector<4x8x8xf32>
    %185 = tpu.matmul %183, %184, %cst_111 {dimension_numbers = #tpu.dot_dimension_numbers<[2], [1], [1], [2], [0, 0, 0, 1, 1, 2], [0], [0]>} : vector<4x8x8xbf16>, vector<4x8x8xbf16>, vector<4x8x8xf32> -> vector<4x8x8xf32>
    "tpu.trace_stop"() : () -> ()
    %186 = arith.truncf %185 : vector<4x8x8xf32> to vector<4x8x8xbf16>
    %c1_112 = arith.constant 1 : index
    %c0_113 = arith.constant 0 : index
    %c0_114 = arith.constant 0 : index
    %c0_115 = arith.constant 0 : index
    %187 = vector.load %arg9[%c1_112, %c0_113, %c0_114, %c0_115] : memref<2x4x8x32xbf16, #tpu.memory_space<vmem>>, vector<1x4x8x32xbf16>
    %188 = vector.shape_cast %187 : vector<1x4x8x32xbf16> to vector<4x8x32xbf16>
    "tpu.trace_start"() <{level = 10 : i32, message = "hqe,hed->hqd"}> : () -> ()
    %cst_116 = arith.constant dense<0.000000e+00> : vector<4x8x32xf32>
    %189 = tpu.matmul %186, %188, %cst_116 {dimension_numbers = #tpu.dot_dimension_numbers<[2], [1], [1], [2], [0, 0, 0, 1, 1, 2], [0], [0]>} : vector<4x8x8xbf16>, vector<4x8x32xbf16>, vector<4x8x32xf32> -> vector<4x8x32xf32>
    "tpu.trace_stop"() : () -> ()
    %190 = vector.extract_strided_slice %189 {offsets = [0, 0, 0], sizes = [1, 8, 32], strides = [1, 1, 1]} : vector<4x8x32xf32> to vector<1x8x32xf32>
    %191 = vector.shape_cast %190 : vector<1x8x32xf32> to vector<8x32xf32>
    %192 = vector.extract_strided_slice %189 {offsets = [1, 0, 0], sizes = [1, 8, 32], strides = [1, 1, 1]} : vector<4x8x32xf32> to vector<1x8x32xf32>
    %193 = vector.shape_cast %192 : vector<1x8x32xf32> to vector<8x32xf32>
    %194 = arith.addf %191, %193 : vector<8x32xf32>
    %195 = vector.extract_strided_slice %189 {offsets = [2, 0, 0], sizes = [1, 8, 32], strides = [1, 1, 1]} : vector<4x8x32xf32> to vector<1x8x32xf32>
    %196 = vector.shape_cast %195 : vector<1x8x32xf32> to vector<8x32xf32>
    %197 = arith.addf %194, %196 : vector<8x32xf32>
    %198 = vector.extract_strided_slice %189 {offsets = [3, 0, 0], sizes = [1, 8, 32], strides = [1, 1, 1]} : vector<4x8x32xf32> to vector<1x8x32xf32>
    %199 = vector.shape_cast %198 : vector<1x8x32xf32> to vector<8x32xf32>
    %200 = arith.addf %197, %199 : vector<8x32xf32>
    %c1_117 = arith.constant 1 : index
    %c0_118 = arith.constant 0 : index
    %c0_119 = arith.constant 0 : index
    %201 = vector.load %arg10[%c1_117, %c0_118, %c0_119] : memref<2x1x32xf32, #tpu.memory_space<vmem>>, vector<1x1x32xf32>
    %202 = vector.shape_cast %201 : vector<1x1x32xf32> to vector<1x32xf32>
    %203 = vector.broadcast %202 : vector<1x32xf32> to vector<8x32xf32>
    %204 = arith.addf %200, %203 : vector<8x32xf32>
    %205 = arith.addf %140, %204 : vector<8x32xf32>
    %c1_120 = arith.constant 1 : index
    %c0_121 = arith.constant 0 : index
    %c0_122 = arith.constant 0 : index
    %206 = vector.load %arg11[%c1_120, %c0_121, %c0_122] : memref<2x1x32xf32, #tpu.memory_space<vmem>>, vector<1x1x32xf32>
    %207 = vector.shape_cast %206 : vector<1x1x32xf32> to vector<1x32xf32>
    %c1_123 = arith.constant 1 : index
    %c0_124 = arith.constant 0 : index
    %c0_125 = arith.constant 0 : index
    %208 = vector.load %arg12[%c1_123, %c0_124, %c0_125] : memref<2x1x32xf32, #tpu.memory_space<vmem>>, vector<1x1x32xf32>
    %209 = vector.shape_cast %208 : vector<1x1x32xf32> to vector<1x32xf32>
    %cst_126 = arith.constant dense<0.000000e+00> : vector<8xf32>
    %210 = vector.multi_reduction <add>, %205, %cst_126 [1] : vector<8x32xf32> to vector<8xf32>
    %211 = vector.shape_cast %210 : vector<8xf32> to vector<8x1xf32>
    %cst_127 = arith.constant 3.200000e+01 : f32
    %212 = vector.broadcast %cst_127 : f32 to vector<8x1xf32>
    %213 = arith.divf %211, %212 : vector<8x1xf32>
    %214 = vector.broadcast %213 : vector<8x1xf32> to vector<8x32xf32>
    %215 = arith.subf %205, %214 : vector<8x32xf32>
    %216 = arith.mulf %215, %215 : vector<8x32xf32>
    %cst_128 = arith.constant dense<0.000000e+00> : vector<8xf32>
    %217 = vector.multi_reduction <add>, %216, %cst_128 [1] : vector<8x32xf32> to vector<8xf32>
    %218 = vector.shape_cast %217 : vector<8xf32> to vector<8x1xf32>
    %cst_129 = arith.constant 3.200000e+01 : f32
    %219 = vector.broadcast %cst_129 : f32 to vector<8x1xf32>
    %220 = arith.divf %218, %219 : vector<8x1xf32>
    %221 = vector.broadcast %213 : vector<8x1xf32> to vector<8x32xf32>
    %222 = arith.subf %205, %221 : vector<8x32xf32>
    %cst_130 = arith.constant 9.99999974E-6 : f32
    %223 = vector.broadcast %cst_130 : f32 to vector<8x1xf32>
    %224 = arith.addf %220, %223 : vector<8x1xf32>
    %225 = math.rsqrt %224 : vector<8x1xf32>
    %226 = vector.broadcast %225 : vector<8x1xf32> to vector<8x32xf32>
    %227 = arith.mulf %222, %226 : vector<8x32xf32>
    %228 = vector.broadcast %207 : vector<1x32xf32> to vector<8x32xf32>
    %229 = arith.mulf %227, %228 : vector<8x32xf32>
    %230 = vector.broadcast %209 : vector<1x32xf32> to vector<8x32xf32>
    %231 = arith.addf %229, %230 : vector<8x32xf32>
    %232 = arith.truncf %231 : vector<8x32xf32> to vector<8x32xbf16>
    %c1_131 = arith.constant 1 : index
    %c0_132 = arith.constant 0 : index
    %c0_133 = arith.constant 0 : index
    %233 = vector.load %arg13[%c1_131, %c0_132, %c0_133] : memref<2x32x64xbf16, #tpu.memory_space<vmem>>, vector<1x32x64xbf16>
    %234 = vector.shape_cast %233 : vector<1x32x64xbf16> to vector<32x64xbf16>
    %cst_134 = arith.constant dense<0.000000e+00> : vector<8x64xf32>
    %235 = tpu.matmul %232, %234, %cst_134 {dimension_numbers = #tpu.dot_dimension_numbers<[1], [0], [0], [1], [0, 0, 1, 1], [], []>} : vector<8x32xbf16>, vector<32x64xbf16>, vector<8x64xf32> -> vector<8x64xf32>
    %c1_135 = arith.constant 1 : index
    %c0_136 = arith.constant 0 : index
    %c0_137 = arith.constant 0 : index
    %236 = vector.load %arg14[%c1_135, %c0_136, %c0_137] : memref<2x1x64xf32, #tpu.memory_space<vmem>>, vector<1x1x64xf32>
    %237 = vector.shape_cast %236 : vector<1x1x64xf32> to vector<1x64xf32>
    %238 = vector.broadcast %237 : vector<1x64xf32> to vector<8x64xf32>
    %239 = arith.addf %235, %238 : vector<8x64xf32>
    %cst_138 = arith.constant 0.000000e+00 : f32
    %240 = vector.broadcast %cst_138 : f32 to vector<8x64xf32>
    %241 = arith.maximumf %239, %240 : vector<8x64xf32>
    %242 = arith.truncf %241 : vector<8x64xf32> to vector<8x64xbf16>
    %c1_139 = arith.constant 1 : index
    %c0_140 = arith.constant 0 : index
    %c0_141 = arith.constant 0 : index
    %243 = vector.load %arg15[%c1_139, %c0_140, %c0_141] : memref<2x64x32xbf16, #tpu.memory_space<vmem>>, vector<1x64x32xbf16>
    %244 = vector.shape_cast %243 : vector<1x64x32xbf16> to vector<64x32xbf16>
    %cst_142 = arith.constant dense<0.000000e+00> : vector<8x32xf32>
    %245 = tpu.matmul %242, %244, %cst_142 {dimension_numbers = #tpu.dot_dimension_numbers<[1], [0], [0], [1], [0, 0, 1, 1], [], []>} : vector<8x64xbf16>, vector<64x32xbf16>, vector<8x32xf32> -> vector<8x32xf32>
    %c1_143 = arith.constant 1 : index
    %c0_144 = arith.constant 0 : index
    %c0_145 = arith.constant 0 : index
    %246 = vector.load %arg16[%c1_143, %c0_144, %c0_145] : memref<2x1x32xf32, #tpu.memory_space<vmem>>, vector<1x1x32xf32>
    %247 = vector.shape_cast %246 : vector<1x1x32xf32> to vector<1x32xf32>
    %248 = vector.broadcast %247 : vector<1x32xf32> to vector<8x32xf32>
    %249 = arith.addf %245, %248 : vector<8x32xf32>
    %250 = arith.addf %231, %249 : vector<8x32xf32>
    %c1_146 = arith.constant 1 : index
    %c0_147 = arith.constant 0 : index
    %c0_148 = arith.constant 0 : index
    %251 = vector.load %arg17[%c1_146, %c0_147, %c0_148] : memref<2x1x32xf32, #tpu.memory_space<vmem>>, vector<1x1x32xf32>
    %252 = vector.shape_cast %251 : vector<1x1x32xf32> to vector<1x32xf32>
    %c1_149 = arith.constant 1 : index
    %c0_150 = arith.constant 0 : index
    %c0_151 = arith.constant 0 : index
    %253 = vector.load %arg18[%c1_149, %c0_150, %c0_151] : memref<2x1x32xf32, #tpu.memory_space<vmem>>, vector<1x1x32xf32>
    %254 = vector.shape_cast %253 : vector<1x1x32xf32> to vector<1x32xf32>
    %cst_152 = arith.constant dense<0.000000e+00> : vector<8xf32>
    %255 = vector.multi_reduction <add>, %250, %cst_152 [1] : vector<8x32xf32> to vector<8xf32>
    %256 = vector.shape_cast %255 : vector<8xf32> to vector<8x1xf32>
    %cst_153 = arith.constant 3.200000e+01 : f32
    %257 = vector.broadcast %cst_153 : f32 to vector<8x1xf32>
    %258 = arith.divf %256, %257 : vector<8x1xf32>
    %259 = vector.broadcast %258 : vector<8x1xf32> to vector<8x32xf32>
    %260 = arith.subf %250, %259 : vector<8x32xf32>
    %261 = arith.mulf %260, %260 : vector<8x32xf32>
    %cst_154 = arith.constant dense<0.000000e+00> : vector<8xf32>
    %262 = vector.multi_reduction <add>, %261, %cst_154 [1] : vector<8x32xf32> to vector<8xf32>
    %263 = vector.shape_cast %262 : vector<8xf32> to vector<8x1xf32>
    %cst_155 = arith.constant 3.200000e+01 : f32
    %264 = vector.broadcast %cst_155 : f32 to vector<8x1xf32>
    %265 = arith.divf %263, %264 : vector<8x1xf32>
    %266 = vector.broadcast %258 : vector<8x1xf32> to vector<8x32xf32>
    %267 = arith.subf %250, %266 : vector<8x32xf32>
    %cst_156 = arith.constant 9.99999974E-6 : f32
    %268 = vector.broadcast %cst_156 : f32 to vector<8x1xf32>
    %269 = arith.addf %265, %268 : vector<8x1xf32>
    %270 = math.rsqrt %269 : vector<8x1xf32>
    %271 = vector.broadcast %270 : vector<8x1xf32> to vector<8x32xf32>
    %272 = arith.mulf %267, %271 : vector<8x32xf32>
    %273 = vector.broadcast %252 : vector<1x32xf32> to vector<8x32xf32>
    %274 = arith.mulf %272, %273 : vector<8x32xf32>
    %275 = vector.broadcast %254 : vector<1x32xf32> to vector<8x32xf32>
    %276 = arith.addf %274, %275 : vector<8x32xf32>
    %c0_157 = arith.constant 0 : index
    %c0_158 = arith.constant 0 : index
    %c0_159 = arith.constant 0 : index
    %277 = vector.load %arg19[%c0_157, %c0_158, %c0_159] : memref<1x8x32xf32, #tpu.memory_space<vmem>>, vector<1x8x32xf32>
    %278 = vector.shape_cast %277 : vector<1x8x32xf32> to vector<8x32xf32>
    %279 = vector.shape_cast %276 : vector<8x32xf32> to vector<1x8x32xf32>
    tpu.vector_store %arg19[%c0_157, %c0_158, %c0_159], %279 {strides = array<i32>} : memref<1x8x32xf32, #tpu.memory_space<vmem>>, vector<1x8x32xf32>,
    return
  }
  func.func @transform_0(%arg0: i32) -> (i32, i32, i32) {
    %c0_i32 = arith.constant 0 : i32
    %c0_i32_0 = arith.constant 0 : i32
    %c0_i32_1 = arith.constant 0 : i32
    return %arg0, %c0_i32, %c0_i32_0 : i32, i32, i32
  }
  func.func @transform_1(%arg0: i32) -> (i32, i32, i32) {
    %c0_i32 = arith.constant 0 : i32
    %c0_i32_0 = arith.constant 0 : i32
    %c0_i32_1 = arith.constant 0 : i32
    return %arg0, %c0_i32, %c0_i32_0 : i32, i32, i32
  }
  func.func @transform_2(%arg0: i32) -> (i32, i32, i32, i32) {
    %c0_i32 = arith.constant 0 : i32
    %c0_i32_0 = arith.constant 0 : i32
    %c0_i32_1 = arith.constant 0 : i32
    %c0_i32_2 = arith.constant 0 : i32
    %c0_i32_3 = arith.constant 0 : i32
    return %c0_i32, %c0_i32_0, %c0_i32_1, %c0_i32_2 : i32, i32, i32, i32
  }
  func.func @transform_3(%arg0: i32) -> (i32, i32, i32, i32) {
    %c0_i32 = arith.constant 0 : i32
    %c0_i32_0 = arith.constant 0 : i32
    %c0_i32_1 = arith.constant 0 : i32
    %c0_i32_2 = arith.constant 0 : i32
    %c0_i32_3 = arith.constant 0 : i32
    return %c0_i32, %c0_i32_0, %c0_i32_1, %c0_i32_2 : i32, i32, i32, i32
  }
  func.func @transform_4(%arg0: i32) -> (i32, i32, i32, i32) {
    %c0_i32 = arith.constant 0 : i32
    %c0_i32_0 = arith.constant 0 : i32
    %c0_i32_1 = arith.constant 0 : i32
    %c0_i32_2 = arith.constant 0 : i32
    %c0_i32_3 = arith.constant 0 : i32
    return %c0_i32, %c0_i32_0, %c0_i32_1, %c0_i32_2 : i32, i32, i32, i32
  }
  func.func @transform_5(%arg0: i32) -> (i32, i32, i32, i32) {
    %c0_i32 = arith.constant 0 : i32
    %c0_i32_0 = arith.constant 0 : i32
    %c0_i32_1 = arith.constant 0 : i32
    %c0_i32_2 = arith.constant 0 : i32
    %c0_i32_3 = arith.constant 0 : i32
    return %c0_i32, %c0_i32_0, %c0_i32_1, %c0_i32_2 : i32, i32, i32, i32
  }
  func.func @transform_6(%arg0: i32) -> (i32, i32, i32, i32) {
    %c0_i32 = arith.constant 0 : i32
    %c0_i32_0 = arith.constant 0 : i32
    %c0_i32_1 = arith.constant 0 : i32
    %c0_i32_2 = arith.constant 0 : i32
    %c0_i32_3 = arith.constant 0 : i32
    return %c0_i32, %c0_i32_0, %c0_i32_1, %c0_i32_2 : i32, i32, i32, i32
  }
  func.func @transform_7(%arg0: i32) -> (i32, i32, i32, i32) {
    %c0_i32 = arith.constant 0 : i32
    %c0_i32_0 = arith.constant 0 : i32
    %c0_i32_1 = arith.constant 0 : i32
    %c0_i32_2 = arith.constant 0 : i32
    %c0_i32_3 = arith.constant 0 : i32
    return %c0_i32, %c0_i32_0, %c0_i32_1, %c0_i32_2 : i32, i32, i32, i32
  }
  func.func @transform_8(%arg0: i32) -> (i32, i32, i32, i32) {
    %c0_i32 = arith.constant 0 : i32
    %c0_i32_0 = arith.constant 0 : i32
    %c0_i32_1 = arith.constant 0 : i32
    %c0_i32_2 = arith.constant 0 : i32
    %c0_i32_3 = arith.constant 0 : i32
    return %c0_i32, %c0_i32_0, %c0_i32_1, %c0_i32_2 : i32, i32, i32, i32
  }
  func.func @transform_9(%arg0: i32) -> (i32, i32, i32) {
    %c0_i32 = arith.constant 0 : i32
    %c0_i32_0 = arith.constant 0 : i32
    %c0_i32_1 = arith.constant 0 : i32
    %c0_i32_2 = arith.constant 0 : i32
    return %c0_i32, %c0_i32_0, %c0_i32_1 : i32, i32, i32
  }
  func.func @transform_10(%arg0: i32) -> (i32, i32, i32) {
    %c0_i32 = arith.constant 0 : i32
    %c0_i32_0 = arith.constant 0 : i32
    %c0_i32_1 = arith.constant 0 : i32
    %c0_i32_2 = arith.constant 0 : i32
    return %c0_i32, %c0_i32_0, %c0_i32_1 : i32, i32, i32
  }
  func.func @transform_11(%arg0: i32) -> (i32, i32, i32) {
    %c0_i32 = arith.constant 0 : i32
    %c0_i32_0 = arith.constant 0 : i32
    %c0_i32_1 = arith.constant 0 : i32
    %c0_i32_2 = arith.constant 0 : i32
    return %c0_i32, %c0_i32_0, %c0_i32_1 : i32, i32, i32
  }
  func.func @transform_12(%arg0: i32) -> (i32, i32, i32) {
    %c0_i32 = arith.constant 0 : i32
    %c0_i32_0 = arith.constant 0 : i32
    %c0_i32_1 = arith.constant 0 : i32
    %c0_i32_2 = arith.constant 0 : i32
    return %c0_i32, %c0_i32_0, %c0_i32_1 : i32, i32, i32
  }
  func.func @transform_13(%arg0: i32) -> (i32, i32, i32) {
    %c0_i32 = arith.constant 0 : i32
    %c0_i32_0 = arith.constant 0 : i32
    %c0_i32_1 = arith.constant 0 : i32
    %c0_i32_2 = arith.constant 0 : i32
    return %c0_i32, %c0_i32_0, %c0_i32_1 : i32, i32, i32
  }
  func.func @transform_14(%arg0: i32) -> (i32, i32, i32) {
    %c0_i32 = arith.constant 0 : i32
    %c0_i32_0 = arith.constant 0 : i32
    %c0_i32_1 = arith.constant 0 : i32
    %c0_i32_2 = arith.constant 0 : i32
    return %c0_i32, %c0_i32_0, %c0_i32_1 : i32, i32, i32
  }
  func.func @transform_15(%arg0: i32) -> (i32, i32, i32) {
    %c0_i32 = arith.constant 0 : i32
    %c0_i32_0 = arith.constant 0 : i32
    %c0_i32_1 = arith.constant 0 : i32
    %c0_i32_2 = arith.constant 0 : i32
    return %c0_i32, %c0_i32_0, %c0_i32_1 : i32, i32, i32
  }
  func.func @transform_16(%arg0: i32) -> (i32, i32, i32) {
    %c0_i32 = arith.constant 0 : i32
    %c0_i32_0 = arith.constant 0 : i32
    %c0_i32_1 = arith.constant 0 : i32
    %c0_i32_2 = arith.constant 0 : i32
    return %c0_i32, %c0_i32_0, %c0_i32_1 : i32, i32, i32
  }
  func.func @transform_17(%arg0: i32) -> (i32, i32, i32) {
    %c0_i32 = arith.constant 0 : i32
    %c0_i32_0 = arith.constant 0 : i32
    %c0_i32_1 = arith.constant 0 : i32
    %c0_i32_2 = arith.constant 0 : i32
    return %c0_i32, %c0_i32_0, %c0_i32_1 : i32, i32, i32
  }
  func.func @transform_18(%arg0: i32) -> (i32, i32, i32) {
    %c0_i32 = arith.constant 0 : i32
    %c0_i32_0 = arith.constant 0 : i32
    %c0_i32_1 = arith.constant 0 : i32
    return %arg0, %c0_i32, %c0_i32_0 : i32, i32, i32
  }
}

</mosaic_0001>

<llo_original>
// kernel: tpu_custom_call.1
$region0: #{tpu_custom_call.1}
  #allocation0 [shape = 'u32[]', space=smem, size = 0x4, offset = 0x4, fixed_abs, tag = 'smem constant byte address 0x4 - core index']
  #allocation1 [shape = 'u32[144,128]{1,0:T(1,128)}', space=vmem, size = 0x12000, scoped, tag = 'internal scratch']
  %s0 = inlined_call_operand.vmem [shape: f32[2,8,32], index: 0, kind: input, shape index: {}]
  %s1 = inlined_call_operand.vmem [shape: f32[2,1,8], index: 1, kind: input, shape index: {}]
  %s2 = inlined_call_operand.vmem [shape: bf16[2,4,32,8], index: 2, kind: input, shape index: {}]
  %s3 = inlined_call_operand.vmem [shape: f32[2,4,1,8], index: 3, kind: input, shape index: {}]
  %s4 = inlined_call_operand.vmem [shape: bf16[2,4,32,8], index: 4, kind: input, shape index: {}]
  %s5 = inlined_call_operand.vmem [shape: f32[2,4,1,8], index: 5, kind: input, shape index: {}]
  %s6 = inlined_call_operand.vmem [shape: bf16[2,4,32,8], index: 6, kind: input, shape index: {}]
  %s7 = inlined_call_operand.vmem [shape: f32[2,4,1,8], index: 7, kind: input, shape index: {}]
  %s8 = inlined_call_operand.vmem [shape: bf16[2,4,8,32], index: 8, kind: input, shape index: {}]
  %s9 = inlined_call_operand.vmem [shape: f32[2,1,32], index: 9, kind: input, shape index: {}]
  %s10 = inlined_call_operand.vmem [shape: f32[2,1,32], index: 10, kind: input, shape index: {}]
  %s11 = inlined_call_operand.vmem [shape: f32[2,1,32], index: 11, kind: input, shape index: {}]
  %s12 = inlined_call_operand.vmem [shape: bf16[2,32,64], index: 12, kind: input, shape index: {}]
  %s13 = inlined_call_operand.vmem [shape: f32[2,1,64], index: 13, kind: input, shape index: {}]
  %s14 = inlined_call_operand.vmem [shape: bf16[2,64,32], index: 14, kind: input, shape index: {}]
  %s15 = inlined_call_operand.vmem [shape: f32[2,1,32], index: 15, kind: input, shape index: {}]
  %s16 = inlined_call_operand.vmem [shape: f32[2,1,32], index: 16, kind: input, shape index: {}]
  %s17 = inlined_call_operand.vmem [shape: f32[2,1,32], index: 17, kind: input, shape index: {}]
  %s18 = inlined_call_operand.hbm [shape: f32[2,8,32], index: 18, kind: output, shape index: {}]
  %s19 = sld [smem:[#allocation0]]
  $region105: #{tpu_custom_call.1} parent=0
    _
  %s21 = ssub.s32 1, %s19
  %s22 = scalar_select 0, %s21, %s19
  $region1: #{tpu_custom_call.1} parent=0
    #allocation2 [shape = 'u8[8192]{0}', space=vmem, size = 0x2000, scoped, tag = 'output window, operand 0']
    #allocation3 [shape = 's32[2]{0}', space=sflag, size = 0x8, scoped, tag = 'scoped memory for tpu_custom_call.1']
    %23 = vsyncpa [#allocation3], 0
    %s24 = scalar_lea.sflag [#allocation3], 1
    %25 = vsyncpa %s24, 0
    loop: start=0, step=1, limit=4
    $region2: #{tpu_custom_call.1} parent=1 // loop_pre_header
      _
    $region3: #{tpu_custom_call.1} parent=1 // loop_header
      %s27 = sphi 0, %s31
      %p28 = scmp.ge.s32.totalorder %s27, 4
      %s37 = sphi 0, %s39
      %s40 = sphi 0, %s37
      %s41 = sphi 0, %s40
      %s57 = sphi 0, %s41
      %s63 = sphi 0, %s65
      %s66 = sphi 0, %s63
      %s67 = sphi 0, %s66
      %s83 = sphi 0, %s67
      %s87 = sphi 0, %s87
      %s89 = sphi 0, %s87
      %s90 = sphi 0, %s89
      %s104 = sphi 0, %s90
      %s108 = sphi 0, %s108
      %s110 = sphi 0, %s108
      %s111 = sphi 0, %s110
      %s125 = sphi 0, %s111
      %s129 = sphi 0, %s129
      %s131 = sphi 0, %s129
      %s132 = sphi 0, %s131
      %s146 = sphi 0, %s132
      %s150 = sphi 0, %s150
      %s152 = sphi 0, %s150
      %s153 = sphi 0, %s152
      %s167 = sphi 0, %s153
      %s171 = sphi 0, %s171
      %s173 = sphi 0, %s171
      %s174 = sphi 0, %s173
      %s188 = sphi 0, %s174
      %s192 = sphi 0, %s192
      %s194 = sphi 0, %s192
      %s195 = sphi 0, %s194
      %s209 = sphi 0, %s195
      %s213 = sphi 0, %s213
      %s215 = sphi 0, %s213
      %s216 = sphi 0, %s215
      %s230 = sphi 0, %s216
      %s234 = sphi 0, %s234
      %s236 = sphi 0, %s234
      %s237 = sphi 0, %s236
      %s251 = sphi 0, %s237
      %s255 = sphi 0, %s255
      %s257 = sphi 0, %s255
      %s258 = sphi 0, %s257
      %s272 = sphi 0, %s258
      %s276 = sphi 0, %s276
      %s278 = sphi 0, %s276
      %s279 = sphi 0, %s278
      %s293 = sphi 0, %s279
      %s297 = sphi 0, %s297
      %s299 = sphi 0, %s297
      %s300 = sphi 0, %s299
      %s314 = sphi 0, %s300
      %s318 = sphi 0, %s318
      %s320 = sphi 0, %s318
      %s321 = sphi 0, %s320
      %s335 = sphi 0, %s321
      %s339 = sphi 0, %s339
      %s341 = sphi 0, %s339
      %s342 = sphi 0, %s341
      %s356 = sphi 0, %s342
      %s360 = sphi 0, %s360
      %s362 = sphi 0, %s360
      %s363 = sphi 0, %s362
      %s377 = sphi 0, %s363
      %s381 = sphi 0, %s381
      %s383 = sphi 0, %s381
      %s384 = sphi 0, %s383
      %s398 = sphi 0, %s384
      %s402 = sphi 0, %s402
      %s404 = sphi 0, %s402
      %s405 = sphi 0, %s404
      %s419 = sphi 0, %s405
      %s425 = sphi 0, %s427
      %s428 = sphi 0, %s425
      %s429 = sphi 0, %s428
      %s445 = sphi 0, %s429
    $region4: #{tpu_custom_call.1} parent=1 // loop_header_branch
      %30 = sbr.rel (%p28) target = $region8
    $region5: #{tpu_custom_call.1} parent=1 // loop_body
      %s32 = ssub.s32 %s27, 1
      %s33 = ssub.s32 %s27, 2
      %s34 = sadd.s32 %s27, 1
      %s35 = ssub.s32 %s27, %s34
      %p36 = scmp.eq.s32.totalorder %s35, 0
      %s38 = sadd.s32 %s37, 1
      %s39 = scalar_select %p36, %s37, %s38
      %p42 = pneg %p36
      %p43 = scmp.eq.s32.totalorder %s27, 1
      %p44 = por %p42, %p43
      %p45 = scmp.ne.s32.totalorder %s37, %s40
      %p46 = scmp.eq.s32.totalorder %s27, 0
      %p47 = por %p45, %p46
      %p48 = scmp.ne.s32.totalorder %s37, %s40
      %p49 = scmp.eq.s32.totalorder %s32, 1
      %p50 = por %p48, %p49
      %p51 = scmp.ne.s32.totalorder %s40, %s41
      %p52 = scmp.eq.s32.totalorder %s32, 0
      %p53 = por %p51, %p52
      %p54 = scmp.ne.s32.totalorder %s40, %s41
      %p55 = scmp.eq.s32.totalorder %s33, 1
      %p56 = por %p54, %p55
      %p58 = scmp.ne.s32.totalorder %s41, %s57
      %p59 = scmp.eq.s32.totalorder %s33, 0
      %p60 = por %p58, %p59
      %s61 = ssub.s32 %s27, %s34
      %p62 = scmp.eq.s32.totalorder %s61, 0
      %s64 = sadd.s32 %s63, 1
      %s65 = scalar_select %p62, %s63, %s64
      %p68 = pneg %p62
      %p69 = scmp.eq.s32.totalorder %s27, 1
      %p70 = por %p68, %p69
      %p71 = scmp.ne.s32.totalorder %s63, %s66
      %p72 = scmp.eq.s32.totalorder %s27, 0
      %p73 = por %p71, %p72
      %p74 = scmp.ne.s32.totalorder %s63, %s66
      %p75 = scmp.eq.s32.totalorder %s32, 1
      %p76 = por %p74, %p75
      %p77 = scmp.ne.s32.totalorder %s66, %s67
      %p78 = scmp.eq.s32.totalorder %s32, 0
      %p79 = por %p77, %p78
      %p80 = scmp.ne.s32.totalorder %s66, %s67
      %p81 = scmp.eq.s32.totalorder %s33, 1
      %p82 = por %p80, %p81
      %p84 = scmp.ne.s32.totalorder %s67, %s83
      %p85 = scmp.eq.s32.totalorder %s33, 0
      %p86 = por %p84, %p85
      %s88 = sadd.s32 %s87, 1
      %p91 = scmp.eq.s32.totalorder %s27, 1
      %p92 = scmp.ne.s32.totalorder %s87, %s89
      %p93 = scmp.eq.s32.totalorder %s27, 0
      %p94 = por %p92, %p93
      %p95 = scmp.ne.s32.totalorder %s87, %s89
      %p96 = scmp.eq.s32.totalorder %s32, 1
      %p97 = por %p95, %p96
      %p98 = scmp.ne.s32.totalorder %s89, %s90
      %p99 = scmp.eq.s32.totalorder %s32, 0
      %p100 = por %p98, %p99
      %p101 = scmp.ne.s32.totalorder %s89, %s90
      %p102 = scmp.eq.s32.totalorder %s33, 1
      %p103 = por %p101, %p102
      %p105 = scmp.ne.s32.totalorder %s90, %s104
      %p106 = scmp.eq.s32.totalorder %s33, 0
      %p107 = por %p105, %p106
      %s109 = sadd.s32 %s108, 1
      %p112 = scmp.eq.s32.totalorder %s27, 1
      %p113 = scmp.ne.s32.totalorder %s108, %s110
      %p114 = scmp.eq.s32.totalorder %s27, 0
      %p115 = por %p113, %p114
      %p116 = scmp.ne.s32.totalorder %s108, %s110
      %p117 = scmp.eq.s32.totalorder %s32, 1
      %p118 = por %p116, %p117
      %p119 = scmp.ne.s32.totalorder %s110, %s111
      %p120 = scmp.eq.s32.totalorder %s32, 0
      %p121 = por %p119, %p120
      %p122 = scmp.ne.s32.totalorder %s110, %s111
      %p123 = scmp.eq.s32.totalorder %s33, 1
      %p124 = por %p122, %p123
      %p126 = scmp.ne.s32.totalorder %s111, %s125
      %p127 = scmp.eq.s32.totalorder %s33, 0
      %p128 = por %p126, %p127
      %s130 = sadd.s32 %s129, 1
      %p133 = scmp.eq.s32.totalorder %s27, 1
      %p134 = scmp.ne.s32.totalorder %s129, %s131
      %p135 = scmp.eq.s32.totalorder %s27, 0
      %p136 = por %p134, %p135
      %p137 = scmp.ne.s32.totalorder %s129, %s131
      %p138 = scmp.eq.s32.totalorder %s32, 1
      %p139 = por %p137, %p138
      %p140 = scmp.ne.s32.totalorder %s131, %s132
      %p141 = scmp.eq.s32.totalorder %s32, 0
      %p142 = por %p140, %p141
      %p143 = scmp.ne.s32.totalorder %s131, %s132
      %p144 = scmp.eq.s32.totalorder %s33, 1
      %p145 = por %p143, %p144
      %p147 = scmp.ne.s32.totalorder %s132, %s146
      %p148 = scmp.eq.s32.totalorder %s33, 0
      %p149 = por %p147, %p148
      %s151 = sadd.s32 %s150, 1
      %p154 = scmp.eq.s32.totalorder %s27, 1
      %p155 = scmp.ne.s32.totalorder %s150, %s152
      %p156 = scmp.eq.s32.totalorder %s27, 0
      %p157 = por %p155, %p156
      %p158 = scmp.ne.s32.totalorder %s150, %s152
      %p159 = scmp.eq.s32.totalorder %s32, 1
      %p160 = por %p158, %p159
      %p161 = scmp.ne.s32.totalorder %s152, %s153
      %p162 = scmp.eq.s32.totalorder %s32, 0
      %p163 = por %p161, %p162
      %p164 = scmp.ne.s32.totalorder %s152, %s153
      %p165 = scmp.eq.s32.totalorder %s33, 1
      %p166 = por %p164, %p165
      %p168 = scmp.ne.s32.totalorder %s153, %s167
      %p169 = scmp.eq.s32.totalorder %s33, 0
      %p170 = por %p168, %p169
      %s172 = sadd.s32 %s171, 1
      %p175 = scmp.eq.s32.totalorder %s27, 1
      %p176 = scmp.ne.s32.totalorder %s171, %s173
      %p177 = scmp.eq.s32.totalorder %s27, 0
      %p178 = por %p176, %p177
      %p179 = scmp.ne.s32.totalorder %s171, %s173
      %p180 = scmp.eq.s32.totalorder %s32, 1
      %p181 = por %p179, %p180
      %p182 = scmp.ne.s32.totalorder %s173, %s174
      %p183 = scmp.eq.s32.totalorder %s32, 0
      %p184 = por %p182, %p183
      %p185 = scmp.ne.s32.totalorder %s173, %s174
      %p186 = scmp.eq.s32.totalorder %s33, 1
      %p187 = por %p185, %p186
      %p189 = scmp.ne.s32.totalorder %s174, %s188
      %p190 = scmp.eq.s32.totalorder %s33, 0
      %p191 = por %p189, %p190
      %s193 = sadd.s32 %s192, 1
      %p196 = scmp.eq.s32.totalorder %s27, 1
      %p197 = scmp.ne.s32.totalorder %s192, %s194
      %p198 = scmp.eq.s32.totalorder %s27, 0
      %p199 = por %p197, %p198
      %p200 = scmp.ne.s32.totalorder %s192, %s194
      %p201 = scmp.eq.s32.totalorder %s32, 1
      %p202 = por %p200, %p201
      %p203 = scmp.ne.s32.totalorder %s194, %s195
      %p204 = scmp.eq.s32.totalorder %s32, 0
      %p205 = por %p203, %p204
      %p206 = scmp.ne.s32.totalorder %s194, %s195
      %p207 = scmp.eq.s32.totalorder %s33, 1
      %p208 = por %p206, %p207
      %p210 = scmp.ne.s32.totalorder %s195, %s209
      %p211 = scmp.eq.s32.totalorder %s33, 0
      %p212 = por %p210, %p211
      %s214 = sadd.s32 %s213, 1
      %p217 = scmp.eq.s32.totalorder %s27, 1
      %p218 = scmp.ne.s32.totalorder %s213, %s215
      %p219 = scmp.eq.s32.totalorder %s27, 0
      %p220 = por %p218, %p219
      %p221 = scmp.ne.s32.totalorder %s213, %s215
      %p222 = scmp.eq.s32.totalorder %s32, 1
      %p223 = por %p221, %p222
      %p224 = scmp.ne.s32.totalorder %s215, %s216
      %p225 = scmp.eq.s32.totalorder %s32, 0
      %p226 = por %p224, %p225
      %p227 = scmp.ne.s32.totalorder %s215, %s216
      %p228 = scmp.eq.s32.totalorder %s33, 1
      %p229 = por %p227, %p228
      %p231 = scmp.ne.s32.totalorder %s216, %s230
      %p232 = scmp.eq.s32.totalorder %s33, 0
      %p233 = por %p231, %p232
      %s235 = sadd.s32 %s234, 1
      %p238 = scmp.eq.s32.totalorder %s27, 1
      %p239 = scmp.ne.s32.totalorder %s234, %s236
      %p240 = scmp.eq.s32.totalorder %s27, 0
      %p241 = por %p239, %p240
      %p242 = scmp.ne.s32.totalorder %s234, %s236
      %p243 = scmp.eq.s32.totalorder %s32, 1
      %p244 = por %p242, %p243
      %p245 = scmp.ne.s32.totalorder %s236, %s237
      %p246 = scmp.eq.s32.totalorder %s32, 0
      %p247 = por %p245, %p246
      %p248 = scmp.ne.s32.totalorder %s236, %s237
      %p249 = scmp.eq.s32.totalorder %s33, 1
      %p250 = por %p248, %p249
      %p252 = scmp.ne.s32.totalorder %s237, %s251
      %p253 = scmp.eq.s32.totalorder %s33, 0
      %p254 = por %p252, %p253
      %s256 = sadd.s32 %s255, 1
      %p259 = scmp.eq.s32.totalorder %s27, 1
      %p260 = scmp.ne.s32.totalorder %s255, %s257
      %p261 = scmp.eq.s32.totalorder %s27, 0
      %p262 = por %p260, %p261
      %p263 = scmp.ne.s32.totalorder %s255, %s257
      %p264 = scmp.eq.s32.totalorder %s32, 1
      %p265 = por %p263, %p264
      %p266 = scmp.ne.s32.totalorder %s257, %s258
      %p267 = scmp.eq.s32.totalorder %s32, 0
      %p268 = por %p266, %p267
      %p269 = scmp.ne.s32.totalorder %s257, %s258
      %p270 = scmp.eq.s32.totalorder %s33, 1
      %p271 = por %p269, %p270
      %p273 = scmp.ne.s32.totalorder %s258, %s272
      %p274 = scmp.eq.s32.totalorder %s33, 0
      %p275 = por %p273, %p274
      %s277 = sadd.s32 %s276, 1
      %p280 = scmp.eq.s32.totalorder %s27, 1
      %p281 = scmp.ne.s32.totalorder %s276, %s278
      %p282 = scmp.eq.s32.totalorder %s27, 0
      %p283 = por %p281, %p282
      %p284 = scmp.ne.s32.totalorder %s276, %s278
      %p285 = scmp.eq.s32.totalorder %s32, 1
      %p286 = por %p284, %p285
      %p287 = scmp.ne.s32.totalorder %s278, %s279
      %p288 = scmp.eq.s32.totalorder %s32, 0
      %p289 = por %p287, %p288
      %p290 = scmp.ne.s32.totalorder %s278, %s279
      %p291 = scmp.eq.s32.totalorder %s33, 1
      %p292 = por %p290, %p291
      %p294 = scmp.ne.s32.totalorder %s279, %s293
      %p295 = scmp.eq.s32.totalorder %s33, 0
      %p296 = por %p294, %p295
      %s298 = sadd.s32 %s297, 1
      %p301 = scmp.eq.s32.totalorder %s27, 1
      %p302 = scmp.ne.s32.totalorder %s297, %s299
      %p303 = scmp.eq.s32.totalorder %s27, 0
      %p304 = por %p302, %p303
      %p305 = scmp.ne.s32.totalorder %s297, %s299
      %p306 = scmp.eq.s32.totalorder %s32, 1
      %p307 = por %p305, %p306
      %p308 = scmp.ne.s32.totalorder %s299, %s300
      %p309 = scmp.eq.s32.totalorder %s32, 0
      %p310 = por %p308, %p309
      %p311 = scmp.ne.s32.totalorder %s299, %s300
      %p312 = scmp.eq.s32.totalorder %s33, 1
      %p313 = por %p311, %p312
      %p315 = scmp.ne.s32.totalorder %s300, %s314
      %p316 = scmp.eq.s32.totalorder %s33, 0
      %p317 = por %p315, %p316
      %s319 = sadd.s32 %s318, 1
      %p322 = scmp.eq.s32.totalorder %s27, 1
      %p323 = scmp.ne.s32.totalorder %s318, %s320
      %p324 = scmp.eq.s32.totalorder %s27, 0
      %p325 = por %p323, %p324
      %p326 = scmp.ne.s32.totalorder %s318, %s320
      %p327 = scmp.eq.s32.totalorder %s32, 1
      %p328 = por %p326, %p327
      %p329 = scmp.ne.s32.totalorder %s320, %s321
      %p330 = scmp.eq.s32.totalorder %s32, 0
      %p331 = por %p329, %p330
      %p332 = scmp.ne.s32.totalorder %s320, %s321
      %p333 = scmp.eq.s32.totalorder %s33, 1
      %p334 = por %p332, %p333
      %p336 = scmp.ne.s32.totalorder %s321, %s335
      %p337 = scmp.eq.s32.totalorder %s33, 0
      %p338 = por %p336, %p337
      %s340 = sadd.s32 %s339, 1
      %p343 = scmp.eq.s32.totalorder %s27, 1
      %p344 = scmp.ne.s32.totalorder %s339, %s341
      %p345 = scmp.eq.s32.totalorder %s27, 0
      %p346 = por %p344, %p345
      %p347 = scmp.ne.s32.totalorder %s339, %s341
      %p348 = scmp.eq.s32.totalorder %s32, 1
      %p349 = por %p347, %p348
      %p350 = scmp.ne.s32.totalorder %s341, %s342
      %p351 = scmp.eq.s32.totalorder %s32, 0
      %p352 = por %p350, %p351
      %p353 = scmp.ne.s32.totalorder %s341, %s342
      %p354 = scmp.eq.s32.totalorder %s33, 1
      %p355 = por %p353, %p354
      %p357 = scmp.ne.s32.totalorder %s342, %s356
      %p358 = scmp.eq.s32.totalorder %s33, 0
      %p359 = por %p357, %p358
      %s361 = sadd.s32 %s360, 1
      %p364 = scmp.eq.s32.totalorder %s27, 1
      %p365 = scmp.ne.s32.totalorder %s360, %s362
      %p366 = scmp.eq.s32.totalorder %s27, 0
      %p367 = por %p365, %p366
      %p368 = scmp.ne.s32.totalorder %s360, %s362
      %p369 = scmp.eq.s32.totalorder %s32, 1
      %p370 = por %p368, %p369
      %p371 = scmp.ne.s32.totalorder %s362, %s363
      %p372 = scmp.eq.s32.totalorder %s32, 0
      %p373 = por %p371, %p372
      %p374 = scmp.ne.s32.totalorder %s362, %s363
      %p375 = scmp.eq.s32.totalorder %s33, 1
      %p376 = por %p374, %p375
      %p378 = scmp.ne.s32.totalorder %s363, %s377
      %p379 = scmp.eq.s32.totalorder %s33, 0
      %p380 = por %p378, %p379
      %s382 = sadd.s32 %s381, 1
      %p385 = scmp.eq.s32.totalorder %s27, 1
      %p386 = scmp.ne.s32.totalorder %s381, %s383
      %p387 = scmp.eq.s32.totalorder %s27, 0
      %p388 = por %p386, %p387
      %p389 = scmp.ne.s32.totalorder %s381, %s383
      %p390 = scmp.eq.s32.totalorder %s32, 1
      %p391 = por %p389, %p390
      %p392 = scmp.ne.s32.totalorder %s383, %s384
      %p393 = scmp.eq.s32.totalorder %s32, 0
      %p394 = por %p392, %p393
      %p395 = scmp.ne.s32.totalorder %s383, %s384
      %p396 = scmp.eq.s32.totalorder %s33, 1
      %p397 = por %p395, %p396
      %p399 = scmp.ne.s32.totalorder %s384, %s398
      %p400 = scmp.eq.s32.totalorder %s33, 0
      %p401 = por %p399, %p400
      %s403 = sadd.s32 %s402, 1
      %p406 = scmp.eq.s32.totalorder %s27, 1
      %p407 = scmp.ne.s32.totalorder %s402, %s404
      %p408 = scmp.eq.s32.totalorder %s27, 0
      %p409 = por %p407, %p408
      %p410 = scmp.ne.s32.totalorder %s402, %s404
      %p411 = scmp.eq.s32.totalorder %s32, 1
      %p412 = por %p410, %p411
      %p413 = scmp.ne.s32.totalorder %s404, %s405
      %p414 = scmp.eq.s32.totalorder %s32, 0
      %p415 = por %p413, %p414
      %p416 = scmp.ne.s32.totalorder %s404, %s405
      %p417 = scmp.eq.s32.totalorder %s33, 1
      %p418 = por %p416, %p417
      %p420 = scmp.ne.s32.totalorder %s405, %s419
      %p421 = scmp.eq.s32.totalorder %s33, 0
      %p422 = por %p420, %p421
      %s423 = ssub.s32 %s27, %s34
      %p424 = scmp.eq.s32.totalorder %s423, 0
      %s426 = sadd.s32 %s425, 1
      %s427 = scalar_select %p424, %s425, %s426
      %p430 = pneg %p424
      %p431 = scmp.eq.s32.totalorder %s27, 1
      %p432 = por %p430, %p431
      %p433 = scmp.ne.s32.totalorder %s425, %s428
      %p434 = scmp.eq.s32.totalorder %s27, 0
      %p435 = por %p433, %p434
      %p436 = scmp.ne.s32.totalorder %s425, %s428
      %p437 = scmp.eq.s32.totalorder %s32, 1
      %p438 = por %p436, %p437
      %p439 = scmp.ne.s32.totalorder %s428, %s429
      %p440 = scmp.eq.s32.totalorder %s32, 0
      %p441 = por %p439, %p440
      %p442 = scmp.ne.s32.totalorder %s428, %s429
      %p443 = scmp.eq.s32.totalorder %s33, 1
      %p444 = por %p442, %p443
      %p446 = scmp.ne.s32.totalorder %s429, %s445
      %p447 = scmp.eq.s32.totalorder %s33, 0
      %p448 = por %p446, %p447
      %p449 = scmp.le.s32.totalorder 1, %s27
      %p450 = scmp.lt.s32.totalorder %s27, 3
      %p451 = pnand %p449, %p450
      %p452 = pneg %p451
      // Predicated region
      $region9: #{tpu_custom_call.1} parent=5 // pred_check
        _
      $region10: #{tpu_custom_call.1} parent=5 // pred_check_branch
        %454 = sbr.rel (%p451) target = $region12
      $region11: #{tpu_custom_call.1} parent=5 // pred_region
        %s455 = ssub.s32 %s27, 1
        // Predicated region
        $region13: #{tpu_custom_call.1} parent=11 // pred_check
          %p456 = pneg %p100
        $region14: #{tpu_custom_call.1} parent=11 // pred_check_branch
          %458 = sbr.rel (%p456) target = $region16
        $region15: #{tpu_custom_call.1} parent=11 // pred_region
          _
        $region16: #{tpu_custom_call.1} parent=11 // pred_fallthru
          _
        // Predicated region
        $region17: #{tpu_custom_call.1} parent=11 // pred_check
          %p459 = pneg %p121
        $region18: #{tpu_custom_call.1} parent=11 // pred_check_branch
          %461 = sbr.rel (%p459) target = $region20
        $region19: #{tpu_custom_call.1} parent=11 // pred_region
          _
        $region20: #{tpu_custom_call.1} parent=11 // pred_fallthru
          _
        // Predicated region
        $region21: #{tpu_custom_call.1} parent=11 // pred_check
          %p462 = pneg %p142
        $region22: #{tpu_custom_call.1} parent=11 // pred_check_branch
          %464 = sbr.rel (%p462) target = $region24
        $region23: #{tpu_custom_call.1} parent=11 // pred_region
          _
        $region24: #{tpu_custom_call.1} parent=11 // pred_fallthru
          _
        // Predicated region
        $region25: #{tpu_custom_call.1} parent=11 // pred_check
          %p465 = pneg %p163
        $region26: #{tpu_custom_call.1} parent=11 // pred_check_branch
          %467 = sbr.rel (%p465) target = $region28
        $region27: #{tpu_custom_call.1} parent=11 // pred_region
          _
        $region28: #{tpu_custom_call.1} parent=11 // pred_fallthru
          _
        // Predicated region
        $region29: #{tpu_custom_call.1} parent=11 // pred_check
          %p468 = pneg %p184
        $region30: #{tpu_custom_call.1} parent=11 // pred_check_branch
          %470 = sbr.rel (%p468) target = $region32
        $region31: #{tpu_custom_call.1} parent=11 // pred_region
          _
        $region32: #{tpu_custom_call.1} parent=11 // pred_fallthru
          _
        // Predicated region
        $region33: #{tpu_custom_call.1} parent=11 // pred_check
          %p471 = pneg %p205
        $region34: #{tpu_custom_call.1} parent=11 // pred_check_branch
          %473 = sbr.rel (%p471) target = $region36
        $region35: #{tpu_custom_call.1} parent=11 // pred_region
          _
        $region36: #{tpu_custom_call.1} parent=11 // pred_fallthru
          _
        // Predicated region
        $region37: #{tpu_custom_call.1} parent=11 // pred_check
          %p474 = pneg %p226
        $region38: #{tpu_custom_call.1} parent=11 // pred_check_branch
          %476 = sbr.rel (%p474) target = $region40
        $region39: #{tpu_custom_call.1} parent=11 // pred_region
          _
        $region40: #{tpu_custom_call.1} parent=11 // pred_fallthru
          _
        // Predicated region
        $region41: #{tpu_custom_call.1} parent=11 // pred_check
          %p477 = pneg %p247
        $region42: #{tpu_custom_call.1} parent=11 // pred_check_branch
          %479 = sbr.rel (%p477) target = $region44
        $region43: #{tpu_custom_call.1} parent=11 // pred_region
          _
        $region44: #{tpu_custom_call.1} parent=11 // pred_fallthru
          _
        // Predicated region
        $region45: #{tpu_custom_call.1} parent=11 // pred_check
          %p480 = pneg %p268
        $region46: #{tpu_custom_call.1} parent=11 // pred_check_branch
          %482 = sbr.rel (%p480) target = $region48
        $region47: #{tpu_custom_call.1} parent=11 // pred_region
          _
        $region48: #{tpu_custom_call.1} parent=11 // pred_fallthru
          _
        // Predicated region
        $region49: #{tpu_custom_call.1} parent=11 // pred_check
          %p483 = pneg %p289
        $region50: #{tpu_custom_call.1} parent=11 // pred_check_branch
          %485 = sbr.rel (%p483) target = $region52
        $region51: #{tpu_custom_call.1} parent=11 // pred_region
          _
        $region52: #{tpu_custom_call.1} parent=11 // pred_fallthru
          _
        // Predicated region
        $region53: #{tpu_custom_call.1} parent=11 // pred_check
          %p486 = pneg %p310
        $region54: #{tpu_custom_call.1} parent=11 // pred_check_branch
          %488 = sbr.rel (%p486) target = $region56
        $region55: #{tpu_custom_call.1} parent=11 // pred_region
          _
        $region56: #{tpu_custom_call.1} parent=11 // pred_fallthru
          _
        // Predicated region
        $region57: #{tpu_custom_call.1} parent=11 // pred_check
          %p489 = pneg %p331
        $region58: #{tpu_custom_call.1} parent=11 // pred_check_branch
          %491 = sbr.rel (%p489) target = $region60
        $region59: #{tpu_custom_call.1} parent=11 // pred_region
          _
        $region60: #{tpu_custom_call.1} parent=11 // pred_fallthru
          _
        // Predicated region
        $region61: #{tpu_custom_call.1} parent=11 // pred_check
          %p492 = pneg %p352
        $region62: #{tpu_custom_call.1} parent=11 // pred_check_branch
          %494 = sbr.rel (%p492) target = $region64
        $region63: #{tpu_custom_call.1} parent=11 // pred_region
          _
        $region64: #{tpu_custom_call.1} parent=11 // pred_fallthru
          _
        // Predicated region
        $region65: #{tpu_custom_call.1} parent=11 // pred_check
          %p495 = pneg %p373
        $region66: #{tpu_custom_call.1} parent=11 // pred_check_branch
          %497 = sbr.rel (%p495) target = $region68
        $region67: #{tpu_custom_call.1} parent=11 // pred_region
          _
        $region68: #{tpu_custom_call.1} parent=11 // pred_fallthru
          _
        // Predicated region
        $region69: #{tpu_custom_call.1} parent=11 // pred_check
          %p498 = pneg %p394
        $region70: #{tpu_custom_call.1} parent=11 // pred_check_branch
          %500 = sbr.rel (%p498) target = $region72
        $region71: #{tpu_custom_call.1} parent=11 // pred_region
          _
        $region72: #{tpu_custom_call.1} parent=11 // pred_fallthru
          _
        // Predicated region
        $region73: #{tpu_custom_call.1} parent=11 // pred_check
          %p501 = pneg %p415
        $region74: #{tpu_custom_call.1} parent=11 // pred_check_branch
          %503 = sbr.rel (%p501) target = $region76
        $region75: #{tpu_custom_call.1} parent=11 // pred_region
          _
        $region76: #{tpu_custom_call.1} parent=11 // pred_fallthru
          _
      $region12: #{tpu_custom_call.1} parent=5 // pred_fallthru
        _
      %p504 = scmp.lt.s32.totalorder %s27, 2
      // Predicated region
      $region77: #{tpu_custom_call.1} parent=5 // pred_check
        %p505 = pneg %p504
      $region78: #{tpu_custom_call.1} parent=5 // pred_check_branch
        %507 = sbr.rel (%p505) target = $region80
      $region79: #{tpu_custom_call.1} parent=5 // pred_region
        // Predicated region
        $region81: #{tpu_custom_call.1} parent=79 // pred_check
          %p508 = pneg %p47
        $region82: #{tpu_custom_call.1} parent=79 // pred_check_branch
          %510 = sbr.rel (%p508) target = $region84
        $region83: #{tpu_custom_call.1} parent=79 // pred_region
          %p511 = scmp.lt.s32.totalorder %s27, 1
          %s512 = scalar_select %p511, %s27, 1
          %s513 = smul.addr %s512, 8
          %s514 = scalar_lea.vmem %s0, %s513
        $region84: #{tpu_custom_call.1} parent=79 // pred_fallthru
          _
        // Predicated region
        $region85: #{tpu_custom_call.1} parent=79 // pred_check
          %p515 = pneg %p73
        $region86: #{tpu_custom_call.1} parent=79 // pred_check_branch
          %517 = sbr.rel (%p515) target = $region88
        $region87: #{tpu_custom_call.1} parent=79 // pred_region
          %p518 = scmp.lt.s32.totalorder %s27, 1
          %s519 = scalar_select %p518, %s27, 1
          %s520 = scalar_lea.vmem %s1, %s519
        $region88: #{tpu_custom_call.1} parent=79 // pred_fallthru
          _
      $region80: #{tpu_custom_call.1} parent=5 // pred_fallthru
        _
      %p521 = scmp.le.s32.totalorder 1, %s27
      %p522 = scmp.lt.s32.totalorder %s27, 3
      %p523 = pnand %p521, %p522
      %p524 = pneg %p523
      // Predicated region
      $region89: #{tpu_custom_call.1} parent=5 // pred_check
        _
      $region90: #{tpu_custom_call.1} parent=5 // pred_check_branch
        %526 = sbr.rel (%p523) target = $region92
      $region91: #{tpu_custom_call.1} parent=5 // pred_region
        %s527 = ssub.s32 %s27, 1
        %p528 = scmp.lt.s32.totalorder %s32, 1
        %s529 = scalar_select %p528, %s32, 1
        %s530 = smul.addr %s529, 8
        %s531 = scalar_lea.vmem %s0, %s530
        %p532 = pneg %p53
        %p533 = pneg %p50
        %p534 = scmp.lt.s32.totalorder %s32, 1
        %s535 = scalar_select %p534, %s32, 1
        %s536 = scalar_lea.vmem %s1, %s535
        %p537 = pneg %p79
        %p538 = pneg %p76
        %p539 = pneg %p100
        %p540 = pneg %p97
        %p541 = pneg %p121
        %p542 = pneg %p118
        %p543 = pneg %p142
        %p544 = pneg %p139
        %p545 = pneg %p163
        %p546 = pneg %p160
        %p547 = pneg %p184
        %p548 = pneg %p181
        %p549 = pneg %p205
        %p550 = pneg %p202
        %p551 = pneg %p226
        %p552 = pneg %p223
        %p553 = pneg %p247
        %p554 = pneg %p244
        %p555 = pneg %p268
        %p556 = pneg %p265
        %p557 = pneg %p289
        %p558 = pneg %p286
        %p559 = pneg %p310
        %p560 = pneg %p307
        %p561 = pneg %p331
        %p562 = pneg %p328
        %p563 = pneg %p352
        %p564 = pneg %p349
        %p565 = pneg %p373
        %p566 = pneg %p370
        %p567 = pneg %p394
        %p568 = pneg %p391
        %p569 = pneg %p415
        %p570 = pneg %p412
        %p571 = pneg %p441
        %p572 = pneg %p438
        %s573 = sand.u32 %s428, 1
        %s574 = scalar_lea.sflag [#allocation3], %s573
        %s575 = sand.u32 %s428, 1
        %s576 = smul.addr %s575, 8
        %s577 = scalar_lea.vmem [#allocation2], %s576
        %p578 = scmp.lt.s32.totalorder %s32, 1
        %s579 = scalar_select %p578, %s32, 1
        %s580 = smul.addr %s579, 8
        %s581 = scalar_lea.vmem %s0, %s580
        %p582 = scmp.lt.s32.totalorder %s32, 1
        %s583 = scalar_select %p582, %s32, 1
        %s584 = scalar_lea.vmem %s1, %s583
        %v586 = vld [vmem:[%s581] sm:$0xff]
        %v587 = vld [vmem:[%s584] sm:$0x1]
        %v588 = vpack.c.bf16 %v586, %v586
        %v589 = vld [vmem:[%s2] sm:$0xf]
        %v590 = vld [vmem:[%s2 + $0x4] sm:$0xf]
        %v591 = vld [vmem:[%s2 + $0x8] sm:$0xf]
        %v592 = vld [vmem:[%s2 + $0xc] sm:$0xf]
        %v593 = vld [vmem:[%s2 + $0x10] sm:$0xf]
        %v594 = vld [vmem:[%s2 + $0x14] sm:$0xf]
        %v595 = vld [vmem:[%s2 + $0x18] sm:$0xf]
        %v596 = vld [vmem:[%s2 + $0x1c] sm:$0xf]
        %v597 = vld [vmem:[%s2 + $0x20] sm:$0xf]
        %v598 = vld [vmem:[%s2 + $0x24] sm:$0xf]
        %v599 = vld [vmem:[%s2 + $0x28] sm:$0xf]
        %v600 = vld [vmem:[%s2 + $0x2c] sm:$0xf]
        %v601 = vld [vmem:[%s2 + $0x30] sm:$0xf]
        %v602 = vld [vmem:[%s2 + $0x34] sm:$0xf]
        %v603 = vld [vmem:[%s2 + $0x38] sm:$0xf]
        %v604 = vld [vmem:[%s2 + $0x3c] sm:$0xf]
        %v605 = vld [vmem:[%s3] sm:$0x1]
        %v606 = vld [vmem:[%s3 + $0x1] sm:$0x1]
        %v607 = vld [vmem:[%s3 + $0x2] sm:$0x1]
        %v608 = vld [vmem:[%s3 + $0x3] sm:$0x1]
        %v613 = vlaneseq
        %v614 = vshrl.u32 %v613, 7
        %v615 = vsub.s32 0, %v614
        %v616 = vrot.slane %v605, %v615
        %v617 = vlaneseq
        %v618 = vshrl.u32 %v617, 7
        %v619 = vsub.s32 0, %v618
        %v620 = vrot.slane %v606, %v619
        %v621 = vlaneseq
        %v622 = vshrl.u32 %v621, 7
        %v623 = vsub.s32 0, %v622
        %v624 = vrot.slane %v607, %v623
        %v625 = vlaneseq
        %v626 = vshrl.u32 %v625, 7
        %v627 = vsub.s32 0, %v626
        %v628 = vrot.slane %v608, %v627
        %v637 = vunpack.c.l.b16 %v589
        %v638 = vunpack.c.l.b16 %v590
        %v639 = vunpack.c.l.b16 %v591
        %v640 = vunpack.c.l.b16 %v592
        %v641 = vpack.c.b16 %v638, %v637
        %v642 = vpack.c.b16 %v640, %v639
        %vm645 = vcmask 261120
        %v647 = vsel %vm645, %v588, 0
        %649 = vmatprep.subr.bf16.mxu0 0
        %650 = vmatpush1.bf16.msra.mxu0 0
        %651 = vmatprep.subr.bf16.mxu0 0
        %652 = vmatpush1.bf16.msra.mxu0 0
        %653 = vmatprep.subr.bf16.mxu0 0
        %654 = vmatpush1.bf16.msra.mxu0 0
        %655 = vmatprep.subr.bf16.mxu0 0
        %656 = vmatpush1.bf16.msra.mxu0 0
        %657 = vmatprep.subr.bf16.mxu0 0
        %658 = vmatpush1.bf16.msra.mxu0 0
        %659 = vmatprep.subr.bf16.mxu0 0
        %660 = vmatpush1.bf16.msra.mxu0 0
        %661 = vmatprep.subr.bf16.mxu0 0
        %662 = vmatpush1.bf16.msra.mxu0 %v642
        %663 = vmatprep.subr.bf16.mxu0 0
        %664 = vmatpush1.bf16.msra.mxu0 %v641
        %665 = vmatprep.subr.bf16.mxu0 0
        %666 = vmatpush2.bf16.msra.mxu0 0
        %667 = vmatprep.subr.bf16.mxu0 0
        %668 = vmatpush2.bf16.msra.mxu0 0
        %669 = vmatprep.subr.bf16.mxu0 0
        %670 = vmatpush2.bf16.msra.mxu0 0
        %671 = vmatprep.subr.bf16.mxu0 0
        %672 = vmatpush2.bf16.msra.mxu0 0
        %673 = vmatprep.subr.bf16.mxu0 0
        %674 = vmatpush2.bf16.msra.mxu0 0
        %675 = vmatprep.subr.bf16.mxu0 0
        %676 = vmatpush2.bf16.msra.mxu0 0
        %677 = vmatprep.subr.bf16.mxu0 0
        %678 = vmatpush2.bf16.msra.mxu0 0
        %679 = vmatprep.subr.bf16.mxu0 0
        %680 = vmatpush2.bf16.msra.mxu0 0
        %681 = vmatprep.mubr.bf16.mxu0 0
        %682 = vmatmul.mubr.bf16.gmra.mxu0 %v647
        %v683 = vpop.f32.mrf.mxu0
        %v684 = vadd.f32 %v616, %v683
        %v685 = vpop.f32.mrf.mxu0
        %v686 = vpop.f32.mrf.mxu0
        %v687 = vpop.f32.mrf.mxu0
        %688 = vdwg.mxu0
        %v693 = vunpack.c.l.b16 %v593
        %v694 = vunpack.c.l.b16 %v594
        %v695 = vunpack.c.l.b16 %v595
        %v696 = vunpack.c.l.b16 %v596
        %v697 = vpack.c.b16 %v694, %v693
        %v698 = vpack.c.b16 %v696, %v695
        %701 = vmatprep.subr.bf16.mxu0 0
        %702 = vmatpush1.bf16.msra.mxu0 0
        %703 = vmatprep.subr.bf16.mxu0 0
        %704 = vmatpush1.bf16.msra.mxu0 0
        %705 = vmatprep.subr.bf16.mxu0 0
        %706 = vmatpush1.bf16.msra.mxu0 0
        %707 = vmatprep.subr.bf16.mxu0 0
        %708 = vmatpush1.bf16.msra.mxu0 0
        %709 = vmatprep.subr.bf16.mxu0 0
        %710 = vmatpush1.bf16.msra.mxu0 0
        %711 = vmatprep.subr.bf16.mxu0 0
        %712 = vmatpush1.bf16.msra.mxu0 0
        %713 = vmatprep.subr.bf16.mxu0 0
        %714 = vmatpush1.bf16.msra.mxu0 %v698
        %715 = vmatprep.subr.bf16.mxu0 0
        %716 = vmatpush1.bf16.msra.mxu0 %v697
        %717 = vmatprep.subr.bf16.mxu0 0
        %718 = vmatpush2.bf16.msra.mxu0 0
        %719 = vmatprep.subr.bf16.mxu0 0
        %720 = vmatpush2.bf16.msra.mxu0 0
        %721 = vmatprep.subr.bf16.mxu0 0
        %722 = vmatpush2.bf16.msra.mxu0 0
        %723 = vmatprep.subr.bf16.mxu0 0
        %724 = vmatpush2.bf16.msra.mxu0 0
        %725 = vmatprep.subr.bf16.mxu0 0
        %726 = vmatpush2.bf16.msra.mxu0 0
        %727 = vmatprep.subr.bf16.mxu0 0
        %728 = vmatpush2.bf16.msra.mxu0 0
        %729 = vmatprep.subr.bf16.mxu0 0
        %730 = vmatpush2.bf16.msra.mxu0 0
        %731 = vmatprep.subr.bf16.mxu0 0
        %732 = vmatpush2.bf16.msra.mxu0 0
        %733 = vmatprep.mubr.bf16.mxu0 0
        %734 = vmatmul.mubr.bf16.gmra.mxu0 %v647
        %v735 = vpop.f32.mrf.mxu0
        %v736 = vadd.f32 %v620, %v735
        %v737 = vpop.f32.mrf.mxu0
        %v738 = vpop.f32.mrf.mxu0
        %v739 = vpop.f32.mrf.mxu0
        %740 = vdwg.mxu0
        %v745 = vunpack.c.l.b16 %v597
        %v746 = vunpack.c.l.b16 %v598
        %v747 = vunpack.c.l.b16 %v599
        %v748 = vunpack.c.l.b16 %v600
        %v749 = vpack.c.b16 %v746, %v745
        %v750 = vpack.c.b16 %v748, %v747
        %753 = vmatprep.subr.bf16.mxu0 0
        %754 = vmatpush1.bf16.msra.mxu0 0
        %755 = vmatprep.subr.bf16.mxu0 0
        %756 = vmatpush1.bf16.msra.mxu0 0
        %757 = vmatprep.subr.bf16.mxu0 0
        %758 = vmatpush1.bf16.msra.mxu0 0
        %759 = vmatprep.subr.bf16.mxu0 0
        %760 = vmatpush1.bf16.msra.mxu0 0
        %761 = vmatprep.subr.bf16.mxu0 0
        %762 = vmatpush1.bf16.msra.mxu0 0
        %763 = vmatprep.subr.bf16.mxu0 0
        %764 = vmatpush1.bf16.msra.mxu0 0
        %765 = vmatprep.subr.bf16.mxu0 0
        %766 = vmatpush1.bf16.msra.mxu0 %v750
        %767 = vmatprep.subr.bf16.mxu0 0
        %768 = vmatpush1.bf16.msra.mxu0 %v749
        %769 = vmatprep.subr.bf16.mxu0 0
        %770 = vmatpush2.bf16.msra.mxu0 0
        %771 = vmatprep.subr.bf16.mxu0 0
        %772 = vmatpush2.bf16.msra.mxu0 0
        %773 = vmatprep.subr.bf16.mxu0 0
        %774 = vmatpush2.bf16.msra.mxu0 0
        %775 = vmatprep.subr.bf16.mxu0 0
        %776 = vmatpush2.bf16.msra.mxu0 0
        %777 = vmatprep.subr.bf16.mxu0 0
        %778 = vmatpush2.bf16.msra.mxu0 0
        %779 = vmatprep.subr.bf16.mxu0 0
        %780 = vmatpush2.bf16.msra.mxu0 0
        %781 = vmatprep.subr.bf16.mxu0 0
        %782 = vmatpush2.bf16.msra.mxu0 0
        %783 = vmatprep.subr.bf16.mxu0 0
        %784 = vmatpush2.bf16.msra.mxu0 0
        %785 = vmatprep.mubr.bf16.mxu0 0
        %786 = vmatmul.mubr.bf16.gmra.mxu0 %v647
        %v787 = vpop.f32.mrf.mxu0
        %v788 = vadd.f32 %v624, %v787
        %v789 = vpop.f32.mrf.mxu0
        %v790 = vpop.f32.mrf.mxu0
        %v791 = vpop.f32.mrf.mxu0
        %792 = vdwg.mxu0
        %v797 = vunpack.c.l.b16 %v601
        %v798 = vunpack.c.l.b16 %v602
        %v799 = vunpack.c.l.b16 %v603
        %v800 = vunpack.c.l.b16 %v604
        %v801 = vpack.c.b16 %v798, %v797
        %v802 = vpack.c.b16 %v800, %v799
        %805 = vmatprep.subr.bf16.mxu0 0
        %806 = vmatpush1.bf16.msra.mxu0 0
        %807 = vmatprep.subr.bf16.mxu0 0
        %808 = vmatpush1.bf16.msra.mxu0 0
        %809 = vmatprep.subr.bf16.mxu0 0
        %810 = vmatpush1.bf16.msra.mxu0 0
        %811 = vmatprep.subr.bf16.mxu0 0
        %812 = vmatpush1.bf16.msra.mxu0 0
        %813 = vmatprep.subr.bf16.mxu0 0
        %814 = vmatpush1.bf16.msra.mxu0 0
        %815 = vmatprep.subr.bf16.mxu0 0
        %816 = vmatpush1.bf16.msra.mxu0 0
        %817 = vmatprep.subr.bf16.mxu0 0
        %818 = vmatpush1.bf16.msra.mxu0 %v802
        %819 = vmatprep.subr.bf16.mxu0 0
        %820 = vmatpush1.bf16.msra.mxu0 %v801
        %821 = vmatprep.subr.bf16.mxu0 0
        %822 = vmatpush2.bf16.msra.mxu0 0
        %823 = vmatprep.subr.bf16.mxu0 0
        %824 = vmatpush2.bf16.msra.mxu0 0
        %825 = vmatprep.subr.bf16.mxu0 0
        %826 = vmatpush2.bf16.msra.mxu0 0
        %827 = vmatprep.subr.bf16.mxu0 0
        %828 = vmatpush2.bf16.msra.mxu0 0
        %829 = vmatprep.subr.bf16.mxu0 0
        %830 = vmatpush2.bf16.msra.mxu0 0
        %831 = vmatprep.subr.bf16.mxu0 0
        %832 = vmatpush2.bf16.msra.mxu0 0
        %833 = vmatprep.subr.bf16.mxu0 0
        %834 = vmatpush2.bf16.msra.mxu0 0
        %835 = vmatprep.subr.bf16.mxu0 0
        %836 = vmatpush2.bf16.msra.mxu0 0
        %837 = vmatprep.mubr.bf16.mxu0 0
        %838 = vmatmul.mubr.bf16.gmra.mxu0 %v647
        %v839 = vpop.f32.mrf.mxu0
        %v840 = vadd.f32 %v628, %v839
        %v841 = vpop.f32.mrf.mxu0
        %v842 = vpop.f32.mrf.mxu0
        %v843 = vpop.f32.mrf.mxu0
        %844 = vdwg.mxu0
        %v845 = vmul.f32 %v684, 0.35355338
        %v846 = vmul.f32 %v736, 0.35355338
        %v847 = vmul.f32 %v788, 0.35355338
        %v848 = vmul.f32 %v840, 0.35355338
        %v849 = vld [vmem:[%s4] sm:$0xf]
        %v850 = vld [vmem:[%s4 + $0x4] sm:$0xf]
        %v851 = vld [vmem:[%s4 + $0x8] sm:$0xf]
        %v852 = vld [vmem:[%s4 + $0xc] sm:$0xf]
        %v853 = vld [vmem:[%s4 + $0x10] sm:$0xf]
        %v854 = vld [vmem:[%s4 + $0x14] sm:$0xf]
        %v855 = vld [vmem:[%s4 + $0x18] sm:$0xf]
        %v856 = vld [vmem:[%s4 + $0x1c] sm:$0xf]
        %v857 = vld [vmem:[%s4 + $0x20] sm:$0xf]
        %v858 = vld [vmem:[%s4 + $0x24] sm:$0xf]
        %v859 = vld [vmem:[%s4 + $0x28] sm:$0xf]
        %v860 = vld [vmem:[%s4 + $0x2c] sm:$0xf]
        %v861 = vld [vmem:[%s4 + $0x30] sm:$0xf]
        %v862 = vld [vmem:[%s4 + $0x34] sm:$0xf]
        %v863 = vld [vmem:[%s4 + $0x38] sm:$0xf]
        %v864 = vld [vmem:[%s4 + $0x3c] sm:$0xf]
        %v865 = vld [vmem:[%s5] sm:$0x1]
        %v866 = vld [vmem:[%s5 + $0x1] sm:$0x1]
        %v867 = vld [vmem:[%s5 + $0x2] sm:$0x1]
        %v868 = vld [vmem:[%s5 + $0x3] sm:$0x1]
        %v873 = vlaneseq
        %v874 = vshrl.u32 %v873, 7
        %v875 = vsub.s32 0, %v874
        %v876 = vrot.slane %v865, %v875
        %v877 = vlaneseq
        %v878 = vshrl.u32 %v877, 7
        %v879 = vsub.s32 0, %v878
        %v880 = vrot.slane %v866, %v879
        %v881 = vlaneseq
        %v882 = vshrl.u32 %v881, 7
        %v883 = vsub.s32 0, %v882
        %v884 = vrot.slane %v867, %v883
        %v885 = vlaneseq
        %v886 = vshrl.u32 %v885, 7
        %v887 = vsub.s32 0, %v886
        %v888 = vrot.slane %v868, %v887
        %v897 = vunpack.c.l.b16 %v849
        %v898 = vunpack.c.l.b16 %v850
        %v899 = vunpack.c.l.b16 %v851
        %v900 = vunpack.c.l.b16 %v852
        %v901 = vpack.c.b16 %v898, %v897
        %v902 = vpack.c.b16 %v900, %v899
        %905 = vmatprep.subr.bf16.mxu0 0
        %906 = vmatpush1.bf16.msra.mxu0 0
        %907 = vmatprep.subr.bf16.mxu0 0
        %908 = vmatpush1.bf16.msra.mxu0 0
        %909 = vmatprep.subr.bf16.mxu0 0
        %910 = vmatpush1.bf16.msra.mxu0 0
        %911 = vmatprep.subr.bf16.mxu0 0
        %912 = vmatpush1.bf16.msra.mxu0 0
        %913 = vmatprep.subr.bf16.mxu0 0
        %914 = vmatpush1.bf16.msra.mxu0 0
        %915 = vmatprep.subr.bf16.mxu0 0
        %916 = vmatpush1.bf16.msra.mxu0 0
        %917 = vmatprep.subr.bf16.mxu0 0
        %918 = vmatpush1.bf16.msra.mxu0 %v902
        %919 = vmatprep.subr.bf16.mxu0 0
        %920 = vmatpush1.bf16.msra.mxu0 %v901
        %921 = vmatprep.subr.bf16.mxu0 0
        %922 = vmatpush2.bf16.msra.mxu0 0
        %923 = vmatprep.subr.bf16.mxu0 0
        %924 = vmatpush2.bf16.msra.mxu0 0
        %925 = vmatprep.subr.bf16.mxu0 0
        %926 = vmatpush2.bf16.msra.mxu0 0
        %927 = vmatprep.subr.bf16.mxu0 0
        %928 = vmatpush2.bf16.msra.mxu0 0
        %929 = vmatprep.subr.bf16.mxu0 0
        %930 = vmatpush2.bf16.msra.mxu0 0
        %931 = vmatprep.subr.bf16.mxu0 0
        %932 = vmatpush2.bf16.msra.mxu0 0
        %933 = vmatprep.subr.bf16.mxu0 0
        %934 = vmatpush2.bf16.msra.mxu0 0
        %935 = vmatprep.subr.bf16.mxu0 0
        %936 = vmatpush2.bf16.msra.mxu0 0
        %937 = vmatprep.mubr.bf16.mxu0 0
        %938 = vmatmul.mubr.bf16.gmra.mxu0 %v647
        %v939 = vpop.f32.mrf.mxu0
        %v940 = vadd.f32 %v876, %v939
        %v941 = vpop.f32.mrf.mxu0
        %v942 = vpop.f32.mrf.mxu0
        %v943 = vpop.f32.mrf.mxu0
        %944 = vdwg.mxu0
        %v949 = vunpack.c.l.b16 %v853
        %v950 = vunpack.c.l.b16 %v854
        %v951 = vunpack.c.l.b16 %v855
        %v952 = vunpack.c.l.b16 %v856
        %v953 = vpack.c.b16 %v950, %v949
        %v954 = vpack.c.b16 %v952, %v951
        %957 = vmatprep.subr.bf16.mxu0 0
        %958 = vmatpush1.bf16.msra.mxu0 0
        %959 = vmatprep.subr.bf16.mxu0 0
        %960 = vmatpush1.bf16.msra.mxu0 0
        %961 = vmatprep.subr.bf16.mxu0 0
        %962 = vmatpush1.bf16.msra.mxu0 0
        %963 = vmatprep.subr.bf16.mxu0 0
        %964 = vmatpush1.bf16.msra.mxu0 0
        %965 = vmatprep.subr.bf16.mxu0 0
        %966 = vmatpush1.bf16.msra.mxu0 0
        %967 = vmatprep.subr.bf16.mxu0 0
        %968 = vmatpush1.bf16.msra.mxu0 0
        %969 = vmatprep.subr.bf16.mxu0 0
        %970 = vmatpush1.bf16.msra.mxu0 %v954
        %971 = vmatprep.subr.bf16.mxu0 0
        %972 = vmatpush1.bf16.msra.mxu0 %v953
        %973 = vmatprep.subr.bf16.mxu0 0
        %974 = vmatpush2.bf16.msra.mxu0 0
        %975 = vmatprep.subr.bf16.mxu0 0
        %976 = vmatpush2.bf16.msra.mxu0 0
        %977 = vmatprep.subr.bf16.mxu0 0
        %978 = vmatpush2.bf16.msra.mxu0 0
        %979 = vmatprep.subr.bf16.mxu0 0
        %980 = vmatpush2.bf16.msra.mxu0 0
        %981 = vmatprep.subr.bf16.mxu0 0
        %982 = vmatpush2.bf16.msra.mxu0 0
        %983 = vmatprep.subr.bf16.mxu0 0
        %984 = vmatpush2.bf16.msra.mxu0 0
        %985 = vmatprep.subr.bf16.mxu0 0
        %986 = vmatpush2.bf16.msra.mxu0 0
        %987 = vmatprep.subr.bf16.mxu0 0
        %988 = vmatpush2.bf16.msra.mxu0 0
        %989 = vmatprep.mubr.bf16.mxu0 0
        %990 = vmatmul.mubr.bf16.gmra.mxu0 %v647
        %v991 = vpop.f32.mrf.mxu0
        %v992 = vadd.f32 %v880, %v991
        %v993 = vpop.f32.mrf.mxu0
        %v994 = vpop.f32.mrf.mxu0
        %v995 = vpop.f32.mrf.mxu0
        %996 = vdwg.mxu0
        %v1001 = vunpack.c.l.b16 %v857
        %v1002 = vunpack.c.l.b16 %v858
        %v1003 = vunpack.c.l.b16 %v859
        %v1004 = vunpack.c.l.b16 %v860
        %v1005 = vpack.c.b16 %v1002, %v1001
        %v1006 = vpack.c.b16 %v1004, %v1003
        %1009 = vmatprep.subr.bf16.mxu0 0
        %1010 = vmatpush1.bf16.msra.mxu0 0
        %1011 = vmatprep.subr.bf16.mxu0 0
        %1012 = vmatpush1.bf16.msra.mxu0 0
        %1013 = vmatprep.subr.bf16.mxu0 0
        %1014 = vmatpush1.bf16.msra.mxu0 0
        %1015 = vmatprep.subr.bf16.mxu0 0
        %1016 = vmatpush1.bf16.msra.mxu0 0
        %1017 = vmatprep.subr.bf16.mxu0 0
        %1018 = vmatpush1.bf16.msra.mxu0 0
        %1019 = vmatprep.subr.bf16.mxu0 0
        %1020 = vmatpush1.bf16.msra.mxu0 0
        %1021 = vmatprep.subr.bf16.mxu0 0
        %1022 = vmatpush1.bf16.msra.mxu0 %v1006
        %1023 = vmatprep.subr.bf16.mxu0 0
        %1024 = vmatpush1.bf16.msra.mxu0 %v1005
        %1025 = vmatprep.subr.bf16.mxu0 0
        %1026 = vmatpush2.bf16.msra.mxu0 0
        %1027 = vmatprep.subr.bf16.mxu0 0
        %1028 = vmatpush2.bf16.msra.mxu0 0
        %1029 = vmatprep.subr.bf16.mxu0 0
        %1030 = vmatpush2.bf16.msra.mxu0 0
        %1031 = vmatprep.subr.bf16.mxu0 0
        %1032 = vmatpush2.bf16.msra.mxu0 0
        %1033 = vmatprep.subr.bf16.mxu0 0
        %1034 = vmatpush2.bf16.msra.mxu0 0
        %1035 = vmatprep.subr.bf16.mxu0 0
        %1036 = vmatpush2.bf16.msra.mxu0 0
        %1037 = vmatprep.subr.bf16.mxu0 0
        %1038 = vmatpush2.bf16.msra.mxu0 0
        %1039 = vmatprep.subr.bf16.mxu0 0
        %1040 = vmatpush2.bf16.msra.mxu0 0
        %1041 = vmatprep.mubr.bf16.mxu0 0
        %1042 = vmatmul.mubr.bf16.gmra.mxu0 %v647
        %v1043 = vpop.f32.mrf.mxu0
        %v1044 = vadd.f32 %v884, %v1043
        %v1045 = vpop.f32.mrf.mxu0
        %v1046 = vpop.f32.mrf.mxu0
        %v1047 = vpop.f32.mrf.mxu0
        %1048 = vdwg.mxu0
        %v1053 = vunpack.c.l.b16 %v861
        %v1054 = vunpack.c.l.b16 %v862
        %v1055 = vunpack.c.l.b16 %v863
        %v1056 = vunpack.c.l.b16 %v864
        %v1057 = vpack.c.b16 %v1054, %v1053
        %v1058 = vpack.c.b16 %v1056, %v1055
        %1061 = vmatprep.subr.bf16.mxu0 0
        %1062 = vmatpush1.bf16.msra.mxu0 0
        %1063 = vmatprep.subr.bf16.mxu0 0
        %1064 = vmatpush1.bf16.msra.mxu0 0
        %1065 = vmatprep.subr.bf16.mxu0 0
        %1066 = vmatpush1.bf16.msra.mxu0 0
        %1067 = vmatprep.subr.bf16.mxu0 0
        %1068 = vmatpush1.bf16.msra.mxu0 0
        %1069 = vmatprep.subr.bf16.mxu0 0
        %1070 = vmatpush1.bf16.msra.mxu0 0
        %1071 = vmatprep.subr.bf16.mxu0 0
        %1072 = vmatpush1.bf16.msra.mxu0 0
        %1073 = vmatprep.subr.bf16.mxu0 0
        %1074 = vmatpush1.bf16.msra.mxu0 %v1058
        %1075 = vmatprep.subr.bf16.mxu0 0
        %1076 = vmatpush1.bf16.msra.mxu0 %v1057
        %1077 = vmatprep.subr.bf16.mxu0 0
        %1078 = vmatpush2.bf16.msra.mxu0 0
        %1079 = vmatprep.subr.bf16.mxu0 0
        %1080 = vmatpush2.bf16.msra.mxu0 0
        %1081 = vmatprep.subr.bf16.mxu0 0
        %1082 = vmatpush2.bf16.msra.mxu0 0
        %1083 = vmatprep.subr.bf16.mxu0 0
        %1084 = vmatpush2.bf16.msra.mxu0 0
        %1085 = vmatprep.subr.bf16.mxu0 0
        %1086 = vmatpush2.bf16.msra.mxu0 0
        %1087 = vmatprep.subr.bf16.mxu0 0
        %1088 = vmatpush2.bf16.msra.mxu0 0
        %1089 = vmatprep.subr.bf16.mxu0 0
        %1090 = vmatpush2.bf16.msra.mxu0 0
        %1091 = vmatprep.subr.bf16.mxu0 0
        %1092 = vmatpush2.bf16.msra.mxu0 0
        %1093 = vmatprep.mubr.bf16.mxu0 0
        %1094 = vmatmul.mubr.bf16.gmra.mxu0 %v647
        %v1095 = vpop.f32.mrf.mxu0
        %v1096 = vadd.f32 %v888, %v1095
        %v1097 = vpop.f32.mrf.mxu0
        %v1098 = vpop.f32.mrf.mxu0
        %v1099 = vpop.f32.mrf.mxu0
        %1100 = vdwg.mxu0
        %v1101 = vld [vmem:[%s6] sm:$0xf]
        %v1102 = vld [vmem:[%s6 + $0x4] sm:$0xf]
        %v1103 = vld [vmem:[%s6 + $0x8] sm:$0xf]
        %v1104 = vld [vmem:[%s6 + $0xc] sm:$0xf]
        %v1105 = vld [vmem:[%s6 + $0x10] sm:$0xf]
        %v1106 = vld [vmem:[%s6 + $0x14] sm:$0xf]
        %v1107 = vld [vmem:[%s6 + $0x18] sm:$0xf]
        %v1108 = vld [vmem:[%s6 + $0x1c] sm:$0xf]
        %v1109 = vld [vmem:[%s6 + $0x20] sm:$0xf]
        %v1110 = vld [vmem:[%s6 + $0x24] sm:$0xf]
        %v1111 = vld [vmem:[%s6 + $0x28] sm:$0xf]
        %v1112 = vld [vmem:[%s6 + $0x2c] sm:$0xf]
        %v1113 = vld [vmem:[%s6 + $0x30] sm:$0xf]
        %v1114 = vld [vmem:[%s6 + $0x34] sm:$0xf]
        %v1115 = vld [vmem:[%s6 + $0x38] sm:$0xf]
        %v1116 = vld [vmem:[%s6 + $0x3c] sm:$0xf]
        %v1117 = vld [vmem:[%s7] sm:$0x1]
        %v1118 = vld [vmem:[%s7 + $0x1] sm:$0x1]
        %v1119 = vld [vmem:[%s7 + $0x2] sm:$0x1]
        %v1120 = vld [vmem:[%s7 + $0x3] sm:$0x1]
        %v1125 = vlaneseq
        %v1126 = vshrl.u32 %v1125, 7
        %v1127 = vsub.s32 0, %v1126
        %v1128 = vrot.slane %v1117, %v1127
        %v1129 = vlaneseq
        %v1130 = vshrl.u32 %v1129, 7
        %v1131 = vsub.s32 0, %v1130
        %v1132 = vrot.slane %v1118, %v1131
        %v1133 = vlaneseq
        %v1134 = vshrl.u32 %v1133, 7
        %v1135 = vsub.s32 0, %v1134
        %v1136 = vrot.slane %v1119, %v1135
        %v1137 = vlaneseq
        %v1138 = vshrl.u32 %v1137, 7
        %v1139 = vsub.s32 0, %v1138
        %v1140 = vrot.slane %v1120, %v1139
        %v1149 = vunpack.c.l.b16 %v1101
        %v1150 = vunpack.c.l.b16 %v1102
        %v1151 = vunpack.c.l.b16 %v1103
        %v1152 = vunpack.c.l.b16 %v1104
        %v1153 = vpack.c.b16 %v1150, %v1149
        %v1154 = vpack.c.b16 %v1152, %v1151
        %1157 = vmatprep.subr.bf16.mxu0 0
        %1158 = vmatpush1.bf16.msra.mxu0 0
        %1159 = vmatprep.subr.bf16.mxu0 0
        %1160 = vmatpush1.bf16.msra.mxu0 0
        %1161 = vmatprep.subr.bf16.mxu0 0
        %1162 = vmatpush1.bf16.msra.mxu0 0
        %1163 = vmatprep.subr.bf16.mxu0 0
        %1164 = vmatpush1.bf16.msra.mxu0 0
        %1165 = vmatprep.subr.bf16.mxu0 0
        %1166 = vmatpush1.bf16.msra.mxu0 0
        %1167 = vmatprep.subr.bf16.mxu0 0
        %1168 = vmatpush1.bf16.msra.mxu0 0
        %1169 = vmatprep.subr.bf16.mxu0 0
        %1170 = vmatpush1.bf16.msra.mxu0 %v1154
        %1171 = vmatprep.subr.bf16.mxu0 0
        %1172 = vmatpush1.bf16.msra.mxu0 %v1153
        %1173 = vmatprep.subr.bf16.mxu0 0
        %1174 = vmatpush2.bf16.msra.mxu0 0
        %1175 = vmatprep.subr.bf16.mxu0 0
        %1176 = vmatpush2.bf16.msra.mxu0 0
        %1177 = vmatprep.subr.bf16.mxu0 0
        %1178 = vmatpush2.bf16.msra.mxu0 0
        %1179 = vmatprep.subr.bf16.mxu0 0
        %1180 = vmatpush2.bf16.msra.mxu0 0
        %1181 = vmatprep.subr.bf16.mxu0 0
        %1182 = vmatpush2.bf16.msra.mxu0 0
        %1183 = vmatprep.subr.bf16.mxu0 0
        %1184 = vmatpush2.bf16.msra.mxu0 0
        %1185 = vmatprep.subr.bf16.mxu0 0
        %1186 = vmatpush2.bf16.msra.mxu0 0
        %1187 = vmatprep.subr.bf16.mxu0 0
        %1188 = vmatpush2.bf16.msra.mxu0 0
        %1189 = vmatprep.mubr.bf16.mxu0 0
        %1190 = vmatmul.mubr.bf16.gmra.mxu0 %v647
        %v1191 = vpop.f32.mrf.mxu0
        %v1192 = vadd.f32 %v1128, %v1191
        %v1193 = vpop.f32.mrf.mxu0
        %v1194 = vpop.f32.mrf.mxu0
        %v1195 = vpop.f32.mrf.mxu0
        %1196 = vdwg.mxu0
        %v1201 = vunpack.c.l.b16 %v1105
        %v1202 = vunpack.c.l.b16 %v1106
        %v1203 = vunpack.c.l.b16 %v1107
        %v1204 = vunpack.c.l.b16 %v1108
        %v1205 = vpack.c.b16 %v1202, %v1201
        %v1206 = vpack.c.b16 %v1204, %v1203
        %1209 = vmatprep.subr.bf16.mxu0 0
        %1210 = vmatpush1.bf16.msra.mxu0 0
        %1211 = vmatprep.subr.bf16.mxu0 0
        %1212 = vmatpush1.bf16.msra.mxu0 0
        %1213 = vmatprep.subr.bf16.mxu0 0
        %1214 = vmatpush1.bf16.msra.mxu0 0
        %1215 = vmatprep.subr.bf16.mxu0 0
        %1216 = vmatpush1.bf16.msra.mxu0 0
        %1217 = vmatprep.subr.bf16.mxu0 0
        %1218 = vmatpush1.bf16.msra.mxu0 0
        %1219 = vmatprep.subr.bf16.mxu0 0
        %1220 = vmatpush1.bf16.msra.mxu0 0
        %1221 = vmatprep.subr.bf16.mxu0 0
        %1222 = vmatpush1.bf16.msra.mxu0 %v1206
        %1223 = vmatprep.subr.bf16.mxu0 0
        %1224 = vmatpush1.bf16.msra.mxu0 %v1205
        %1225 = vmatprep.subr.bf16.mxu0 0
        %1226 = vmatpush2.bf16.msra.mxu0 0
        %1227 = vmatprep.subr.bf16.mxu0 0
        %1228 = vmatpush2.bf16.msra.mxu0 0
        %1229 = vmatprep.subr.bf16.mxu0 0
        %1230 = vmatpush2.bf16.msra.mxu0 0
        %1231 = vmatprep.subr.bf16.mxu0 0
        %1232 = vmatpush2.bf16.msra.mxu0 0
        %1233 = vmatprep.subr.bf16.mxu0 0
        %1234 = vmatpush2.bf16.msra.mxu0 0
        %1235 = vmatprep.subr.bf16.mxu0 0
        %1236 = vmatpush2.bf16.msra.mxu0 0
        %1237 = vmatprep.subr.bf16.mxu0 0
        %1238 = vmatpush2.bf16.msra.mxu0 0
        %1239 = vmatprep.subr.bf16.mxu0 0
        %1240 = vmatpush2.bf16.msra.mxu0 0
        %1241 = vmatprep.mubr.bf16.mxu0 0
        %1242 = vmatmul.mubr.bf16.gmra.mxu0 %v647
        %v1243 = vpop.f32.mrf.mxu0
        %v1244 = vadd.f32 %v1132, %v1243
        %v1245 = vpop.f32.mrf.mxu0
        %v1246 = vpop.f32.mrf.mxu0
        %v1247 = vpop.f32.mrf.mxu0
        %1248 = vdwg.mxu0
        %v1253 = vunpack.c.l.b16 %v1109
        %v1254 = vunpack.c.l.b16 %v1110
        %v1255 = vunpack.c.l.b16 %v1111
        %v1256 = vunpack.c.l.b16 %v1112
        %v1257 = vpack.c.b16 %v1254, %v1253
        %v1258 = vpack.c.b16 %v1256, %v1255
        %1261 = vmatprep.subr.bf16.mxu0 0
        %1262 = vmatpush1.bf16.msra.mxu0 0
        %1263 = vmatprep.subr.bf16.mxu0 0
        %1264 = vmatpush1.bf16.msra.mxu0 0
        %1265 = vmatprep.subr.bf16.mxu0 0
        %1266 = vmatpush1.bf16.msra.mxu0 0
        %1267 = vmatprep.subr.bf16.mxu0 0
        %1268 = vmatpush1.bf16.msra.mxu0 0
        %1269 = vmatprep.subr.bf16.mxu0 0
        %1270 = vmatpush1.bf16.msra.mxu0 0
        %1271 = vmatprep.subr.bf16.mxu0 0
        %1272 = vmatpush1.bf16.msra.mxu0 0
        %1273 = vmatprep.subr.bf16.mxu0 0
        %1274 = vmatpush1.bf16.msra.mxu0 %v1258
        %1275 = vmatprep.subr.bf16.mxu0 0
        %1276 = vmatpush1.bf16.msra.mxu0 %v1257
        %1277 = vmatprep.subr.bf16.mxu0 0
        %1278 = vmatpush2.bf16.msra.mxu0 0
        %1279 = vmatprep.subr.bf16.mxu0 0
        %1280 = vmatpush2.bf16.msra.mxu0 0
        %1281 = vmatprep.subr.bf16.mxu0 0
        %1282 = vmatpush2.bf16.msra.mxu0 0
        %1283 = vmatprep.subr.bf16.mxu0 0
        %1284 = vmatpush2.bf16.msra.mxu0 0
        %1285 = vmatprep.subr.bf16.mxu0 0
        %1286 = vmatpush2.bf16.msra.mxu0 0
        %1287 = vmatprep.subr.bf16.mxu0 0
        %1288 = vmatpush2.bf16.msra.mxu0 0
        %1289 = vmatprep.subr.bf16.mxu0 0
        %1290 = vmatpush2.bf16.msra.mxu0 0
        %1291 = vmatprep.subr.bf16.mxu0 0
        %1292 = vmatpush2.bf16.msra.mxu0 0
        %1293 = vmatprep.mubr.bf16.mxu0 0
        %1294 = vmatmul.mubr.bf16.gmra.mxu0 %v647
        %v1295 = vpop.f32.mrf.mxu0
        %v1296 = vadd.f32 %v1136, %v1295
        %v1297 = vpop.f32.mrf.mxu0
        %v1298 = vpop.f32.mrf.mxu0
        %v1299 = vpop.f32.mrf.mxu0
        %1300 = vdwg.mxu0
        %v1305 = vunpack.c.l.b16 %v1113
        %v1306 = vunpack.c.l.b16 %v1114
        %v1307 = vunpack.c.l.b16 %v1115
        %v1308 = vunpack.c.l.b16 %v1116
        %v1309 = vpack.c.b16 %v1306, %v1305
        %v1310 = vpack.c.b16 %v1308, %v1307
        %1313 = vmatprep.subr.bf16.mxu0 0
        %1314 = vmatpush1.bf16.msra.mxu0 0
        %1315 = vmatprep.subr.bf16.mxu0 0
        %1316 = vmatpush1.bf16.msra.mxu0 0
        %1317 = vmatprep.subr.bf16.mxu0 0
        %1318 = vmatpush1.bf16.msra.mxu0 0
        %1319 = vmatprep.subr.bf16.mxu0 0
        %1320 = vmatpush1.bf16.msra.mxu0 0
        %1321 = vmatprep.subr.bf16.mxu0 0
        %1322 = vmatpush1.bf16.msra.mxu0 0
        %1323 = vmatprep.subr.bf16.mxu0 0
        %1324 = vmatpush1.bf16.msra.mxu0 0
        %1325 = vmatprep.subr.bf16.mxu0 0
        %1326 = vmatpush1.bf16.msra.mxu0 %v1310
        %1327 = vmatprep.subr.bf16.mxu0 0
        %1328 = vmatpush1.bf16.msra.mxu0 %v1309
        %1329 = vmatprep.subr.bf16.mxu0 0
        %1330 = vmatpush2.bf16.msra.mxu0 0
        %1331 = vmatprep.subr.bf16.mxu0 0
        %1332 = vmatpush2.bf16.msra.mxu0 0
        %1333 = vmatprep.subr.bf16.mxu0 0
        %1334 = vmatpush2.bf16.msra.mxu0 0
        %1335 = vmatprep.subr.bf16.mxu0 0
        %1336 = vmatpush2.bf16.msra.mxu0 0
        %1337 = vmatprep.subr.bf16.mxu0 0
        %1338 = vmatpush2.bf16.msra.mxu0 0
        %1339 = vmatprep.subr.bf16.mxu0 0
        %1340 = vmatpush2.bf16.msra.mxu0 0
        %1341 = vmatprep.subr.bf16.mxu0 0
        %1342 = vmatpush2.bf16.msra.mxu0 0
        %1343 = vmatprep.subr.bf16.mxu0 0
        %1344 = vmatpush2.bf16.msra.mxu0 0
        %1345 = vmatprep.mubr.bf16.mxu0 0
        %1346 = vmatmul.mubr.bf16.gmra.mxu0 %v647
        %v1347 = vpop.f32.mrf.mxu0
        %v1348 = vadd.f32 %v1140, %v1347
        %v1349 = vpop.f32.mrf.mxu0
        %v1350 = vpop.f32.mrf.mxu0
        %v1351 = vpop.f32.mrf.mxu0
        %1352 = vdwg.mxu0
        %v1353 = vpack.c.bf16 %v845, %v845
        %v1354 = vpack.c.bf16 %v846, %v846
        %v1355 = vpack.c.bf16 %v847, %v847
        %v1356 = vpack.c.bf16 %v848, %v848
        %v1357 = vpack.c.bf16 %v940, %v940
        %v1358 = vpack.c.bf16 %v992, %v992
        %v1359 = vpack.c.bf16 %v1044, %v1044
        %v1360 = vpack.c.bf16 %v1096, %v1096
        %v1362 = vlaneseq
        %v1363 = vshrl.u32 %v1362, 7
        %v1364 = vsub.s32 0, %v1363
        %v1365 = vrot.slane %v587, %v1364
        %vm1367 = vcmask 64512
        %v1369 = vsel %vm1367, %v1353, 0
        %v1372 = vsel %vm1367, %v1357, 0
        %1374 = vmatprep.subr.bf16.mxu0 0
        %1375 = vmatpush1.bf16.xpose.msra.mxu0 0
        %1376 = vmatprep.subr.bf16.mxu0 0
        %1377 = vmatpush1.bf16.xpose.msra.mxu0 0
        %1378 = vmatprep.subr.bf16.mxu0 0
        %1379 = vmatpush1.bf16.xpose.msra.mxu0 0
        %1380 = vmatprep.subr.bf16.mxu0 0
        %1381 = vmatpush1.bf16.xpose.msra.mxu0 0
        %1382 = vmatprep.subr.bf16.mxu0 0
        %1383 = vmatpush1.bf16.xpose.msra.mxu0 0
        %1384 = vmatprep.subr.bf16.mxu0 0
        %1385 = vmatpush1.bf16.xpose.msra.mxu0 0
        %1386 = vmatprep.subr.bf16.mxu0 0
        %1387 = vmatpush1.bf16.xpose.msra.mxu0 0
        %1388 = vmatprep.subr.bf16.mxu0 0
        %1389 = vmatpush1.bf16.xpose.msra.mxu0 %v1372
        %1390 = vmatprep.subr.bf16.mxu0 0
        %1391 = vmatpush2.bf16.xpose.msra.mxu0 0
        %1392 = vmatprep.subr.bf16.mxu0 0
        %1393 = vmatpush2.bf16.xpose.msra.mxu0 0
        %1394 = vmatprep.subr.bf16.mxu0 0
        %1395 = vmatpush2.bf16.xpose.msra.mxu0 0
        %1396 = vmatprep.subr.bf16.mxu0 0
        %1397 = vmatpush2.bf16.xpose.msra.mxu0 0
        %1398 = vmatprep.subr.bf16.mxu0 0
        %1399 = vmatpush2.bf16.xpose.msra.mxu0 0
        %1400 = vmatprep.subr.bf16.mxu0 0
        %1401 = vmatpush2.bf16.xpose.msra.mxu0 0
        %1402 = vmatprep.subr.bf16.mxu0 0
        %1403 = vmatpush2.bf16.xpose.msra.mxu0 0
        %1404 = vmatprep.subr.bf16.mxu0 0
        %1405 = vmatpush2.bf16.xpose.msra.mxu0 0
        %1406 = vmatprep.mubr.bf16.mxu0 0
        %1407 = vmatmul.mubr.bf16.gmra.mxu0 %v1369
        %v1408 = vpop.f32.mrf.mxu0
        %v1409 = vadd.f32 %v1365, %v1408
        %v1410 = vpop.f32.mrf.mxu0
        %v1411 = vpop.f32.mrf.mxu0
        %v1412 = vpop.f32.mrf.mxu0
        %1413 = vdwg.mxu0
        %v1415 = vsel %vm1367, %v1354, 0
        %v1418 = vsel %vm1367, %v1358, 0
        %1420 = vmatprep.subr.bf16.mxu0 0
        %1421 = vmatpush1.bf16.xpose.msra.mxu0 0
        %1422 = vmatprep.subr.bf16.mxu0 0
        %1423 = vmatpush1.bf16.xpose.msra.mxu0 0
        %1424 = vmatprep.subr.bf16.mxu0 0
        %1425 = vmatpush1.bf16.xpose.msra.mxu0 0
        %1426 = vmatprep.subr.bf16.mxu0 0
        %1427 = vmatpush1.bf16.xpose.msra.mxu0 0
        %1428 = vmatprep.subr.bf16.mxu0 0
        %1429 = vmatpush1.bf16.xpose.msra.mxu0 0
        %1430 = vmatprep.subr.bf16.mxu0 0
        %1431 = vmatpush1.bf16.xpose.msra.mxu0 0
        %1432 = vmatprep.subr.bf16.mxu0 0
        %1433 = vmatpush1.bf16.xpose.msra.mxu0 0
        %1434 = vmatprep.subr.bf16.mxu0 0
        %1435 = vmatpush1.bf16.xpose.msra.mxu0 %v1418
        %1436 = vmatprep.subr.bf16.mxu0 0
        %1437 = vmatpush2.bf16.xpose.msra.mxu0 0
        %1438 = vmatprep.subr.bf16.mxu0 0
        %1439 = vmatpush2.bf16.xpose.msra.mxu0 0
        %1440 = vmatprep.subr.bf16.mxu0 0
        %1441 = vmatpush2.bf16.xpose.msra.mxu0 0
        %1442 = vmatprep.subr.bf16.mxu0 0
        %1443 = vmatpush2.bf16.xpose.msra.mxu0 0
        %1444 = vmatprep.subr.bf16.mxu0 0
        %1445 = vmatpush2.bf16.xpose.msra.mxu0 0
        %1446 = vmatprep.subr.bf16.mxu0 0
        %1447 = vmatpush2.bf16.xpose.msra.mxu0 0
        %1448 = vmatprep.subr.bf16.mxu0 0
        %1449 = vmatpush2.bf16.xpose.msra.mxu0 0
        %1450 = vmatprep.subr.bf16.mxu0 0
        %1451 = vmatpush2.bf16.xpose.msra.mxu0 0
        %1452 = vmatprep.mubr.bf16.mxu0 0
        %1453 = vmatmul.mubr.bf16.gmra.mxu0 %v1415
        %v1454 = vpop.f32.mrf.mxu0
        %v1455 = vadd.f32 %v1365, %v1454
        %v1456 = vpop.f32.mrf.mxu0
        %v1457 = vpop.f32.mrf.mxu0
        %v1458 = vpop.f32.mrf.mxu0
        %1459 = vdwg.mxu0
        %v1461 = vsel %vm1367, %v1355, 0
        %v1464 = vsel %vm1367, %v1359, 0
        %1466 = vmatprep.subr.bf16.mxu0 0
        %1467 = vmatpush1.bf16.xpose.msra.mxu0 0
        %1468 = vmatprep.subr.bf16.mxu0 0
        %1469 = vmatpush1.bf16.xpose.msra.mxu0 0
        %1470 = vmatprep.subr.bf16.mxu0 0
        %1471 = vmatpush1.bf16.xpose.msra.mxu0 0
        %1472 = vmatprep.subr.bf16.mxu0 0
        %1473 = vmatpush1.bf16.xpose.msra.mxu0 0
        %1474 = vmatprep.subr.bf16.mxu0 0
        %1475 = vmatpush1.bf16.xpose.msra.mxu0 0
        %1476 = vmatprep.subr.bf16.mxu0 0
        %1477 = vmatpush1.bf16.xpose.msra.mxu0 0
        %1478 = vmatprep.subr.bf16.mxu0 0
        %1479 = vmatpush1.bf16.xpose.msra.mxu0 0
        %1480 = vmatprep.subr.bf16.mxu0 0
        %1481 = vmatpush1.bf16.xpose.msra.mxu0 %v1464
        %1482 = vmatprep.subr.bf16.mxu0 0
        %1483 = vmatpush2.bf16.xpose.msra.mxu0 0
        %1484 = vmatprep.subr.bf16.mxu0 0
        %1485 = vmatpush2.bf16.xpose.msra.mxu0 0
        %1486 = vmatprep.subr.bf16.mxu0 0
        %1487 = vmatpush2.bf16.xpose.msra.mxu0 0
        %1488 = vmatprep.subr.bf16.mxu0 0
        %1489 = vmatpush2.bf16.xpose.msra.mxu0 0
        %1490 = vmatprep.subr.bf16.mxu0 0
        %1491 = vmatpush2.bf16.xpose.msra.mxu0 0
        %1492 = vmatprep.subr.bf16.mxu0 0
        %1493 = vmatpush2.bf16.xpose.msra.mxu0 0
        %1494 = vmatprep.subr.bf16.mxu0 0
        %1495 = vmatpush2.bf16.xpose.msra.mxu0 0
        %1496 = vmatprep.subr.bf16.mxu0 0
        %1497 = vmatpush2.bf16.xpose.msra.mxu0 0
        %1498 = vmatprep.mubr.bf16.mxu0 0
        %1499 = vmatmul.mubr.bf16.gmra.mxu0 %v1461
        %v1500 = vpop.f32.mrf.mxu0
        %v1501 = vadd.f32 %v1365, %v1500
        %v1502 = vpop.f32.mrf.mxu0
        %v1503 = vpop.f32.mrf.mxu0
        %v1504 = vpop.f32.mrf.mxu0
        %1505 = vdwg.mxu0
        %v1507 = vsel %vm1367, %v1356, 0
        %v1510 = vsel %vm1367, %v1360, 0
        %1512 = vmatprep.subr.bf16.mxu0 0
        %1513 = vmatpush1.bf16.xpose.msra.mxu0 0
        %1514 = vmatprep.subr.bf16.mxu0 0
        %1515 = vmatpush1.bf16.xpose.msra.mxu0 0
        %1516 = vmatprep.subr.bf16.mxu0 0
        %1517 = vmatpush1.bf16.xpose.msra.mxu0 0
        %1518 = vmatprep.subr.bf16.mxu0 0
        %1519 = vmatpush1.bf16.xpose.msra.mxu0 0
        %1520 = vmatprep.subr.bf16.mxu0 0
        %1521 = vmatpush1.bf16.xpose.msra.mxu0 0
        %1522 = vmatprep.subr.bf16.mxu0 0
        %1523 = vmatpush1.bf16.xpose.msra.mxu0 0
        %1524 = vmatprep.subr.bf16.mxu0 0
        %1525 = vmatpush1.bf16.xpose.msra.mxu0 0
        %1526 = vmatprep.subr.bf16.mxu0 0
        %1527 = vmatpush1.bf16.xpose.msra.mxu0 %v1510
        %1528 = vmatprep.subr.bf16.mxu0 0
        %1529 = vmatpush2.bf16.xpose.msra.mxu0 0
        %1530 = vmatprep.subr.bf16.mxu0 0
        %1531 = vmatpush2.bf16.xpose.msra.mxu0 0
        %1532 = vmatprep.subr.bf16.mxu0 0
        %1533 = vmatpush2.bf16.xpose.msra.mxu0 0
        %1534 = vmatprep.subr.bf16.mxu0 0
        %1535 = vmatpush2.bf16.xpose.msra.mxu0 0
        %1536 = vmatprep.subr.bf16.mxu0 0
        %1537 = vmatpush2.bf16.xpose.msra.mxu0 0
        %1538 = vmatprep.subr.bf16.mxu0 0
        %1539 = vmatpush2.bf16.xpose.msra.mxu0 0
        %1540 = vmatprep.subr.bf16.mxu0 0
        %1541 = vmatpush2.bf16.xpose.msra.mxu0 0
        %1542 = vmatprep.subr.bf16.mxu0 0
        %1543 = vmatpush2.bf16.xpose.msra.mxu0 0
        %1544 = vmatprep.mubr.bf16.mxu0 0
        %1545 = vmatmul.mubr.bf16.gmra.mxu0 %v1507
        %v1546 = vpop.f32.mrf.mxu0
        %v1547 = vadd.f32 %v1365, %v1546
        %v1548 = vpop.f32.mrf.mxu0
        %v1549 = vpop.f32.mrf.mxu0
        %v1550 = vpop.f32.mrf.mxu0
        %1551 = vdwg.mxu0
        %v1552 = vsel %vm1367, %v1409, -inf
        %1553 = vmax.xlane.f32.xlu0 %v1552
        %v1554 = vpop.xlane.xlu0 %1553
        %v1555 = vsel %vm1367, %v1455, -inf
        %1556 = vmax.xlane.f32.xlu0 %v1555
        %v1557 = vpop.xlane.xlu0 %1556
        %v1558 = vsel %vm1367, %v1501, -inf
        %1559 = vmax.xlane.f32.xlu0 %v1558
        %v1560 = vpop.xlane.xlu0 %1559
        %v1561 = vsel %vm1367, %v1547, -inf
        %1562 = vmax.xlane.f32.xlu0 %v1561
        %v1563 = vpop.xlane.xlu0 %1562
        %v1564 = vsub.f32 %v1409, %v1554
        %v1565 = vsub.f32 %v1455, %v1557
        %v1566 = vsub.f32 %v1501, %v1560
        %v1567 = vsub.f32 %v1547, %v1563
        %v1568 = vmul.f32 %v1564, 1.442695
        %v1569 = vpow.pop %v1568
        %v1570 = vmul.f32 %v1565, 1.442695
        %v1571 = vpow.pop %v1570
        %v1572 = vmul.f32 %v1566, 1.442695
        %v1573 = vpow.pop %v1572
        %v1574 = vmul.f32 %v1567, 1.442695
        %v1575 = vpow.pop %v1574
        %v1576 = vsel %vm1367, %v1569, 0.0
        %1577 = vadd.xlane.f32.xlu0 %v1576
        %v1578 = vpop.xlane.xlu0 %1577
        %v1579 = vsel %vm1367, %v1571, 0.0
        %1580 = vadd.xlane.f32.xlu0 %v1579
        %v1581 = vpop.xlane.xlu0 %1580
        %v1582 = vsel %vm1367, %v1573, 0.0
        %1583 = vadd.xlane.f32.xlu0 %v1582
        %v1584 = vpop.xlane.xlu0 %1583
        %v1585 = vsel %vm1367, %v1575, 0.0
        %1586 = vadd.xlane.f32.xlu0 %v1585
        %v1587 = vpop.xlane.xlu0 %1586
        %v1588 = vrcp.pop %v1578
        %v1589 = vrcp.pop %v1581
        %v1590 = vrcp.pop %v1584
        %v1591 = vrcp.pop %v1587
        %v1592 = vmul.f32 %v1569, %v1588
        %v1593 = vmul.f32 %v1571, %v1589
        %v1594 = vmul.f32 %v1573, %v1590
        %v1595 = vmul.f32 %v1575, %v1591
        %v1596 = vpack.c.bf16 %v1592, %v1592
        %v1597 = vpack.c.bf16 %v1593, %v1593
        %v1598 = vpack.c.bf16 %v1594, %v1594
        %v1599 = vpack.c.bf16 %v1595, %v1595
        %v1600 = vpack.c.bf16 %v1192, %v1192
        %v1601 = vpack.c.bf16 %v1244, %v1244
        %v1602 = vpack.c.bf16 %v1296, %v1296
        %v1603 = vpack.c.bf16 %v1348, %v1348
        %v1605 = vsel %vm1367, %v1596, 0
        %vm1607 = vcmask 1043456
        %v1609 = vsel %vm1607, %v1600, 0
        %1611 = vmatprep.subr.bf16.mxu0 0
        %1612 = vmatpush1.bf16.msra.mxu0 0
        %1613 = vmatprep.subr.bf16.mxu0 0
        %1614 = vmatpush1.bf16.msra.mxu0 0
        %1615 = vmatprep.subr.bf16.mxu0 0
        %1616 = vmatpush1.bf16.msra.mxu0 0
        %1617 = vmatprep.subr.bf16.mxu0 0
        %1618 = vmatpush1.bf16.msra.mxu0 0
        %1619 = vmatprep.subr.bf16.mxu0 0
        %1620 = vmatpush1.bf16.msra.mxu0 0
        %1621 = vmatprep.subr.bf16.mxu0 0
        %1622 = vmatpush1.bf16.msra.mxu0 0
        %1623 = vmatprep.subr.bf16.mxu0 0
        %1624 = vmatpush1.bf16.msra.mxu0 0
        %1625 = vmatprep.subr.bf16.mxu0 0
        %1626 = vmatpush1.bf16.msra.mxu0 %v1609
        %1627 = vmatprep.subr.bf16.mxu0 0
        %1628 = vmatpush2.bf16.msra.mxu0 0
        %1629 = vmatprep.subr.bf16.mxu0 0
        %1630 = vmatpush2.bf16.msra.mxu0 0
        %1631 = vmatprep.subr.bf16.mxu0 0
        %1632 = vmatpush2.bf16.msra.mxu0 0
        %1633 = vmatprep.subr.bf16.mxu0 0
        %1634 = vmatpush2.bf16.msra.mxu0 0
        %1635 = vmatprep.subr.bf16.mxu0 0
        %1636 = vmatpush2.bf16.msra.mxu0 0
        %1637 = vmatprep.subr.bf16.mxu0 0
        %1638 = vmatpush2.bf16.msra.mxu0 0
        %1639 = vmatprep.subr.bf16.mxu0 0
        %1640 = vmatpush2.bf16.msra.mxu0 0
        %1641 = vmatprep.subr.bf16.mxu0 0
        %1642 = vmatpush2.bf16.msra.mxu0 0
        %1643 = vmatprep.mubr.bf16.mxu0 0
        %1644 = vmatmul.mubr.bf16.gmra.mxu0 %v1605
        %v1645 = vpop.f32.mrf.mxu0
        %v1646 = vadd.f32 0.0, %v1645
        %v1647 = vpop.f32.mrf.mxu0
        %v1648 = vpop.f32.mrf.mxu0
        %v1649 = vpop.f32.mrf.mxu0
        %1650 = vdwg.mxu0
        %v1652 = vsel %vm1367, %v1597, 0
        %v1655 = vsel %vm1607, %v1601, 0
        %1657 = vmatprep.subr.bf16.mxu0 0
        %1658 = vmatpush1.bf16.msra.mxu0 0
        %1659 = vmatprep.subr.bf16.mxu0 0
        %1660 = vmatpush1.bf16.msra.mxu0 0
        %1661 = vmatprep.subr.bf16.mxu0 0
        %1662 = vmatpush1.bf16.msra.mxu0 0
        %1663 = vmatprep.subr.bf16.mxu0 0
        %1664 = vmatpush1.bf16.msra.mxu0 0
        %1665 = vmatprep.subr.bf16.mxu0 0
        %1666 = vmatpush1.bf16.msra.mxu0 0
        %1667 = vmatprep.subr.bf16.mxu0 0
        %1668 = vmatpush1.bf16.msra.mxu0 0
        %1669 = vmatprep.subr.bf16.mxu0 0
        %1670 = vmatpush1.bf16.msra.mxu0 0
        %1671 = vmatprep.subr.bf16.mxu0 0
        %1672 = vmatpush1.bf16.msra.mxu0 %v1655
        %1673 = vmatprep.subr.bf16.mxu0 0
        %1674 = vmatpush2.bf16.msra.mxu0 0
        %1675 = vmatprep.subr.bf16.mxu0 0
        %1676 = vmatpush2.bf16.msra.mxu0 0
        %1677 = vmatprep.subr.bf16.mxu0 0
        %1678 = vmatpush2.bf16.msra.mxu0 0
        %1679 = vmatprep.subr.bf16.mxu0 0
        %1680 = vmatpush2.bf16.msra.mxu0 0
        %1681 = vmatprep.subr.bf16.mxu0 0
        %1682 = vmatpush2.bf16.msra.mxu0 0
        %1683 = vmatprep.subr.bf16.mxu0 0
        %1684 = vmatpush2.bf16.msra.mxu0 0
        %1685 = vmatprep.subr.bf16.mxu0 0
        %1686 = vmatpush2.bf16.msra.mxu0 0
        %1687 = vmatprep.subr.bf16.mxu0 0
        %1688 = vmatpush2.bf16.msra.mxu0 0
        %1689 = vmatprep.mubr.bf16.mxu0 0
        %1690 = vmatmul.mubr.bf16.gmra.mxu0 %v1652
        %v1691 = vpop.f32.mrf.mxu0
        %v1692 = vadd.f32 0.0, %v1691
        %v1693 = vpop.f32.mrf.mxu0
        %v1694 = vpop.f32.mrf.mxu0
        %v1695 = vpop.f32.mrf.mxu0
        %1696 = vdwg.mxu0
        %v1698 = vsel %vm1367, %v1598, 0
        %v1701 = vsel %vm1607, %v1602, 0
        %1703 = vmatprep.subr.bf16.mxu0 0
        %1704 = vmatpush1.bf16.msra.mxu0 0
        %1705 = vmatprep.subr.bf16.mxu0 0
        %1706 = vmatpush1.bf16.msra.mxu0 0
        %1707 = vmatprep.subr.bf16.mxu0 0
        %1708 = vmatpush1.bf16.msra.mxu0 0
        %1709 = vmatprep.subr.bf16.mxu0 0
        %1710 = vmatpush1.bf16.msra.mxu0 0
        %1711 = vmatprep.subr.bf16.mxu0 0
        %1712 = vmatpush1.bf16.msra.mxu0 0
        %1713 = vmatprep.subr.bf16.mxu0 0
        %1714 = vmatpush1.bf16.msra.mxu0 0
        %1715 = vmatprep.subr.bf16.mxu0 0
        %1716 = vmatpush1.bf16.msra.mxu0 0
        %1717 = vmatprep.subr.bf16.mxu0 0
        %1718 = vmatpush1.bf16.msra.mxu0 %v1701
        %1719 = vmatprep.subr.bf16.mxu0 0
        %1720 = vmatpush2.bf16.msra.mxu0 0
        %1721 = vmatprep.subr.bf16.mxu0 0
        %1722 = vmatpush2.bf16.msra.mxu0 0
        %1723 = vmatprep.subr.bf16.mxu0 0
        %1724 = vmatpush2.bf16.msra.mxu0 0
        %1725 = vmatprep.subr.bf16.mxu0 0
        %1726 = vmatpush2.bf16.msra.mxu0 0
        %1727 = vmatprep.subr.bf16.mxu0 0
        %1728 = vmatpush2.bf16.msra.mxu0 0
        %1729 = vmatprep.subr.bf16.mxu0 0
        %1730 = vmatpush2.bf16.msra.mxu0 0
        %1731 = vmatprep.subr.bf16.mxu0 0
        %1732 = vmatpush2.bf16.msra.mxu0 0
        %1733 = vmatprep.subr.bf16.mxu0 0
        %1734 = vmatpush2.bf16.msra.mxu0 0
        %1735 = vmatprep.mubr.bf16.mxu0 0
        %1736 = vmatmul.mubr.bf16.gmra.mxu0 %v1698
        %v1737 = vpop.f32.mrf.mxu0
        %v1738 = vadd.f32 0.0, %v1737
        %v1739 = vpop.f32.mrf.mxu0
        %v1740 = vpop.f32.mrf.mxu0
        %v1741 = vpop.f32.mrf.mxu0
        %1742 = vdwg.mxu0
        %v1744 = vsel %vm1367, %v1599, 0
        %v1747 = vsel %vm1607, %v1603, 0
        %1749 = vmatprep.subr.bf16.mxu0 0
        %1750 = vmatpush1.bf16.msra.mxu0 0
        %1751 = vmatprep.subr.bf16.mxu0 0
        %1752 = vmatpush1.bf16.msra.mxu0 0
        %1753 = vmatprep.subr.bf16.mxu0 0
        %1754 = vmatpush1.bf16.msra.mxu0 0
        %1755 = vmatprep.subr.bf16.mxu0 0
        %1756 = vmatpush1.bf16.msra.mxu0 0
        %1757 = vmatprep.subr.bf16.mxu0 0
        %1758 = vmatpush1.bf16.msra.mxu0 0
        %1759 = vmatprep.subr.bf16.mxu0 0
        %1760 = vmatpush1.bf16.msra.mxu0 0
        %1761 = vmatprep.subr.bf16.mxu0 0
        %1762 = vmatpush1.bf16.msra.mxu0 0
        %1763 = vmatprep.subr.bf16.mxu0 0
        %1764 = vmatpush1.bf16.msra.mxu0 %v1747
        %1765 = vmatprep.subr.bf16.mxu0 0
        %1766 = vmatpush2.bf16.msra.mxu0 0
        %1767 = vmatprep.subr.bf16.mxu0 0
        %1768 = vmatpush2.bf16.msra.mxu0 0
        %1769 = vmatprep.subr.bf16.mxu0 0
        %1770 = vmatpush2.bf16.msra.mxu0 0
        %1771 = vmatprep.subr.bf16.mxu0 0
        %1772 = vmatpush2.bf16.msra.mxu0 0
        %1773 = vmatprep.subr.bf16.mxu0 0
        %1774 = vmatpush2.bf16.msra.mxu0 0
        %1775 = vmatprep.subr.bf16.mxu0 0
        %1776 = vmatpush2.bf16.msra.mxu0 0
        %1777 = vmatprep.subr.bf16.mxu0 0
        %1778 = vmatpush2.bf16.msra.mxu0 0
        %1779 = vmatprep.subr.bf16.mxu0 0
        %1780 = vmatpush2.bf16.msra.mxu0 0
        %1781 = vmatprep.mubr.bf16.mxu0 0
        %1782 = vmatmul.mubr.bf16.gmra.mxu0 %v1744
        %v1783 = vpop.f32.mrf.mxu0
        %v1784 = vadd.f32 0.0, %v1783
        %v1785 = vpop.f32.mrf.mxu0
        %v1786 = vpop.f32.mrf.mxu0
        %v1787 = vpop.f32.mrf.mxu0
        %1788 = vdwg.mxu0
        %v1789 = vpack.c.bf16 %v1646, %v1646
        %v1790 = vpack.c.bf16 %v1692, %v1692
        %v1791 = vpack.c.bf16 %v1738, %v1738
        %v1792 = vpack.c.bf16 %v1784, %v1784
        %v1793 = vld [vmem:[%s8] sm:$0xf]
        %v1794 = vld [vmem:[%s8 + $0x4] sm:$0xf]
        %v1795 = vld [vmem:[%s8 + $0x8] sm:$0xf]
        %v1796 = vld [vmem:[%s8 + $0xc] sm:$0xf]
        %v1798 = vsel %vm1367, %v1789, 0
        %v1801 = vsel %vm1607, %v1793, 0
        %1803 = vmatprep.subr.bf16.mxu0 0
        %1804 = vmatpush1.bf16.msra.mxu0 0
        %1805 = vmatprep.subr.bf16.mxu0 0
        %1806 = vmatpush1.bf16.msra.mxu0 0
        %1807 = vmatprep.subr.bf16.mxu0 0
        %1808 = vmatpush1.bf16.msra.mxu0 0
        %1809 = vmatprep.subr.bf16.mxu0 0
        %1810 = vmatpush1.bf16.msra.mxu0 0
        %1811 = vmatprep.subr.bf16.mxu0 0
        %1812 = vmatpush1.bf16.msra.mxu0 0
        %1813 = vmatprep.subr.bf16.mxu0 0
        %1814 = vmatpush1.bf16.msra.mxu0 0
        %1815 = vmatprep.subr.bf16.mxu0 0
        %1816 = vmatpush1.bf16.msra.mxu0 0
        %1817 = vmatprep.subr.bf16.mxu0 0
        %1818 = vmatpush1.bf16.msra.mxu0 %v1801
        %1819 = vmatprep.subr.bf16.mxu0 0
        %1820 = vmatpush2.bf16.msra.mxu0 0
        %1821 = vmatprep.subr.bf16.mxu0 0
        %1822 = vmatpush2.bf16.msra.mxu0 0
        %1823 = vmatprep.subr.bf16.mxu0 0
        %1824 = vmatpush2.bf16.msra.mxu0 0
        %1825 = vmatprep.subr.bf16.mxu0 0
        %1826 = vmatpush2.bf16.msra.mxu0 0
        %1827 = vmatprep.subr.bf16.mxu0 0
        %1828 = vmatpush2.bf16.msra.mxu0 0
        %1829 = vmatprep.subr.bf16.mxu0 0
        %1830 = vmatpush2.bf16.msra.mxu0 0
        %1831 = vmatprep.subr.bf16.mxu0 0
        %1832 = vmatpush2.bf16.msra.mxu0 0
        %1833 = vmatprep.subr.bf16.mxu0 0
        %1834 = vmatpush2.bf16.msra.mxu0 0
        %1835 = vmatprep.mubr.bf16.mxu0 0
        %1836 = vmatmul.mubr.bf16.gmra.mxu0 %v1798
        %v1837 = vpop.f32.mrf.mxu0
        %v1838 = vadd.f32 0.0, %v1837
        %v1839 = vpop.f32.mrf.mxu0
        %v1840 = vpop.f32.mrf.mxu0
        %v1841 = vpop.f32.mrf.mxu0
        %1842 = vdwg.mxu0
        %v1844 = vsel %vm1367, %v1790, 0
        %v1847 = vsel %vm1607, %v1794, 0
        %1849 = vmatprep.subr.bf16.mxu0 0
        %1850 = vmatpush1.bf16.msra.mxu0 0
        %1851 = vmatprep.subr.bf16.mxu0 0
        %1852 = vmatpush1.bf16.msra.mxu0 0
        %1853 = vmatprep.subr.bf16.mxu0 0
        %1854 = vmatpush1.bf16.msra.mxu0 0
        %1855 = vmatprep.subr.bf16.mxu0 0
        %1856 = vmatpush1.bf16.msra.mxu0 0
        %1857 = vmatprep.subr.bf16.mxu0 0
        %1858 = vmatpush1.bf16.msra.mxu0 0
        %1859 = vmatprep.subr.bf16.mxu0 0
        %1860 = vmatpush1.bf16.msra.mxu0 0
        %1861 = vmatprep.subr.bf16.mxu0 0
        %1862 = vmatpush1.bf16.msra.mxu0 0
        %1863 = vmatprep.subr.bf16.mxu0 0
        %1864 = vmatpush1.bf16.msra.mxu0 %v1847
        %1865 = vmatprep.subr.bf16.mxu0 0
        %1866 = vmatpush2.bf16.msra.mxu0 0
        %1867 = vmatprep.subr.bf16.mxu0 0
        %1868 = vmatpush2.bf16.msra.mxu0 0
        %1869 = vmatprep.subr.bf16.mxu0 0
        %1870 = vmatpush2.bf16.msra.mxu0 0
        %1871 = vmatprep.subr.bf16.mxu0 0
        %1872 = vmatpush2.bf16.msra.mxu0 0
        %1873 = vmatprep.subr.bf16.mxu0 0
        %1874 = vmatpush2.bf16.msra.mxu0 0
        %1875 = vmatprep.subr.bf16.mxu0 0
        %1876 = vmatpush2.bf16.msra.mxu0 0
        %1877 = vmatprep.subr.bf16.mxu0 0
        %1878 = vmatpush2.bf16.msra.mxu0 0
        %1879 = vmatprep.subr.bf16.mxu0 0
        %1880 = vmatpush2.bf16.msra.mxu0 0
        %1881 = vmatprep.mubr.bf16.mxu0 0
        %1882 = vmatmul.mubr.bf16.gmra.mxu0 %v1844
        %v1883 = vpop.f32.mrf.mxu0
        %v1884 = vadd.f32 0.0, %v1883
        %v1885 = vpop.f32.mrf.mxu0
        %v1886 = vpop.f32.mrf.mxu0
        %v1887 = vpop.f32.mrf.mxu0
        %1888 = vdwg.mxu0
        %v1890 = vsel %vm1367, %v1791, 0
        %v1893 = vsel %vm1607, %v1795, 0
        %1895 = vmatprep.subr.bf16.mxu0 0
        %1896 = vmatpush1.bf16.msra.mxu0 0
        %1897 = vmatprep.subr.bf16.mxu0 0
        %1898 = vmatpush1.bf16.msra.mxu0 0
        %1899 = vmatprep.subr.bf16.mxu0 0
        %1900 = vmatpush1.bf16.msra.mxu0 0
        %1901 = vmatprep.subr.bf16.mxu0 0
        %1902 = vmatpush1.bf16.msra.mxu0 0
        %1903 = vmatprep.subr.bf16.mxu0 0
        %1904 = vmatpush1.bf16.msra.mxu0 0
        %1905 = vmatprep.subr.bf16.mxu0 0
        %1906 = vmatpush1.bf16.msra.mxu0 0
        %1907 = vmatprep.subr.bf16.mxu0 0
        %1908 = vmatpush1.bf16.msra.mxu0 0
        %1909 = vmatprep.subr.bf16.mxu0 0
        %1910 = vmatpush1.bf16.msra.mxu0 %v1893
        %1911 = vmatprep.subr.bf16.mxu0 0
        %1912 = vmatpush2.bf16.msra.mxu0 0
        %1913 = vmatprep.subr.bf16.mxu0 0
        %1914 = vmatpush2.bf16.msra.mxu0 0
        %1915 = vmatprep.subr.bf16.mxu0 0
        %1916 = vmatpush2.bf16.msra.mxu0 0
        %1917 = vmatprep.subr.bf16.mxu0 0
        %1918 = vmatpush2.bf16.msra.mxu0 0
        %1919 = vmatprep.subr.bf16.mxu0 0
        %1920 = vmatpush2.bf16.msra.mxu0 0
        %1921 = vmatprep.subr.bf16.mxu0 0
        %1922 = vmatpush2.bf16.msra.mxu0 0
        %1923 = vmatprep.subr.bf16.mxu0 0
        %1924 = vmatpush2.bf16.msra.mxu0 0
        %1925 = vmatprep.subr.bf16.mxu0 0
        %1926 = vmatpush2.bf16.msra.mxu0 0
        %1927 = vmatprep.mubr.bf16.mxu0 0
        %1928 = vmatmul.mubr.bf16.gmra.mxu0 %v1890
        %v1929 = vpop.f32.mrf.mxu0
        %v1930 = vadd.f32 0.0, %v1929
        %v1931 = vpop.f32.mrf.mxu0
        %v1932 = vpop.f32.mrf.mxu0
        %v1933 = vpop.f32.mrf.mxu0
        %1934 = vdwg.mxu0
        %v1936 = vsel %vm1367, %v1792, 0
        %v1939 = vsel %vm1607, %v1796, 0
        %1941 = vmatprep.subr.bf16.mxu0 0
        %1942 = vmatpush1.bf16.msra.mxu0 0
        %1943 = vmatprep.subr.bf16.mxu0 0
        %1944 = vmatpush1.bf16.msra.mxu0 0
        %1945 = vmatprep.subr.bf16.mxu0 0
        %1946 = vmatpush1.bf16.msra.mxu0 0
        %1947 = vmatprep.subr.bf16.mxu0 0
        %1948 = vmatpush1.bf16.msra.mxu0 0
        %1949 = vmatprep.subr.bf16.mxu0 0
        %1950 = vmatpush1.bf16.msra.mxu0 0
        %1951 = vmatprep.subr.bf16.mxu0 0
        %1952 = vmatpush1.bf16.msra.mxu0 0
        %1953 = vmatprep.subr.bf16.mxu0 0
        %1954 = vmatpush1.bf16.msra.mxu0 0
        %1955 = vmatprep.subr.bf16.mxu0 0
        %1956 = vmatpush1.bf16.msra.mxu0 %v1939
        %1957 = vmatprep.subr.bf16.mxu0 0
        %1958 = vmatpush2.bf16.msra.mxu0 0
        %1959 = vmatprep.subr.bf16.mxu0 0
        %1960 = vmatpush2.bf16.msra.mxu0 0
        %1961 = vmatprep.subr.bf16.mxu0 0
        %1962 = vmatpush2.bf16.msra.mxu0 0
        %1963 = vmatprep.subr.bf16.mxu0 0
        %1964 = vmatpush2.bf16.msra.mxu0 0
        %1965 = vmatprep.subr.bf16.mxu0 0
        %1966 = vmatpush2.bf16.msra.mxu0 0
        %1967 = vmatprep.subr.bf16.mxu0 0
        %1968 = vmatpush2.bf16.msra.mxu0 0
        %1969 = vmatprep.subr.bf16.mxu0 0
        %1970 = vmatpush2.bf16.msra.mxu0 0
        %1971 = vmatprep.subr.bf16.mxu0 0
        %1972 = vmatpush2.bf16.msra.mxu0 0
        %1973 = vmatprep.mubr.bf16.mxu0 0
        %1974 = vmatmul.mubr.bf16.gmra.mxu0 %v1936
        %v1975 = vpop.f32.mrf.mxu0
        %v1976 = vadd.f32 0.0, %v1975
        %v1977 = vpop.f32.mrf.mxu0
        %v1978 = vpop.f32.mrf.mxu0
        %v1979 = vpop.f32.mrf.mxu0
        %1980 = vdwg.mxu0
        %v1981 = vadd.f32 %v1838, %v1884
        %v1982 = vadd.f32 %v1981, %v1930
        %v1983 = vadd.f32 %v1982, %v1976
        %v1984 = vld [vmem:[%s9] sm:$0x1]
        %v1986 = vlaneseq
        %v1987 = vshrl.u32 %v1986, 7
        %v1988 = vsub.s32 0, %v1987
        %v1989 = vrot.slane %v1984, %v1988
        %v1991 = vadd.f32 %v1983, %v1989
        %v1992 = vadd.f32 %v586, %v1991
        %v1993 = vld [vmem:[%s10] sm:$0x1]
        %v1994 = vld [vmem:[%s11] sm:$0x1]
        %v1995 = vsel %vm645, %v1992, 0.0
        %1996 = vadd.xlane.f32.xlu0 %v1995
        %v1997 = vpop.xlane.xlu0 %1996
        %v1998 = vrcp.pop 32.0
        %v1999 = vmul.f32 %v1997, %v1998
        %v2000 = vsub.f32 %v1992, %v1999
        %v2001 = vmul.f32 %v2000, %v2000
        %v2002 = vsel %vm645, %v2001, 0.0
        %2003 = vadd.xlane.f32.xlu0 %v2002
        %v2004 = vpop.xlane.xlu0 %2003
        %v2005 = vmul.f32 %v2004, %v1998
        %v2006 = vadd.f32 %v2005, 1e-05
        %v2007 = vrsqrt.pop %v2006
        %v2008 = vmul.f32 %v2000, %v2007
        %v2010 = vlaneseq
        %v2011 = vshrl.u32 %v2010, 7
        %v2012 = vsub.s32 0, %v2011
        %v2013 = vrot.slane %v1993, %v2012
        %v2015 = vmul.f32 %v2008, %v2013
        %v2017 = vlaneseq
        %v2018 = vshrl.u32 %v2017, 7
        %v2019 = vsub.s32 0, %v2018
        %v2020 = vrot.slane %v1994, %v2019
        %v2022 = vadd.f32 %v2015, %v2020
        %v2023 = vpack.c.bf16 %v2022, %v2022
        %v2024 = vld [vmem:[%s12] sm:$0xf]
        %v2025 = vld [vmem:[%s12 + $0x4] sm:$0xf]
        %v2026 = vld [vmem:[%s12 + $0x8] sm:$0xf]
        %v2027 = vld [vmem:[%s12 + $0xc] sm:$0xf]
        %v2028 = vld [vmem:[%s13] sm:$0x1]
        %v2030 = vlaneseq
        %v2031 = vshrl.u32 %v2030, 7
        %v2032 = vsub.s32 0, %v2031
        %v2033 = vrot.slane %v2028, %v2032
        %v2039 = vunpack.c.l.b16 %v2024
        %v2040 = vunpack.c.l.b16 %v2025
        %v2041 = vunpack.c.l.b16 %v2026
        %v2042 = vunpack.c.l.b16 %v2027
        %v2043 = vpack.c.b16 %v2040, %v2039
        %v2044 = vpack.c.b16 %v2042, %v2041
        %v2048 = vsel %vm645, %v2023, 0
        %2050 = vmatprep.subr.bf16.mxu0 0
        %2051 = vmatpush1.bf16.msra.mxu0 0
        %2052 = vmatprep.subr.bf16.mxu0 0
        %2053 = vmatpush1.bf16.msra.mxu0 0
        %2054 = vmatprep.subr.bf16.mxu0 0
        %2055 = vmatpush1.bf16.msra.mxu0 0
        %2056 = vmatprep.subr.bf16.mxu0 0
        %2057 = vmatpush1.bf16.msra.mxu0 0
        %2058 = vmatprep.subr.bf16.mxu0 0
        %2059 = vmatpush1.bf16.msra.mxu0 0
        %2060 = vmatprep.subr.bf16.mxu0 0
        %2061 = vmatpush1.bf16.msra.mxu0 0
        %2062 = vmatprep.subr.bf16.mxu0 0
        %2063 = vmatpush1.bf16.msra.mxu0 %v2044
        %2064 = vmatprep.subr.bf16.mxu0 0
        %2065 = vmatpush1.bf16.msra.mxu0 %v2043
        %2066 = vmatprep.subr.bf16.mxu0 0
        %2067 = vmatpush2.bf16.msra.mxu0 0
        %2068 = vmatprep.subr.bf16.mxu0 0
        %2069 = vmatpush2.bf16.msra.mxu0 0
        %2070 = vmatprep.subr.bf16.mxu0 0
        %2071 = vmatpush2.bf16.msra.mxu0 0
        %2072 = vmatprep.subr.bf16.mxu0 0
        %2073 = vmatpush2.bf16.msra.mxu0 0
        %2074 = vmatprep.subr.bf16.mxu0 0
        %2075 = vmatpush2.bf16.msra.mxu0 0
        %2076 = vmatprep.subr.bf16.mxu0 0
        %2077 = vmatpush2.bf16.msra.mxu0 0
        %2078 = vmatprep.subr.bf16.mxu0 0
        %2079 = vmatpush2.bf16.msra.mxu0 0
        %2080 = vmatprep.subr.bf16.mxu0 0
        %2081 = vmatpush2.bf16.msra.mxu0 0
        %2082 = vmatprep.mubr.bf16.mxu0 0
        %2083 = vmatmul.mubr.bf16.gmra.mxu0 %v2048
        %v2084 = vpop.f32.mrf.mxu0
        %v2085 = vadd.f32 %v2033, %v2084
        %v2086 = vpop.f32.mrf.mxu0
        %v2087 = vpop.f32.mrf.mxu0
        %v2088 = vpop.f32.mrf.mxu0
        %2089 = vdwg.mxu0
        %v2090 = vmax.f32 %v2085, 0.0
        %v2091 = vpack.c.bf16 %v2090, %v2090
        %v2092 = vld [vmem:[%s14] sm:$0xf]
        %v2093 = vld [vmem:[%s14 + $0x4] sm:$0xf]
        %v2094 = vld [vmem:[%s14 + $0x8] sm:$0xf]
        %v2095 = vld [vmem:[%s14 + $0xc] sm:$0xf]
        %v2096 = vld [vmem:[%s14 + $0x10] sm:$0xf]
        %v2097 = vld [vmem:[%s14 + $0x14] sm:$0xf]
        %v2098 = vld [vmem:[%s14 + $0x18] sm:$0xf]
        %v2099 = vld [vmem:[%s14 + $0x1c] sm:$0xf]
        %v2100 = vld [vmem:[%s15] sm:$0x1]
        %v2102 = vlaneseq
        %v2103 = vshrl.u32 %v2102, 7
        %v2104 = vsub.s32 0, %v2103
        %v2105 = vrot.slane %v2100, %v2104
        %v2115 = vunpack.c.l.b16 %v2092
        %v2116 = vunpack.c.l.b16 %v2093
        %v2117 = vunpack.c.l.b16 %v2094
        %v2118 = vunpack.c.l.b16 %v2095
        %v2119 = vunpack.c.l.b16 %v2096
        %v2120 = vunpack.c.l.b16 %v2097
        %v2121 = vunpack.c.l.b16 %v2098
        %v2122 = vunpack.c.l.b16 %v2099
        %v2123 = vpack.c.b16 %v2116, %v2115
        %v2124 = vpack.c.b16 %v2118, %v2117
        %v2125 = vpack.c.b16 %v2120, %v2119
        %v2126 = vpack.c.b16 %v2122, %v2121
        %vm2131 = vcmask 523264
        %v2133 = vsel %vm2131, %v2091, 0
        %2135 = vmatprep.subr.bf16.mxu0 0
        %2136 = vmatpush1.bf16.msra.mxu0 0
        %2137 = vmatprep.subr.bf16.mxu0 0
        %2138 = vmatpush1.bf16.msra.mxu0 0
        %2139 = vmatprep.subr.bf16.mxu0 0
        %2140 = vmatpush1.bf16.msra.mxu0 0
        %2141 = vmatprep.subr.bf16.mxu0 0
        %2142 = vmatpush1.bf16.msra.mxu0 0
        %2143 = vmatprep.subr.bf16.mxu0 0
        %2144 = vmatpush1.bf16.msra.mxu0 %v2126
        %2145 = vmatprep.subr.bf16.mxu0 0
        %2146 = vmatpush1.bf16.msra.mxu0 %v2125
        %2147 = vmatprep.subr.bf16.mxu0 0
        %2148 = vmatpush1.bf16.msra.mxu0 %v2124
        %2149 = vmatprep.subr.bf16.mxu0 0
        %2150 = vmatpush1.bf16.msra.mxu0 %v2123
        %2151 = vmatprep.subr.bf16.mxu0 0
        %2152 = vmatpush2.bf16.msra.mxu0 0
        %2153 = vmatprep.subr.bf16.mxu0 0
        %2154 = vmatpush2.bf16.msra.mxu0 0
        %2155 = vmatprep.subr.bf16.mxu0 0
        %2156 = vmatpush2.bf16.msra.mxu0 0
        %2157 = vmatprep.subr.bf16.mxu0 0
        %2158 = vmatpush2.bf16.msra.mxu0 0
        %2159 = vmatprep.subr.bf16.mxu0 0
        %2160 = vmatpush2.bf16.msra.mxu0 0
        %2161 = vmatprep.subr.bf16.mxu0 0
        %2162 = vmatpush2.bf16.msra.mxu0 0
        %2163 = vmatprep.subr.bf16.mxu0 0
        %2164 = vmatpush2.bf16.msra.mxu0 0
        %2165 = vmatprep.subr.bf16.mxu0 0
        %2166 = vmatpush2.bf16.msra.mxu0 0
        %2167 = vmatprep.mubr.bf16.mxu0 0
        %2168 = vmatmul.mubr.bf16.gmra.mxu0 %v2133
        %v2169 = vpop.f32.mrf.mxu0
        %v2170 = vadd.f32 %v2105, %v2169
        %v2171 = vpop.f32.mrf.mxu0
        %v2172 = vpop.f32.mrf.mxu0
        %v2173 = vpop.f32.mrf.mxu0
        %2174 = vdwg.mxu0
        %v2175 = vadd.f32 %v2022, %v2170
        %v2176 = vld [vmem:[%s16] sm:$0x1]
        %v2177 = vld [vmem:[%s17] sm:$0x1]
        %v2178 = vsel %vm645, %v2175, 0.0
        %2179 = vadd.xlane.f32.xlu0 %v2178
        %v2180 = vpop.xlane.xlu0 %2179
        %v2181 = vmul.f32 %v2180, %v1998
        %v2182 = vsub.f32 %v2175, %v2181
        %v2183 = vmul.f32 %v2182, %v2182
        %v2184 = vsel %vm645, %v2183, 0.0
        %2185 = vadd.xlane.f32.xlu0 %v2184
        %v2186 = vpop.xlane.xlu0 %2185
        %v2187 = vmul.f32 %v2186, %v1998
        %v2188 = vadd.f32 %v2187, 1e-05
        %v2189 = vrsqrt.pop %v2188
        %v2190 = vmul.f32 %v2182, %v2189
        %v2192 = vlaneseq
        %v2193 = vshrl.u32 %v2192, 7
        %v2194 = vsub.s32 0, %v2193
        %v2195 = vrot.slane %v2176, %v2194
        %v2197 = vmul.f32 %v2190, %v2195
        %v2199 = vlaneseq
        %v2200 = vshrl.u32 %v2199, 7
        %v2201 = vsub.s32 0, %v2200
        %v2202 = vrot.slane %v2177, %v2201
        %v2204 = vadd.f32 %v2197, %v2202
        %v2205 = vpack.c.bf16 %v2204, %v2204
        %s2206 = scalar_lea.vmem %s2, 64
        %v2207 = vld [vmem:[%s2206] sm:$0xf]
        %v2208 = vld [vmem:[%s2206 + $0x4] sm:$0xf]
        %v2209 = vld [vmem:[%s2206 + $0x8] sm:$0xf]
        %v2210 = vld [vmem:[%s2206 + $0xc] sm:$0xf]
        %v2211 = vld [vmem:[%s2206 + $0x10] sm:$0xf]
        %v2212 = vld [vmem:[%s2206 + $0x14] sm:$0xf]
        %v2213 = vld [vmem:[%s2206 + $0x18] sm:$0xf]
        %v2214 = vld [vmem:[%s2206 + $0x1c] sm:$0xf]
        %v2215 = vld [vmem:[%s2206 + $0x20] sm:$0xf]
        %v2216 = vld [vmem:[%s2206 + $0x24] sm:$0xf]
        %v2217 = vld [vmem:[%s2206 + $0x28] sm:$0xf]
        %v2218 = vld [vmem:[%s2206 + $0x2c] sm:$0xf]
        %v2219 = vld [vmem:[%s2206 + $0x30] sm:$0xf]
        %v2220 = vld [vmem:[%s2206 + $0x34] sm:$0xf]
        %v2221 = vld [vmem:[%s2206 + $0x38] sm:$0xf]
        %v2222 = vld [vmem:[%s2206 + $0x3c] sm:$0xf]
        %s2223 = scalar_lea.vmem %s3, 4
        %v2224 = vld [vmem:[%s2223] sm:$0x1]
        %v2225 = vld [vmem:[%s2223 + $0x1] sm:$0x1]
        %v2226 = vld [vmem:[%s2223 + $0x2] sm:$0x1]
        %v2227 = vld [vmem:[%s2223 + $0x3] sm:$0x1]
        %v2232 = vlaneseq
        %v2233 = vshrl.u32 %v2232, 7
        %v2234 = vsub.s32 0, %v2233
        %v2235 = vrot.slane %v2224, %v2234
        %v2236 = vlaneseq
        %v2237 = vshrl.u32 %v2236, 7
        %v2238 = vsub.s32 0, %v2237
        %v2239 = vrot.slane %v2225, %v2238
        %v2240 = vlaneseq
        %v2241 = vshrl.u32 %v2240, 7
        %v2242 = vsub.s32 0, %v2241
        %v2243 = vrot.slane %v2226, %v2242
        %v2244 = vlaneseq
        %v2245 = vshrl.u32 %v2244, 7
        %v2246 = vsub.s32 0, %v2245
        %v2247 = vrot.slane %v2227, %v2246
        %v2256 = vunpack.c.l.b16 %v2207
        %v2257 = vunpack.c.l.b16 %v2208
        %v2258 = vunpack.c.l.b16 %v2209
        %v2259 = vunpack.c.l.b16 %v2210
        %v2260 = vpack.c.b16 %v2257, %v2256
        %v2261 = vpack.c.b16 %v2259, %v2258
        %v2265 = vsel %vm645, %v2205, 0
        %2267 = vmatprep.subr.bf16.mxu0 0
        %2268 = vmatpush1.bf16.msra.mxu0 0
        %2269 = vmatprep.subr.bf16.mxu0 0
        %2270 = vmatpush1.bf16.msra.mxu0 0
        %2271 = vmatprep.subr.bf16.mxu0 0
        %2272 = vmatpush1.bf16.msra.mxu0 0
        %2273 = vmatprep.subr.bf16.mxu0 0
        %2274 = vmatpush1.bf16.msra.mxu0 0
        %2275 = vmatprep.subr.bf16.mxu0 0
        %2276 = vmatpush1.bf16.msra.mxu0 0
        %2277 = vmatprep.subr.bf16.mxu0 0
        %2278 = vmatpush1.bf16.msra.mxu0 0
        %2279 = vmatprep.subr.bf16.mxu0 0
        %2280 = vmatpush1.bf16.msra.mxu0 %v2261
        %2281 = vmatprep.subr.bf16.mxu0 0
        %2282 = vmatpush1.bf16.msra.mxu0 %v2260
        %2283 = vmatprep.subr.bf16.mxu0 0
        %2284 = vmatpush2.bf16.msra.mxu0 0
        %2285 = vmatprep.subr.bf16.mxu0 0
        %2286 = vmatpush2.bf16.msra.mxu0 0
        %2287 = vmatprep.subr.bf16.mxu0 0
        %2288 = vmatpush2.bf16.msra.mxu0 0
        %2289 = vmatprep.subr.bf16.mxu0 0
        %2290 = vmatpush2.bf16.msra.mxu0 0
        %2291 = vmatprep.subr.bf16.mxu0 0
        %2292 = vmatpush2.bf16.msra.mxu0 0
        %2293 = vmatprep.subr.bf16.mxu0 0
        %2294 = vmatpush2.bf16.msra.mxu0 0
        %2295 = vmatprep.subr.bf16.mxu0 0
        %2296 = vmatpush2.bf16.msra.mxu0 0
        %2297 = vmatprep.subr.bf16.mxu0 0
        %2298 = vmatpush2.bf16.msra.mxu0 0
        %2299 = vmatprep.mubr.bf16.mxu0 0
        %2300 = vmatmul.mubr.bf16.gmra.mxu0 %v2265
        %v2301 = vpop.f32.mrf.mxu0
        %v2302 = vadd.f32 %v2235, %v2301
        %v2303 = vpop.f32.mrf.mxu0
        %v2304 = vpop.f32.mrf.mxu0
        %v2305 = vpop.f32.mrf.mxu0
        %2306 = vdwg.mxu0
        %v2311 = vunpack.c.l.b16 %v2211
        %v2312 = vunpack.c.l.b16 %v2212
        %v2313 = vunpack.c.l.b16 %v2213
        %v2314 = vunpack.c.l.b16 %v2214
        %v2315 = vpack.c.b16 %v2312, %v2311
        %v2316 = vpack.c.b16 %v2314, %v2313
        %2319 = vmatprep.subr.bf16.mxu0 0
        %2320 = vmatpush1.bf16.msra.mxu0 0
        %2321 = vmatprep.subr.bf16.mxu0 0
        %2322 = vmatpush1.bf16.msra.mxu0 0
        %2323 = vmatprep.subr.bf16.mxu0 0
        %2324 = vmatpush1.bf16.msra.mxu0 0
        %2325 = vmatprep.subr.bf16.mxu0 0
        %2326 = vmatpush1.bf16.msra.mxu0 0
        %2327 = vmatprep.subr.bf16.mxu0 0
        %2328 = vmatpush1.bf16.msra.mxu0 0
        %2329 = vmatprep.subr.bf16.mxu0 0
        %2330 = vmatpush1.bf16.msra.mxu0 0
        %2331 = vmatprep.subr.bf16.mxu0 0
        %2332 = vmatpush1.bf16.msra.mxu0 %v2316
        %2333 = vmatprep.subr.bf16.mxu0 0
        %2334 = vmatpush1.bf16.msra.mxu0 %v2315
        %2335 = vmatprep.subr.bf16.mxu0 0
        %2336 = vmatpush2.bf16.msra.mxu0 0
        %2337 = vmatprep.subr.bf16.mxu0 0
        %2338 = vmatpush2.bf16.msra.mxu0 0
        %2339 = vmatprep.subr.bf16.mxu0 0
        %2340 = vmatpush2.bf16.msra.mxu0 0
        %2341 = vmatprep.subr.bf16.mxu0 0
        %2342 = vmatpush2.bf16.msra.mxu0 0
        %2343 = vmatprep.subr.bf16.mxu0 0
        %2344 = vmatpush2.bf16.msra.mxu0 0
        %2345 = vmatprep.subr.bf16.mxu0 0
        %2346 = vmatpush2.bf16.msra.mxu0 0
        %2347 = vmatprep.subr.bf16.mxu0 0
        %2348 = vmatpush2.bf16.msra.mxu0 0
        %2349 = vmatprep.subr.bf16.mxu0 0
        %2350 = vmatpush2.bf16.msra.mxu0 0
        %2351 = vmatprep.mubr.bf16.mxu0 0
        %2352 = vmatmul.mubr.bf16.gmra.mxu0 %v2265
        %v2353 = vpop.f32.mrf.mxu0
        %v2354 = vadd.f32 %v2239, %v2353
        %v2355 = vpop.f32.mrf.mxu0
        %v2356 = vpop.f32.mrf.mxu0
        %v2357 = vpop.f32.mrf.mxu0
        %2358 = vdwg.mxu0
        %v2363 = vunpack.c.l.b16 %v2215
        %v2364 = vunpack.c.l.b16 %v2216
        %v2365 = vunpack.c.l.b16 %v2217
        %v2366 = vunpack.c.l.b16 %v2218
        %v2367 = vpack.c.b16 %v2364, %v2363
        %v2368 = vpack.c.b16 %v2366, %v2365
        %2371 = vmatprep.subr.bf16.mxu0 0
        %2372 = vmatpush1.bf16.msra.mxu0 0
        %2373 = vmatprep.subr.bf16.mxu0 0
        %2374 = vmatpush1.bf16.msra.mxu0 0
        %2375 = vmatprep.subr.bf16.mxu0 0
        %2376 = vmatpush1.bf16.msra.mxu0 0
        %2377 = vmatprep.subr.bf16.mxu0 0
        %2378 = vmatpush1.bf16.msra.mxu0 0
        %2379 = vmatprep.subr.bf16.mxu0 0
        %2380 = vmatpush1.bf16.msra.mxu0 0
        %2381 = vmatprep.subr.bf16.mxu0 0
        %2382 = vmatpush1.bf16.msra.mxu0 0
        %2383 = vmatprep.subr.bf16.mxu0 0
        %2384 = vmatpush1.bf16.msra.mxu0 %v2368
        %2385 = vmatprep.subr.bf16.mxu0 0
        %2386 = vmatpush1.bf16.msra.mxu0 %v2367
        %2387 = vmatprep.subr.bf16.mxu0 0
        %2388 = vmatpush2.bf16.msra.mxu0 0
        %2389 = vmatprep.subr.bf16.mxu0 0
        %2390 = vmatpush2.bf16.msra.mxu0 0
        %2391 = vmatprep.subr.bf16.mxu0 0
        %2392 = vmatpush2.bf16.msra.mxu0 0
        %2393 = vmatprep.subr.bf16.mxu0 0
        %2394 = vmatpush2.bf16.msra.mxu0 0
        %2395 = vmatprep.subr.bf16.mxu0 0
        %2396 = vmatpush2.bf16.msra.mxu0 0
        %2397 = vmatprep.subr.bf16.mxu0 0
        %2398 = vmatpush2.bf16.msra.mxu0 0
        %2399 = vmatprep.subr.bf16.mxu0 0
        %2400 = vmatpush2.bf16.msra.mxu0 0
        %2401 = vmatprep.subr.bf16.mxu0 0
        %2402 = vmatpush2.bf16.msra.mxu0 0
        %2403 = vmatprep.mubr.bf16.mxu0 0
        %2404 = vmatmul.mubr.bf16.gmra.mxu0 %v2265
        %v2405 = vpop.f32.mrf.mxu0
        %v2406 = vadd.f32 %v2243, %v2405
        %v2407 = vpop.f32.mrf.mxu0
        %v2408 = vpop.f32.mrf.mxu0
        %v2409 = vpop.f32.mrf.mxu0
        %2410 = vdwg.mxu0
        %v2415 = vunpack.c.l.b16 %v2219
        %v2416 = vunpack.c.l.b16 %v2220
        %v2417 = vunpack.c.l.b16 %v2221
        %v2418 = vunpack.c.l.b16 %v2222
        %v2419 = vpack.c.b16 %v2416, %v2415
        %v2420 = vpack.c.b16 %v2418, %v2417
        %2423 = vmatprep.subr.bf16.mxu0 0
        %2424 = vmatpush1.bf16.msra.mxu0 0
        %2425 = vmatprep.subr.bf16.mxu0 0
        %2426 = vmatpush1.bf16.msra.mxu0 0
        %2427 = vmatprep.subr.bf16.mxu0 0
        %2428 = vmatpush1.bf16.msra.mxu0 0
        %2429 = vmatprep.subr.bf16.mxu0 0
        %2430 = vmatpush1.bf16.msra.mxu0 0
        %2431 = vmatprep.subr.bf16.mxu0 0
        %2432 = vmatpush1.bf16.msra.mxu0 0
        %2433 = vmatprep.subr.bf16.mxu0 0
        %2434 = vmatpush1.bf16.msra.mxu0 0
        %2435 = vmatprep.subr.bf16.mxu0 0
        %2436 = vmatpush1.bf16.msra.mxu0 %v2420
        %2437 = vmatprep.subr.bf16.mxu0 0
        %2438 = vmatpush1.bf16.msra.mxu0 %v2419
        %2439 = vmatprep.subr.bf16.mxu0 0
        %2440 = vmatpush2.bf16.msra.mxu0 0
        %2441 = vmatprep.subr.bf16.mxu0 0
        %2442 = vmatpush2.bf16.msra.mxu0 0
        %2443 = vmatprep.subr.bf16.mxu0 0
        %2444 = vmatpush2.bf16.msra.mxu0 0
        %2445 = vmatprep.subr.bf16.mxu0 0
        %2446 = vmatpush2.bf16.msra.mxu0 0
        %2447 = vmatprep.subr.bf16.mxu0 0
        %2448 = vmatpush2.bf16.msra.mxu0 0
        %2449 = vmatprep.subr.bf16.mxu0 0
        %2450 = vmatpush2.bf16.msra.mxu0 0
        %2451 = vmatprep.subr.bf16.mxu0 0
        %2452 = vmatpush2.bf16.msra.mxu0 0
        %2453 = vmatprep.subr.bf16.mxu0 0
        %2454 = vmatpush2.bf16.msra.mxu0 0
        %2455 = vmatprep.mubr.bf16.mxu0 0
        %2456 = vmatmul.mubr.bf16.gmra.mxu0 %v2265
        %v2457 = vpop.f32.mrf.mxu0
        %v2458 = vadd.f32 %v2247, %v2457
        %v2459 = vpop.f32.mrf.mxu0
        %v2460 = vpop.f32.mrf.mxu0
        %v2461 = vpop.f32.mrf.mxu0
        %2462 = vdwg.mxu0
        %v2463 = vmul.f32 %v2302, 0.35355338
        %v2464 = vmul.f32 %v2354, 0.35355338
        %v2465 = vmul.f32 %v2406, 0.35355338
        %v2466 = vmul.f32 %v2458, 0.35355338
        %s2467 = scalar_lea.vmem %s4, 64
        %v2468 = vld [vmem:[%s2467] sm:$0xf]
        %v2469 = vld [vmem:[%s2467 + $0x4] sm:$0xf]
        %v2470 = vld [vmem:[%s2467 + $0x8] sm:$0xf]
        %v2471 = vld [vmem:[%s2467 + $0xc] sm:$0xf]
        %v2472 = vld [vmem:[%s2467 + $0x10] sm:$0xf]
        %v2473 = vld [vmem:[%s2467 + $0x14] sm:$0xf]
        %v2474 = vld [vmem:[%s2467 + $0x18] sm:$0xf]
        %v2475 = vld [vmem:[%s2467 + $0x1c] sm:$0xf]
        %v2476 = vld [vmem:[%s2467 + $0x20] sm:$0xf]
        %v2477 = vld [vmem:[%s2467 + $0x24] sm:$0xf]
        %v2478 = vld [vmem:[%s2467 + $0x28] sm:$0xf]
        %v2479 = vld [vmem:[%s2467 + $0x2c] sm:$0xf]
        %v2480 = vld [vmem:[%s2467 + $0x30] sm:$0xf]
        %v2481 = vld [vmem:[%s2467 + $0x34] sm:$0xf]
        %v2482 = vld [vmem:[%s2467 + $0x38] sm:$0xf]
        %v2483 = vld [vmem:[%s2467 + $0x3c] sm:$0xf]
        %s2484 = scalar_lea.vmem %s5, 4
        %v2485 = vld [vmem:[%s2484] sm:$0x1]
        %v2486 = vld [vmem:[%s2484 + $0x1] sm:$0x1]
        %v2487 = vld [vmem:[%s2484 + $0x2] sm:$0x1]
        %v2488 = vld [vmem:[%s2484 + $0x3] sm:$0x1]
        %v2493 = vlaneseq
        %v2494 = vshrl.u32 %v2493, 7
        %v2495 = vsub.s32 0, %v2494
        %v2496 = vrot.slane %v2485, %v2495
        %v2497 = vlaneseq
        %v2498 = vshrl.u32 %v2497, 7
        %v2499 = vsub.s32 0, %v2498
        %v2500 = vrot.slane %v2486, %v2499
        %v2501 = vlaneseq
        %v2502 = vshrl.u32 %v2501, 7
        %v2503 = vsub.s32 0, %v2502
        %v2504 = vrot.slane %v2487, %v2503
        %v2505 = vlaneseq
        %v2506 = vshrl.u32 %v2505, 7
        %v2507 = vsub.s32 0, %v2506
        %v2508 = vrot.slane %v2488, %v2507
        %v2517 = vunpack.c.l.b16 %v2468
        %v2518 = vunpack.c.l.b16 %v2469
        %v2519 = vunpack.c.l.b16 %v2470
        %v2520 = vunpack.c.l.b16 %v2471
        %v2521 = vpack.c.b16 %v2518, %v2517
        %v2522 = vpack.c.b16 %v2520, %v2519
        %2525 = vmatprep.subr.bf16.mxu0 0
        %2526 = vmatpush1.bf16.msra.mxu0 0
        %2527 = vmatprep.subr.bf16.mxu0 0
        %2528 = vmatpush1.bf16.msra.mxu0 0
        %2529 = vmatprep.subr.bf16.mxu0 0
        %2530 = vmatpush1.bf16.msra.mxu0 0
        %2531 = vmatprep.subr.bf16.mxu0 0
        %2532 = vmatpush1.bf16.msra.mxu0 0
        %2533 = vmatprep.subr.bf16.mxu0 0
        %2534 = vmatpush1.bf16.msra.mxu0 0
        %2535 = vmatprep.subr.bf16.mxu0 0
        %2536 = vmatpush1.bf16.msra.mxu0 0
        %2537 = vmatprep.subr.bf16.mxu0 0
        %2538 = vmatpush1.bf16.msra.mxu0 %v2522
        %2539 = vmatprep.subr.bf16.mxu0 0
        %2540 = vmatpush1.bf16.msra.mxu0 %v2521
        %2541 = vmatprep.subr.bf16.mxu0 0
        %2542 = vmatpush2.bf16.msra.mxu0 0
        %2543 = vmatprep.subr.bf16.mxu0 0
        %2544 = vmatpush2.bf16.msra.mxu0 0
        %2545 = vmatprep.subr.bf16.mxu0 0
        %2546 = vmatpush2.bf16.msra.mxu0 0
        %2547 = vmatprep.subr.bf16.mxu0 0
        %2548 = vmatpush2.bf16.msra.mxu0 0
        %2549 = vmatprep.subr.bf16.mxu0 0
        %2550 = vmatpush2.bf16.msra.mxu0 0
        %2551 = vmatprep.subr.bf16.mxu0 0
        %2552 = vmatpush2.bf16.msra.mxu0 0
        %2553 = vmatprep.subr.bf16.mxu0 0
        %2554 = vmatpush2.bf16.msra.mxu0 0
        %2555 = vmatprep.subr.bf16.mxu0 0
        %2556 = vmatpush2.bf16.msra.mxu0 0
        %2557 = vmatprep.mubr.bf16.mxu0 0
        %2558 = vmatmul.mubr.bf16.gmra.mxu0 %v2265
        %v2559 = vpop.f32.mrf.mxu0
        %v2560 = vadd.f32 %v2496, %v2559
        %v2561 = vpop.f32.mrf.mxu0
        %v2562 = vpop.f32.mrf.mxu0
        %v2563 = vpop.f32.mrf.mxu0
        %2564 = vdwg.mxu0
        %v2569 = vunpack.c.l.b16 %v2472
        %v2570 = vunpack.c.l.b16 %v2473
        %v2571 = vunpack.c.l.b16 %v2474
        %v2572 = vunpack.c.l.b16 %v2475
        %v2573 = vpack.c.b16 %v2570, %v2569
        %v2574 = vpack.c.b16 %v2572, %v2571
        %2577 = vmatprep.subr.bf16.mxu0 0
        %2578 = vmatpush1.bf16.msra.mxu0 0
        %2579 = vmatprep.subr.bf16.mxu0 0
        %2580 = vmatpush1.bf16.msra.mxu0 0
        %2581 = vmatprep.subr.bf16.mxu0 0
        %2582 = vmatpush1.bf16.msra.mxu0 0
        %2583 = vmatprep.subr.bf16.mxu0 0
        %2584 = vmatpush1.bf16.msra.mxu0 0
        %2585 = vmatprep.subr.bf16.mxu0 0
        %2586 = vmatpush1.bf16.msra.mxu0 0
        %2587 = vmatprep.subr.bf16.mxu0 0
        %2588 = vmatpush1.bf16.msra.mxu0 0
        %2589 = vmatprep.subr.bf16.mxu0 0
        %2590 = vmatpush1.bf16.msra.mxu0 %v2574
        %2591 = vmatprep.subr.bf16.mxu0 0
        %2592 = vmatpush1.bf16.msra.mxu0 %v2573
        %2593 = vmatprep.subr.bf16.mxu0 0
        %2594 = vmatpush2.bf16.msra.mxu0 0
        %2595 = vmatprep.subr.bf16.mxu0 0
        %2596 = vmatpush2.bf16.msra.mxu0 0
        %2597 = vmatprep.subr.bf16.mxu0 0
        %2598 = vmatpush2.bf16.msra.mxu0 0
        %2599 = vmatprep.subr.bf16.mxu0 0
        %2600 = vmatpush2.bf16.msra.mxu0 0
        %2601 = vmatprep.subr.bf16.mxu0 0
        %2602 = vmatpush2.bf16.msra.mxu0 0
        %2603 = vmatprep.subr.bf16.mxu0 0
        %2604 = vmatpush2.bf16.msra.mxu0 0
        %2605 = vmatprep.subr.bf16.mxu0 0
        %2606 = vmatpush2.bf16.msra.mxu0 0
        %2607 = vmatprep.subr.bf16.mxu0 0
        %2608 = vmatpush2.bf16.msra.mxu0 0
        %2609 = vmatprep.mubr.bf16.mxu0 0
        %2610 = vmatmul.mubr.bf16.gmra.mxu0 %v2265
        %v2611 = vpop.f32.mrf.mxu0
        %v2612 = vadd.f32 %v2500, %v2611
        %v2613 = vpop.f32.mrf.mxu0
        %v2614 = vpop.f32.mrf.mxu0
        %v2615 = vpop.f32.mrf.mxu0
        %2616 = vdwg.mxu0
        %v2621 = vunpack.c.l.b16 %v2476
        %v2622 = vunpack.c.l.b16 %v2477
        %v2623 = vunpack.c.l.b16 %v2478
        %v2624 = vunpack.c.l.b16 %v2479
        %v2625 = vpack.c.b16 %v2622, %v2621
        %v2626 = vpack.c.b16 %v2624, %v2623
        %2629 = vmatprep.subr.bf16.mxu0 0
        %2630 = vmatpush1.bf16.msra.mxu0 0
        %2631 = vmatprep.subr.bf16.mxu0 0
        %2632 = vmatpush1.bf16.msra.mxu0 0
        %2633 = vmatprep.subr.bf16.mxu0 0
        %2634 = vmatpush1.bf16.msra.mxu0 0
        %2635 = vmatprep.subr.bf16.mxu0 0
        %2636 = vmatpush1.bf16.msra.mxu0 0
        %2637 = vmatprep.subr.bf16.mxu0 0
        %2638 = vmatpush1.bf16.msra.mxu0 0
        %2639 = vmatprep.subr.bf16.mxu0 0
        %2640 = vmatpush1.bf16.msra.mxu0 0
        %2641 = vmatprep.subr.bf16.mxu0 0
        %2642 = vmatpush1.bf16.msra.mxu0 %v2626
        %2643 = vmatprep.subr.bf16.mxu0 0
        %2644 = vmatpush1.bf16.msra.mxu0 %v2625
        %2645 = vmatprep.subr.bf16.mxu0 0
        %2646 = vmatpush2.bf16.msra.mxu0 0
        %2647 = vmatprep.subr.bf16.mxu0 0
        %2648 = vmatpush2.bf16.msra.mxu0 0
        %2649 = vmatprep.subr.bf16.mxu0 0
        %2650 = vmatpush2.bf16.msra.mxu0 0
        %2651 = vmatprep.subr.bf16.mxu0 0
        %2652 = vmatpush2.bf16.msra.mxu0 0
        %2653 = vmatprep.subr.bf16.mxu0 0
        %2654 = vmatpush2.bf16.msra.mxu0 0
        %2655 = vmatprep.subr.bf16.mxu0 0
        %2656 = vmatpush2.bf16.msra.mxu0 0
        %2657 = vmatprep.subr.bf16.mxu0 0
        %2658 = vmatpush2.bf16.msra.mxu0 0
        %2659 = vmatprep.subr.bf16.mxu0 0
        %2660 = vmatpush2.bf16.msra.mxu0 0
        %2661 = vmatprep.mubr.bf16.mxu0 0
        %2662 = vmatmul.mubr.bf16.gmra.mxu0 %v2265
        %v2663 = vpop.f32.mrf.mxu0
        %v2664 = vadd.f32 %v2504, %v2663
        %v2665 = vpop.f32.mrf.mxu0
        %v2666 = vpop.f32.mrf.mxu0
        %v2667 = vpop.f32.mrf.mxu0
        %2668 = vdwg.mxu0
        %v2673 = vunpack.c.l.b16 %v2480
        %v2674 = vunpack.c.l.b16 %v2481
        %v2675 = vunpack.c.l.b16 %v2482
        %v2676 = vunpack.c.l.b16 %v2483
        %v2677 = vpack.c.b16 %v2674, %v2673
        %v2678 = vpack.c.b16 %v2676, %v2675
        %2681 = vmatprep.subr.bf16.mxu0 0
        %2682 = vmatpush1.bf16.msra.mxu0 0
        %2683 = vmatprep.subr.bf16.mxu0 0
        %2684 = vmatpush1.bf16.msra.mxu0 0
        %2685 = vmatprep.subr.bf16.mxu0 0
        %2686 = vmatpush1.bf16.msra.mxu0 0
        %2687 = vmatprep.subr.bf16.mxu0 0
        %2688 = vmatpush1.bf16.msra.mxu0 0
        %2689 = vmatprep.subr.bf16.mxu0 0
        %2690 = vmatpush1.bf16.msra.mxu0 0
        %2691 = vmatprep.subr.bf16.mxu0 0
        %2692 = vmatpush1.bf16.msra.mxu0 0
        %2693 = vmatprep.subr.bf16.mxu0 0
        %2694 = vmatpush1.bf16.msra.mxu0 %v2678
        %2695 = vmatprep.subr.bf16.mxu0 0
        %2696 = vmatpush1.bf16.msra.mxu0 %v2677
        %2697 = vmatprep.subr.bf16.mxu0 0
        %2698 = vmatpush2.bf16.msra.mxu0 0
        %2699 = vmatprep.subr.bf16.mxu0 0
        %2700 = vmatpush2.bf16.msra.mxu0 0
        %2701 = vmatprep.subr.bf16.mxu0 0
        %2702 = vmatpush2.bf16.msra.mxu0 0
        %2703 = vmatprep.subr.bf16.mxu0 0
        %2704 = vmatpush2.bf16.msra.mxu0 0
        %2705 = vmatprep.subr.bf16.mxu0 0
        %2706 = vmatpush2.bf16.msra.mxu0 0
        %2707 = vmatprep.subr.bf16.mxu0 0
        %2708 = vmatpush2.bf16.msra.mxu0 0
        %2709 = vmatprep.subr.bf16.mxu0 0
        %2710 = vmatpush2.bf16.msra.mxu0 0
        %2711 = vmatprep.subr.bf16.mxu0 0
        %2712 = vmatpush2.bf16.msra.mxu0 0
        %2713 = vmatprep.mubr.bf16.mxu0 0
        %2714 = vmatmul.mubr.bf16.gmra.mxu0 %v2265
        %v2715 = vpop.f32.mrf.mxu0
        %v2716 = vadd.f32 %v2508, %v2715
        %v2717 = vpop.f32.mrf.mxu0
        %v2718 = vpop.f32.mrf.mxu0
        %v2719 = vpop.f32.mrf.mxu0
        %2720 = vdwg.mxu0
        %s2721 = scalar_lea.vmem %s6, 64
        %v2722 = vld [vmem:[%s2721] sm:$0xf]
        %v2723 = vld [vmem:[%s2721 + $0x4] sm:$0xf]
        %v2724 = vld [vmem:[%s2721 + $0x8] sm:$0xf]
        %v2725 = vld [vmem:[%s2721 + $0xc] sm:$0xf]
        %v2726 = vld [vmem:[%s2721 + $0x10] sm:$0xf]
        %v2727 = vld [vmem:[%s2721 + $0x14] sm:$0xf]
        %v2728 = vld [vmem:[%s2721 + $0x18] sm:$0xf]
        %v2729 = vld [vmem:[%s2721 + $0x1c] sm:$0xf]
        %v2730 = vld [vmem:[%s2721 + $0x20] sm:$0xf]
        %v2731 = vld [vmem:[%s2721 + $0x24] sm:$0xf]
        %v2732 = vld [vmem:[%s2721 + $0x28] sm:$0xf]
        %v2733 = vld [vmem:[%s2721 + $0x2c] sm:$0xf]
        %v2734 = vld [vmem:[%s2721 + $0x30] sm:$0xf]
        %v2735 = vld [vmem:[%s2721 + $0x34] sm:$0xf]
        %v2736 = vld [vmem:[%s2721 + $0x38] sm:$0xf]
        %v2737 = vld [vmem:[%s2721 + $0x3c] sm:$0xf]
        %s2738 = scalar_lea.vmem %s7, 4
        %v2739 = vld [vmem:[%s2738] sm:$0x1]
        %v2740 = vld [vmem:[%s2738 + $0x1] sm:$0x1]
        %v2741 = vld [vmem:[%s2738 + $0x2] sm:$0x1]
        %v2742 = vld [vmem:[%s2738 + $0x3] sm:$0x1]
        %v2747 = vlaneseq
        %v2748 = vshrl.u32 %v2747, 7
        %v2749 = vsub.s32 0, %v2748
        %v2750 = vrot.slane %v2739, %v2749
        %v2751 = vlaneseq
        %v2752 = vshrl.u32 %v2751, 7
        %v2753 = vsub.s32 0, %v2752
        %v2754 = vrot.slane %v2740, %v2753
        %v2755 = vlaneseq
        %v2756 = vshrl.u32 %v2755, 7
        %v2757 = vsub.s32 0, %v2756
        %v2758 = vrot.slane %v2741, %v2757
        %v2759 = vlaneseq
        %v2760 = vshrl.u32 %v2759, 7
        %v2761 = vsub.s32 0, %v2760
        %v2762 = vrot.slane %v2742, %v2761
        %v2771 = vunpack.c.l.b16 %v2722
        %v2772 = vunpack.c.l.b16 %v2723
        %v2773 = vunpack.c.l.b16 %v2724
        %v2774 = vunpack.c.l.b16 %v2725
        %v2775 = vpack.c.b16 %v2772, %v2771
        %v2776 = vpack.c.b16 %v2774, %v2773
        %2779 = vmatprep.subr.bf16.mxu0 0
        %2780 = vmatpush1.bf16.msra.mxu0 0
        %2781 = vmatprep.subr.bf16.mxu0 0
        %2782 = vmatpush1.bf16.msra.mxu0 0
        %2783 = vmatprep.subr.bf16.mxu0 0
        %2784 = vmatpush1.bf16.msra.mxu0 0
        %2785 = vmatprep.subr.bf16.mxu0 0
        %2786 = vmatpush1.bf16.msra.mxu0 0
        %2787 = vmatprep.subr.bf16.mxu0 0
        %2788 = vmatpush1.bf16.msra.mxu0 0
        %2789 = vmatprep.subr.bf16.mxu0 0
        %2790 = vmatpush1.bf16.msra.mxu0 0
        %2791 = vmatprep.subr.bf16.mxu0 0
        %2792 = vmatpush1.bf16.msra.mxu0 %v2776
        %2793 = vmatprep.subr.bf16.mxu0 0
        %2794 = vmatpush1.bf16.msra.mxu0 %v2775
        %2795 = vmatprep.subr.bf16.mxu0 0
        %2796 = vmatpush2.bf16.msra.mxu0 0
        %2797 = vmatprep.subr.bf16.mxu0 0
        %2798 = vmatpush2.bf16.msra.mxu0 0
        %2799 = vmatprep.subr.bf16.mxu0 0
        %2800 = vmatpush2.bf16.msra.mxu0 0
        %2801 = vmatprep.subr.bf16.mxu0 0
        %2802 = vmatpush2.bf16.msra.mxu0 0
        %2803 = vmatprep.subr.bf16.mxu0 0
        %2804 = vmatpush2.bf16.msra.mxu0 0
        %2805 = vmatprep.subr.bf16.mxu0 0
        %2806 = vmatpush2.bf16.msra.mxu0 0
        %2807 = vmatprep.subr.bf16.mxu0 0
        %2808 = vmatpush2.bf16.msra.mxu0 0
        %2809 = vmatprep.subr.bf16.mxu0 0
        %2810 = vmatpush2.bf16.msra.mxu0 0
        %2811 = vmatprep.mubr.bf16.mxu0 0
        %2812 = vmatmul.mubr.bf16.gmra.mxu0 %v2265
        %v2813 = vpop.f32.mrf.mxu0
        %v2814 = vadd.f32 %v2750, %v2813
        %v2815 = vpop.f32.mrf.mxu0
        %v2816 = vpop.f32.mrf.mxu0
        %v2817 = vpop.f32.mrf.mxu0
        %2818 = vdwg.mxu0
        %v2823 = vunpack.c.l.b16 %v2726
        %v2824 = vunpack.c.l.b16 %v2727
        %v2825 = vunpack.c.l.b16 %v2728
        %v2826 = vunpack.c.l.b16 %v2729
        %v2827 = vpack.c.b16 %v2824, %v2823
        %v2828 = vpack.c.b16 %v2826, %v2825
        %2831 = vmatprep.subr.bf16.mxu0 0
        %2832 = vmatpush1.bf16.msra.mxu0 0
        %2833 = vmatprep.subr.bf16.mxu0 0
        %2834 = vmatpush1.bf16.msra.mxu0 0
        %2835 = vmatprep.subr.bf16.mxu0 0
        %2836 = vmatpush1.bf16.msra.mxu0 0
        %2837 = vmatprep.subr.bf16.mxu0 0
        %2838 = vmatpush1.bf16.msra.mxu0 0
        %2839 = vmatprep.subr.bf16.mxu0 0
        %2840 = vmatpush1.bf16.msra.mxu0 0
        %2841 = vmatprep.subr.bf16.mxu0 0
        %2842 = vmatpush1.bf16.msra.mxu0 0
        %2843 = vmatprep.subr.bf16.mxu0 0
        %2844 = vmatpush1.bf16.msra.mxu0 %v2828
        %2845 = vmatprep.subr.bf16.mxu0 0
        %2846 = vmatpush1.bf16.msra.mxu0 %v2827
        %2847 = vmatprep.subr.bf16.mxu0 0
        %2848 = vmatpush2.bf16.msra.mxu0 0
        %2849 = vmatprep.subr.bf16.mxu0 0
        %2850 = vmatpush2.bf16.msra.mxu0 0
        %2851 = vmatprep.subr.bf16.mxu0 0
        %2852 = vmatpush2.bf16.msra.mxu0 0
        %2853 = vmatprep.subr.bf16.mxu0 0
        %2854 = vmatpush2.bf16.msra.mxu0 0
        %2855 = vmatprep.subr.bf16.mxu0 0
        %2856 = vmatpush2.bf16.msra.mxu0 0
        %2857 = vmatprep.subr.bf16.mxu0 0
        %2858 = vmatpush2.bf16.msra.mxu0 0
        %2859 = vmatprep.subr.bf16.mxu0 0
        %2860 = vmatpush2.bf16.msra.mxu0 0
        %2861 = vmatprep.subr.bf16.mxu0 0
        %2862 = vmatpush2.bf16.msra.mxu0 0
        %2863 = vmatprep.mubr.bf16.mxu0 0
        %2864 = vmatmul.mubr.bf16.gmra.mxu0 %v2265
        %v2865 = vpop.f32.mrf.mxu0
        %v2866 = vadd.f32 %v2754, %v2865
        %v2867 = vpop.f32.mrf.mxu0
        %v2868 = vpop.f32.mrf.mxu0
        %v2869 = vpop.f32.mrf.mxu0
        %2870 = vdwg.mxu0
        %v2875 = vunpack.c.l.b16 %v2730
        %v2876 = vunpack.c.l.b16 %v2731
        %v2877 = vunpack.c.l.b16 %v2732
        %v2878 = vunpack.c.l.b16 %v2733
        %v2879 = vpack.c.b16 %v2876, %v2875
        %v2880 = vpack.c.b16 %v2878, %v2877
        %2883 = vmatprep.subr.bf16.mxu0 0
        %2884 = vmatpush1.bf16.msra.mxu0 0
        %2885 = vmatprep.subr.bf16.mxu0 0
        %2886 = vmatpush1.bf16.msra.mxu0 0
        %2887 = vmatprep.subr.bf16.mxu0 0
        %2888 = vmatpush1.bf16.msra.mxu0 0
        %2889 = vmatprep.subr.bf16.mxu0 0
        %2890 = vmatpush1.bf16.msra.mxu0 0
        %2891 = vmatprep.subr.bf16.mxu0 0
        %2892 = vmatpush1.bf16.msra.mxu0 0
        %2893 = vmatprep.subr.bf16.mxu0 0
        %2894 = vmatpush1.bf16.msra.mxu0 0
        %2895 = vmatprep.subr.bf16.mxu0 0
        %2896 = vmatpush1.bf16.msra.mxu0 %v2880
        %2897 = vmatprep.subr.bf16.mxu0 0
        %2898 = vmatpush1.bf16.msra.mxu0 %v2879
        %2899 = vmatprep.subr.bf16.mxu0 0
        %2900 = vmatpush2.bf16.msra.mxu0 0
        %2901 = vmatprep.subr.bf16.mxu0 0
        %2902 = vmatpush2.bf16.msra.mxu0 0
        %2903 = vmatprep.subr.bf16.mxu0 0
        %2904 = vmatpush2.bf16.msra.mxu0 0
        %2905 = vmatprep.subr.bf16.mxu0 0
        %2906 = vmatpush2.bf16.msra.mxu0 0
        %2907 = vmatprep.subr.bf16.mxu0 0
        %2908 = vmatpush2.bf16.msra.mxu0 0
        %2909 = vmatprep.subr.bf16.mxu0 0
        %2910 = vmatpush2.bf16.msra.mxu0 0
        %2911 = vmatprep.subr.bf16.mxu0 0
        %2912 = vmatpush2.bf16.msra.mxu0 0
        %2913 = vmatprep.subr.bf16.mxu0 0
        %2914 = vmatpush2.bf16.msra.mxu0 0
        %2915 = vmatprep.mubr.bf16.mxu0 0
        %2916 = vmatmul.mubr.bf16.gmra.mxu0 %v2265
        %v2917 = vpop.f32.mrf.mxu0
        %v2918 = vadd.f32 %v2758, %v2917
        %v2919 = vpop.f32.mrf.mxu0
        %v2920 = vpop.f32.mrf.mxu0
        %v2921 = vpop.f32.mrf.mxu0
        %2922 = vdwg.mxu0
        %v2927 = vunpack.c.l.b16 %v2734
        %v2928 = vunpack.c.l.b16 %v2735
        %v2929 = vunpack.c.l.b16 %v2736
        %v2930 = vunpack.c.l.b16 %v2737
        %v2931 = vpack.c.b16 %v2928, %v2927
        %v2932 = vpack.c.b16 %v2930, %v2929
        %2935 = vmatprep.subr.bf16.mxu0 0
        %2936 = vmatpush1.bf16.msra.mxu0 0
        %2937 = vmatprep.subr.bf16.mxu0 0
        %2938 = vmatpush1.bf16.msra.mxu0 0
        %2939 = vmatprep.subr.bf16.mxu0 0
        %2940 = vmatpush1.bf16.msra.mxu0 0
        %2941 = vmatprep.subr.bf16.mxu0 0
        %2942 = vmatpush1.bf16.msra.mxu0 0
        %2943 = vmatprep.subr.bf16.mxu0 0
        %2944 = vmatpush1.bf16.msra.mxu0 0
        %2945 = vmatprep.subr.bf16.mxu0 0
        %2946 = vmatpush1.bf16.msra.mxu0 0
        %2947 = vmatprep.subr.bf16.mxu0 0
        %2948 = vmatpush1.bf16.msra.mxu0 %v2932
        %2949 = vmatprep.subr.bf16.mxu0 0
        %2950 = vmatpush1.bf16.msra.mxu0 %v2931
        %2951 = vmatprep.subr.bf16.mxu0 0
        %2952 = vmatpush2.bf16.msra.mxu0 0
        %2953 = vmatprep.subr.bf16.mxu0 0
        %2954 = vmatpush2.bf16.msra.mxu0 0
        %2955 = vmatprep.subr.bf16.mxu0 0
        %2956 = vmatpush2.bf16.msra.mxu0 0
        %2957 = vmatprep.subr.bf16.mxu0 0
        %2958 = vmatpush2.bf16.msra.mxu0 0
        %2959 = vmatprep.subr.bf16.mxu0 0
        %2960 = vmatpush2.bf16.msra.mxu0 0
        %2961 = vmatprep.subr.bf16.mxu0 0
        %2962 = vmatpush2.bf16.msra.mxu0 0
        %2963 = vmatprep.subr.bf16.mxu0 0
        %2964 = vmatpush2.bf16.msra.mxu0 0
        %2965 = vmatprep.subr.bf16.mxu0 0
        %2966 = vmatpush2.bf16.msra.mxu0 0
        %2967 = vmatprep.mubr.bf16.mxu0 0
        %2968 = vmatmul.mubr.bf16.gmra.mxu0 %v2265
        %v2969 = vpop.f32.mrf.mxu0
        %v2970 = vadd.f32 %v2762, %v2969
        %v2971 = vpop.f32.mrf.mxu0
        %v2972 = vpop.f32.mrf.mxu0
        %v2973 = vpop.f32.mrf.mxu0
        %2974 = vdwg.mxu0
        %v2975 = vpack.c.bf16 %v2463, %v2463
        %v2976 = vpack.c.bf16 %v2464, %v2464
        %v2977 = vpack.c.bf16 %v2465, %v2465
        %v2978 = vpack.c.bf16 %v2466, %v2466
        %v2979 = vpack.c.bf16 %v2560, %v2560
        %v2980 = vpack.c.bf16 %v2612, %v2612
        %v2981 = vpack.c.bf16 %v2664, %v2664
        %v2982 = vpack.c.bf16 %v2716, %v2716
        %v2984 = vsel %vm1367, %v2975, 0
        %v2987 = vsel %vm1367, %v2979, 0
        %2989 = vmatprep.subr.bf16.mxu0 0
        %2990 = vmatpush1.bf16.xpose.msra.mxu0 0
        %2991 = vmatprep.subr.bf16.mxu0 0
        %2992 = vmatpush1.bf16.xpose.msra.mxu0 0
        %2993 = vmatprep.subr.bf16.mxu0 0
        %2994 = vmatpush1.bf16.xpose.msra.mxu0 0
        %2995 = vmatprep.subr.bf16.mxu0 0
        %2996 = vmatpush1.bf16.xpose.msra.mxu0 0
        %2997 = vmatprep.subr.bf16.mxu0 0
        %2998 = vmatpush1.bf16.xpose.msra.mxu0 0
        %2999 = vmatprep.subr.bf16.mxu0 0
        %3000 = vmatpush1.bf16.xpose.msra.mxu0 0
        %3001 = vmatprep.subr.bf16.mxu0 0
        %3002 = vmatpush1.bf16.xpose.msra.mxu0 0
        %3003 = vmatprep.subr.bf16.mxu0 0
        %3004 = vmatpush1.bf16.xpose.msra.mxu0 %v2987
        %3005 = vmatprep.subr.bf16.mxu0 0
        %3006 = vmatpush2.bf16.xpose.msra.mxu0 0
        %3007 = vmatprep.subr.bf16.mxu0 0
        %3008 = vmatpush2.bf16.xpose.msra.mxu0 0
        %3009 = vmatprep.subr.bf16.mxu0 0
        %3010 = vmatpush2.bf16.xpose.msra.mxu0 0
        %3011 = vmatprep.subr.bf16.mxu0 0
        %3012 = vmatpush2.bf16.xpose.msra.mxu0 0
        %3013 = vmatprep.subr.bf16.mxu0 0
        %3014 = vmatpush2.bf16.xpose.msra.mxu0 0
        %3015 = vmatprep.subr.bf16.mxu0 0
        %3016 = vmatpush2.bf16.xpose.msra.mxu0 0
        %3017 = vmatprep.subr.bf16.mxu0 0
        %3018 = vmatpush2.bf16.xpose.msra.mxu0 0
        %3019 = vmatprep.subr.bf16.mxu0 0
        %3020 = vmatpush2.bf16.xpose.msra.mxu0 0
        %3021 = vmatprep.mubr.bf16.mxu0 0
        %3022 = vmatmul.mubr.bf16.gmra.mxu0 %v2984
        %v3023 = vpop.f32.mrf.mxu0
        %v3024 = vadd.f32 %v1365, %v3023
        %v3025 = vpop.f32.mrf.mxu0
        %v3026 = vpop.f32.mrf.mxu0
        %v3027 = vpop.f32.mrf.mxu0
        %3028 = vdwg.mxu0
        %v3030 = vsel %vm1367, %v2976, 0
        %v3033 = vsel %vm1367, %v2980, 0
        %3035 = vmatprep.subr.bf16.mxu0 0
        %3036 = vmatpush1.bf16.xpose.msra.mxu0 0
        %3037 = vmatprep.subr.bf16.mxu0 0
        %3038 = vmatpush1.bf16.xpose.msra.mxu0 0
        %3039 = vmatprep.subr.bf16.mxu0 0
        %3040 = vmatpush1.bf16.xpose.msra.mxu0 0
        %3041 = vmatprep.subr.bf16.mxu0 0
        %3042 = vmatpush1.bf16.xpose.msra.mxu0 0
        %3043 = vmatprep.subr.bf16.mxu0 0
        %3044 = vmatpush1.bf16.xpose.msra.mxu0 0
        %3045 = vmatprep.subr.bf16.mxu0 0
        %3046 = vmatpush1.bf16.xpose.msra.mxu0 0
        %3047 = vmatprep.subr.bf16.mxu0 0
        %3048 = vmatpush1.bf16.xpose.msra.mxu0 0
        %3049 = vmatprep.subr.bf16.mxu0 0
        %3050 = vmatpush1.bf16.xpose.msra.mxu0 %v3033
        %3051 = vmatprep.subr.bf16.mxu0 0
        %3052 = vmatpush2.bf16.xpose.msra.mxu0 0
        %3053 = vmatprep.subr.bf16.mxu0 0
        %3054 = vmatpush2.bf16.xpose.msra.mxu0 0
        %3055 = vmatprep.subr.bf16.mxu0 0
        %3056 = vmatpush2.bf16.xpose.msra.mxu0 0
        %3057 = vmatprep.subr.bf16.mxu0 0
        %3058 = vmatpush2.bf16.xpose.msra.mxu0 0
        %3059 = vmatprep.subr.bf16.mxu0 0
        %3060 = vmatpush2.bf16.xpose.msra.mxu0 0
        %3061 = vmatprep.subr.bf16.mxu0 0
        %3062 = vmatpush2.bf16.xpose.msra.mxu0 0
        %3063 = vmatprep.subr.bf16.mxu0 0
        %3064 = vmatpush2.bf16.xpose.msra.mxu0 0
        %3065 = vmatprep.subr.bf16.mxu0 0
        %3066 = vmatpush2.bf16.xpose.msra.mxu0 0
        %3067 = vmatprep.mubr.bf16.mxu0 0
        %3068 = vmatmul.mubr.bf16.gmra.mxu0 %v3030
        %v3069 = vpop.f32.mrf.mxu0
        %v3070 = vadd.f32 %v1365, %v3069
        %v3071 = vpop.f32.mrf.mxu0
        %v3072 = vpop.f32.mrf.mxu0
        %v3073 = vpop.f32.mrf.mxu0
        %3074 = vdwg.mxu0
        %v3076 = vsel %vm1367, %v2977, 0
        %v3079 = vsel %vm1367, %v2981, 0
        %3081 = vmatprep.subr.bf16.mxu0 0
        %3082 = vmatpush1.bf16.xpose.msra.mxu0 0
        %3083 = vmatprep.subr.bf16.mxu0 0
        %3084 = vmatpush1.bf16.xpose.msra.mxu0 0
        %3085 = vmatprep.subr.bf16.mxu0 0
        %3086 = vmatpush1.bf16.xpose.msra.mxu0 0
        %3087 = vmatprep.subr.bf16.mxu0 0
        %3088 = vmatpush1.bf16.xpose.msra.mxu0 0
        %3089 = vmatprep.subr.bf16.mxu0 0
        %3090 = vmatpush1.bf16.xpose.msra.mxu0 0
        %3091 = vmatprep.subr.bf16.mxu0 0
        %3092 = vmatpush1.bf16.xpose.msra.mxu0 0
        %3093 = vmatprep.subr.bf16.mxu0 0
        %3094 = vmatpush1.bf16.xpose.msra.mxu0 0
        %3095 = vmatprep.subr.bf16.mxu0 0
        %3096 = vmatpush1.bf16.xpose.msra.mxu0 %v3079
        %3097 = vmatprep.subr.bf16.mxu0 0
        %3098 = vmatpush2.bf16.xpose.msra.mxu0 0
        %3099 = vmatprep.subr.bf16.mxu0 0
        %3100 = vmatpush2.bf16.xpose.msra.mxu0 0
        %3101 = vmatprep.subr.bf16.mxu0 0
        %3102 = vmatpush2.bf16.xpose.msra.mxu0 0
        %3103 = vmatprep.subr.bf16.mxu0 0
        %3104 = vmatpush2.bf16.xpose.msra.mxu0 0
        %3105 = vmatprep.subr.bf16.mxu0 0
        %3106 = vmatpush2.bf16.xpose.msra.mxu0 0
        %3107 = vmatprep.subr.bf16.mxu0 0
        %3108 = vmatpush2.bf16.xpose.msra.mxu0 0
        %3109 = vmatprep.subr.bf16.mxu0 0
        %3110 = vmatpush2.bf16.xpose.msra.mxu0 0
        %3111 = vmatprep.subr.bf16.mxu0 0
        %3112 = vmatpush2.bf16.xpose.msra.mxu0 0
        %3113 = vmatprep.mubr.bf16.mxu0 0
        %3114 = vmatmul.mubr.bf16.gmra.mxu0 %v3076
        %v3115 = vpop.f32.mrf.mxu0
        %v3116 = vadd.f32 %v1365, %v3115
        %v3117 = vpop.f32.mrf.mxu0
        %v3118 = vpop.f32.mrf.mxu0
        %v3119 = vpop.f32.mrf.mxu0
        %3120 = vdwg.mxu0
        %v3122 = vsel %vm1367, %v2978, 0
        %v3125 = vsel %vm1367, %v2982, 0
        %3127 = vmatprep.subr.bf16.mxu0 0
        %3128 = vmatpush1.bf16.xpose.msra.mxu0 0
        %3129 = vmatprep.subr.bf16.mxu0 0
        %3130 = vmatpush1.bf16.xpose.msra.mxu0 0
        %3131 = vmatprep.subr.bf16.mxu0 0
        %3132 = vmatpush1.bf16.xpose.msra.mxu0 0
        %3133 = vmatprep.subr.bf16.mxu0 0
        %3134 = vmatpush1.bf16.xpose.msra.mxu0 0
        %3135 = vmatprep.subr.bf16.mxu0 0
        %3136 = vmatpush1.bf16.xpose.msra.mxu0 0
        %3137 = vmatprep.subr.bf16.mxu0 0
        %3138 = vmatpush1.bf16.xpose.msra.mxu0 0
        %3139 = vmatprep.subr.bf16.mxu0 0
        %3140 = vmatpush1.bf16.xpose.msra.mxu0 0
        %3141 = vmatprep.subr.bf16.mxu0 0
        %3142 = vmatpush1.bf16.xpose.msra.mxu0 %v3125
        %3143 = vmatprep.subr.bf16.mxu0 0
        %3144 = vmatpush2.bf16.xpose.msra.mxu0 0
        %3145 = vmatprep.subr.bf16.mxu0 0
        %3146 = vmatpush2.bf16.xpose.msra.mxu0 0
        %3147 = vmatprep.subr.bf16.mxu0 0
        %3148 = vmatpush2.bf16.xpose.msra.mxu0 0
        %3149 = vmatprep.subr.bf16.mxu0 0
        %3150 = vmatpush2.bf16.xpose.msra.mxu0 0
        %3151 = vmatprep.subr.bf16.mxu0 0
        %3152 = vmatpush2.bf16.xpose.msra.mxu0 0
        %3153 = vmatprep.subr.bf16.mxu0 0
        %3154 = vmatpush2.bf16.xpose.msra.mxu0 0
        %3155 = vmatprep.subr.bf16.mxu0 0
        %3156 = vmatpush2.bf16.xpose.msra.mxu0 0
        %3157 = vmatprep.subr.bf16.mxu0 0
        %3158 = vmatpush2.bf16.xpose.msra.mxu0 0
        %3159 = vmatprep.mubr.bf16.mxu0 0
        %3160 = vmatmul.mubr.bf16.gmra.mxu0 %v3122
        %v3161 = vpop.f32.mrf.mxu0
        %v3162 = vadd.f32 %v1365, %v3161
        %v3163 = vpop.f32.mrf.mxu0
        %v3164 = vpop.f32.mrf.mxu0
        %v3165 = vpop.f32.mrf.mxu0
        %3166 = vdwg.mxu0
        %v3167 = vsel %vm1367, %v3024, -inf
        %3168 = vmax.xlane.f32.xlu0 %v3167
        %v3169 = vpop.xlane.xlu0 %3168
        %v3170 = vsel %vm1367, %v3070, -inf
        %3171 = vmax.xlane.f32.xlu0 %v3170
        %v3172 = vpop.xlane.xlu0 %3171
        %v3173 = vsel %vm1367, %v3116, -inf
        %3174 = vmax.xlane.f32.xlu0 %v3173
        %v3175 = vpop.xlane.xlu0 %3174
        %v3176 = vsel %vm1367, %v3162, -inf
        %3177 = vmax.xlane.f32.xlu0 %v3176
        %v3178 = vpop.xlane.xlu0 %3177
        %v3179 = vsub.f32 %v3024, %v3169
        %v3180 = vsub.f32 %v3070, %v3172
        %v3181 = vsub.f32 %v3116, %v3175
        %v3182 = vsub.f32 %v3162, %v3178
        %v3183 = vmul.f32 %v3179, 1.442695
        %v3184 = vpow.pop %v3183
        %v3185 = vmul.f32 %v3180, 1.442695
        %v3186 = vpow.pop %v3185
        %v3187 = vmul.f32 %v3181, 1.442695
        %v3188 = vpow.pop %v3187
        %v3189 = vmul.f32 %v3182, 1.442695
        %v3190 = vpow.pop %v3189
        %v3191 = vsel %vm1367, %v3184, 0.0
        %3192 = vadd.xlane.f32.xlu0 %v3191
        %v3193 = vpop.xlane.xlu0 %3192
        %v3194 = vsel %vm1367, %v3186, 0.0
        %3195 = vadd.xlane.f32.xlu0 %v3194
        %v3196 = vpop.xlane.xlu0 %3195
        %v3197 = vsel %vm1367, %v3188, 0.0
        %3198 = vadd.xlane.f32.xlu0 %v3197
        %v3199 = vpop.xlane.xlu0 %3198
        %v3200 = vsel %vm1367, %v3190, 0.0
        %3201 = vadd.xlane.f32.xlu0 %v3200
        %v3202 = vpop.xlane.xlu0 %3201
        %v3203 = vrcp.pop %v3193
        %v3204 = vrcp.pop %v3196
        %v3205 = vrcp.pop %v3199
        %v3206 = vrcp.pop %v3202
        %v3207 = vmul.f32 %v3184, %v3203
        %v3208 = vmul.f32 %v3186, %v3204
        %v3209 = vmul.f32 %v3188, %v3205
        %v3210 = vmul.f32 %v3190, %v3206
        %v3211 = vpack.c.bf16 %v3207, %v3207
        %v3212 = vpack.c.bf16 %v3208, %v3208
        %v3213 = vpack.c.bf16 %v3209, %v3209
        %v3214 = vpack.c.bf16 %v3210, %v3210
        %v3215 = vpack.c.bf16 %v2814, %v2814
        %v3216 = vpack.c.bf16 %v2866, %v2866
        %v3217 = vpack.c.bf16 %v2918, %v2918
        %v3218 = vpack.c.bf16 %v2970, %v2970
        %v3220 = vsel %vm1367, %v3211, 0
        %v3223 = vsel %vm1607, %v3215, 0
        %3225 = vmatprep.subr.bf16.mxu0 0
        %3226 = vmatpush1.bf16.msra.mxu0 0
        %3227 = vmatprep.subr.bf16.mxu0 0
        %3228 = vmatpush1.bf16.msra.mxu0 0
        %3229 = vmatprep.subr.bf16.mxu0 0
        %3230 = vmatpush1.bf16.msra.mxu0 0
        %3231 = vmatprep.subr.bf16.mxu0 0
        %3232 = vmatpush1.bf16.msra.mxu0 0
        %3233 = vmatprep.subr.bf16.mxu0 0
        %3234 = vmatpush1.bf16.msra.mxu0 0
        %3235 = vmatprep.subr.bf16.mxu0 0
        %3236 = vmatpush1.bf16.msra.mxu0 0
        %3237 = vmatprep.subr.bf16.mxu0 0
        %3238 = vmatpush1.bf16.msra.mxu0 0
        %3239 = vmatprep.subr.bf16.mxu0 0
        %3240 = vmatpush1.bf16.msra.mxu0 %v3223
        %3241 = vmatprep.subr.bf16.mxu0 0
        %3242 = vmatpush2.bf16.msra.mxu0 0
        %3243 = vmatprep.subr.bf16.mxu0 0
        %3244 = vmatpush2.bf16.msra.mxu0 0
        %3245 = vmatprep.subr.bf16.mxu0 0
        %3246 = vmatpush2.bf16.msra.mxu0 0
        %3247 = vmatprep.subr.bf16.mxu0 0
        %3248 = vmatpush2.bf16.msra.mxu0 0
        %3249 = vmatprep.subr.bf16.mxu0 0
        %3250 = vmatpush2.bf16.msra.mxu0 0
        %3251 = vmatprep.subr.bf16.mxu0 0
        %3252 = vmatpush2.bf16.msra.mxu0 0
        %3253 = vmatprep.subr.bf16.mxu0 0
        %3254 = vmatpush2.bf16.msra.mxu0 0
        %3255 = vmatprep.subr.bf16.mxu0 0
        %3256 = vmatpush2.bf16.msra.mxu0 0
        %3257 = vmatprep.mubr.bf16.mxu0 0
        %3258 = vmatmul.mubr.bf16.gmra.mxu0 %v3220
        %v3259 = vpop.f32.mrf.mxu0
        %v3260 = vadd.f32 0.0, %v3259
        %v3261 = vpop.f32.mrf.mxu0
        %v3262 = vpop.f32.mrf.mxu0
        %v3263 = vpop.f32.mrf.mxu0
        %3264 = vdwg.mxu0
        %v3266 = vsel %vm1367, %v3212, 0
        %v3269 = vsel %vm1607, %v3216, 0
        %3271 = vmatprep.subr.bf16.mxu0 0
        %3272 = vmatpush1.bf16.msra.mxu0 0
        %3273 = vmatprep.subr.bf16.mxu0 0
        %3274 = vmatpush1.bf16.msra.mxu0 0
        %3275 = vmatprep.subr.bf16.mxu0 0
        %3276 = vmatpush1.bf16.msra.mxu0 0
        %3277 = vmatprep.subr.bf16.mxu0 0
        %3278 = vmatpush1.bf16.msra.mxu0 0
        %3279 = vmatprep.subr.bf16.mxu0 0
        %3280 = vmatpush1.bf16.msra.mxu0 0
        %3281 = vmatprep.subr.bf16.mxu0 0
        %3282 = vmatpush1.bf16.msra.mxu0 0
        %3283 = vmatprep.subr.bf16.mxu0 0
        %3284 = vmatpush1.bf16.msra.mxu0 0
        %3285 = vmatprep.subr.bf16.mxu0 0
        %3286 = vmatpush1.bf16.msra.mxu0 %v3269
        %3287 = vmatprep.subr.bf16.mxu0 0
        %3288 = vmatpush2.bf16.msra.mxu0 0
        %3289 = vmatprep.subr.bf16.mxu0 0
        %3290 = vmatpush2.bf16.msra.mxu0 0
        %3291 = vmatprep.subr.bf16.mxu0 0
        %3292 = vmatpush2.bf16.msra.mxu0 0
        %3293 = vmatprep.subr.bf16.mxu0 0
        %3294 = vmatpush2.bf16.msra.mxu0 0
        %3295 = vmatprep.subr.bf16.mxu0 0
        %3296 = vmatpush2.bf16.msra.mxu0 0
        %3297 = vmatprep.subr.bf16.mxu0 0
        %3298 = vmatpush2.bf16.msra.mxu0 0
        %3299 = vmatprep.subr.bf16.mxu0 0
        %3300 = vmatpush2.bf16.msra.mxu0 0
        %3301 = vmatprep.subr.bf16.mxu0 0
        %3302 = vmatpush2.bf16.msra.mxu0 0
        %3303 = vmatprep.mubr.bf16.mxu0 0
        %3304 = vmatmul.mubr.bf16.gmra.mxu0 %v3266
        %v3305 = vpop.f32.mrf.mxu0
        %v3306 = vadd.f32 0.0, %v3305
        %v3307 = vpop.f32.mrf.mxu0
        %v3308 = vpop.f32.mrf.mxu0
        %v3309 = vpop.f32.mrf.mxu0
        %3310 = vdwg.mxu0
        %v3312 = vsel %vm1367, %v3213, 0
        %v3315 = vsel %vm1607, %v3217, 0
        %3317 = vmatprep.subr.bf16.mxu0 0
        %3318 = vmatpush1.bf16.msra.mxu0 0
        %3319 = vmatprep.subr.bf16.mxu0 0
        %3320 = vmatpush1.bf16.msra.mxu0 0
        %3321 = vmatprep.subr.bf16.mxu0 0
        %3322 = vmatpush1.bf16.msra.mxu0 0
        %3323 = vmatprep.subr.bf16.mxu0 0
        %3324 = vmatpush1.bf16.msra.mxu0 0
        %3325 = vmatprep.subr.bf16.mxu0 0
        %3326 = vmatpush1.bf16.msra.mxu0 0
        %3327 = vmatprep.subr.bf16.mxu0 0
        %3328 = vmatpush1.bf16.msra.mxu0 0
        %3329 = vmatprep.subr.bf16.mxu0 0
        %3330 = vmatpush1.bf16.msra.mxu0 0
        %3331 = vmatprep.subr.bf16.mxu0 0
        %3332 = vmatpush1.bf16.msra.mxu0 %v3315
        %3333 = vmatprep.subr.bf16.mxu0 0
        %3334 = vmatpush2.bf16.msra.mxu0 0
        %3335 = vmatprep.subr.bf16.mxu0 0
        %3336 = vmatpush2.bf16.msra.mxu0 0
        %3337 = vmatprep.subr.bf16.mxu0 0
        %3338 = vmatpush2.bf16.msra.mxu0 0
        %3339 = vmatprep.subr.bf16.mxu0 0
        %3340 = vmatpush2.bf16.msra.mxu0 0
        %3341 = vmatprep.subr.bf16.mxu0 0
        %3342 = vmatpush2.bf16.msra.mxu0 0
        %3343 = vmatprep.subr.bf16.mxu0 0
        %3344 = vmatpush2.bf16.msra.mxu0 0
        %3345 = vmatprep.subr.bf16.mxu0 0
        %3346 = vmatpush2.bf16.msra.mxu0 0
        %3347 = vmatprep.subr.bf16.mxu0 0
        %3348 = vmatpush2.bf16.msra.mxu0 0
        %3349 = vmatprep.mubr.bf16.mxu0 0
        %3350 = vmatmul.mubr.bf16.gmra.mxu0 %v3312
        %v3351 = vpop.f32.mrf.mxu0
        %v3352 = vadd.f32 0.0, %v3351
        %v3353 = vpop.f32.mrf.mxu0
        %v3354 = vpop.f32.mrf.mxu0
        %v3355 = vpop.f32.mrf.mxu0
        %3356 = vdwg.mxu0
        %v3358 = vsel %vm1367, %v3214, 0
        %v3361 = vsel %vm1607, %v3218, 0
        %3363 = vmatprep.subr.bf16.mxu0 0
        %3364 = vmatpush1.bf16.msra.mxu0 0
        %3365 = vmatprep.subr.bf16.mxu0 0
        %3366 = vmatpush1.bf16.msra.mxu0 0
        %3367 = vmatprep.subr.bf16.mxu0 0
        %3368 = vmatpush1.bf16.msra.mxu0 0
        %3369 = vmatprep.subr.bf16.mxu0 0
        %3370 = vmatpush1.bf16.msra.mxu0 0
        %3371 = vmatprep.subr.bf16.mxu0 0
        %3372 = vmatpush1.bf16.msra.mxu0 0
        %3373 = vmatprep.subr.bf16.mxu0 0
        %3374 = vmatpush1.bf16.msra.mxu0 0
        %3375 = vmatprep.subr.bf16.mxu0 0
        %3376 = vmatpush1.bf16.msra.mxu0 0
        %3377 = vmatprep.subr.bf16.mxu0 0
        %3378 = vmatpush1.bf16.msra.mxu0 %v3361
        %3379 = vmatprep.subr.bf16.mxu0 0
        %3380 = vmatpush2.bf16.msra.mxu0 0
        %3381 = vmatprep.subr.bf16.mxu0 0
        %3382 = vmatpush2.bf16.msra.mxu0 0
        %3383 = vmatprep.subr.bf16.mxu0 0
        %3384 = vmatpush2.bf16.msra.mxu0 0
        %3385 = vmatprep.subr.bf16.mxu0 0
        %3386 = vmatpush2.bf16.msra.mxu0 0
        %3387 = vmatprep.subr.bf16.mxu0 0
        %3388 = vmatpush2.bf16.msra.mxu0 0
        %3389 = vmatprep.subr.bf16.mxu0 0
        %3390 = vmatpush2.bf16.msra.mxu0 0
        %3391 = vmatprep.subr.bf16.mxu0 0
        %3392 = vmatpush2.bf16.msra.mxu0 0
        %3393 = vmatprep.subr.bf16.mxu0 0
        %3394 = vmatpush2.bf16.msra.mxu0 0
        %3395 = vmatprep.mubr.bf16.mxu0 0
        %3396 = vmatmul.mubr.bf16.gmra.mxu0 %v3358
        %v3397 = vpop.f32.mrf.mxu0
        %v3398 = vadd.f32 0.0, %v3397
        %v3399 = vpop.f32.mrf.mxu0
        %v3400 = vpop.f32.mrf.mxu0
        %v3401 = vpop.f32.mrf.mxu0
        %3402 = vdwg.mxu0
        %v3403 = vpack.c.bf16 %v3260, %v3260
        %v3404 = vpack.c.bf16 %v3306, %v3306
        %v3405 = vpack.c.bf16 %v3352, %v3352
        %v3406 = vpack.c.bf16 %v3398, %v3398
        %s3407 = scalar_lea.vmem %s8, 16
        %v3408 = vld [vmem:[%s3407] sm:$0xf]
        %v3409 = vld [vmem:[%s3407 + $0x4] sm:$0xf]
        %v3410 = vld [vmem:[%s3407 + $0x8] sm:$0xf]
        %v3411 = vld [vmem:[%s3407 + $0xc] sm:$0xf]
        %v3413 = vsel %vm1367, %v3403, 0
        %v3416 = vsel %vm1607, %v3408, 0
        %3418 = vmatprep.subr.bf16.mxu0 0
        %3419 = vmatpush1.bf16.msra.mxu0 0
        %3420 = vmatprep.subr.bf16.mxu0 0
        %3421 = vmatpush1.bf16.msra.mxu0 0
        %3422 = vmatprep.subr.bf16.mxu0 0
        %3423 = vmatpush1.bf16.msra.mxu0 0
        %3424 = vmatprep.subr.bf16.mxu0 0
        %3425 = vmatpush1.bf16.msra.mxu0 0
        %3426 = vmatprep.subr.bf16.mxu0 0
        %3427 = vmatpush1.bf16.msra.mxu0 0
        %3428 = vmatprep.subr.bf16.mxu0 0
        %3429 = vmatpush1.bf16.msra.mxu0 0
        %3430 = vmatprep.subr.bf16.mxu0 0
        %3431 = vmatpush1.bf16.msra.mxu0 0
        %3432 = vmatprep.subr.bf16.mxu0 0
        %3433 = vmatpush1.bf16.msra.mxu0 %v3416
        %3434 = vmatprep.subr.bf16.mxu0 0
        %3435 = vmatpush2.bf16.msra.mxu0 0
        %3436 = vmatprep.subr.bf16.mxu0 0
        %3437 = vmatpush2.bf16.msra.mxu0 0
        %3438 = vmatprep.subr.bf16.mxu0 0
        %3439 = vmatpush2.bf16.msra.mxu0 0
        %3440 = vmatprep.subr.bf16.mxu0 0
        %3441 = vmatpush2.bf16.msra.mxu0 0
        %3442 = vmatprep.subr.bf16.mxu0 0
        %3443 = vmatpush2.bf16.msra.mxu0 0
        %3444 = vmatprep.subr.bf16.mxu0 0
        %3445 = vmatpush2.bf16.msra.mxu0 0
        %3446 = vmatprep.subr.bf16.mxu0 0
        %3447 = vmatpush2.bf16.msra.mxu0 0
        %3448 = vmatprep.subr.bf16.mxu0 0
        %3449 = vmatpush2.bf16.msra.mxu0 0
        %3450 = vmatprep.mubr.bf16.mxu0 0
        %3451 = vmatmul.mubr.bf16.gmra.mxu0 %v3413
        %v3452 = vpop.f32.mrf.mxu0
        %v3453 = vadd.f32 0.0, %v3452
        %v3454 = vpop.f32.mrf.mxu0
        %v3455 = vpop.f32.mrf.mxu0
        %v3456 = vpop.f32.mrf.mxu0
        %3457 = vdwg.mxu0
        %v3459 = vsel %vm1367, %v3404, 0
        %v3462 = vsel %vm1607, %v3409, 0
        %3464 = vmatprep.subr.bf16.mxu0 0
        %3465 = vmatpush1.bf16.msra.mxu0 0
        %3466 = vmatprep.subr.bf16.mxu0 0
        %3467 = vmatpush1.bf16.msra.mxu0 0
        %3468 = vmatprep.subr.bf16.mxu0 0
        %3469 = vmatpush1.bf16.msra.mxu0 0
        %3470 = vmatprep.subr.bf16.mxu0 0
        %3471 = vmatpush1.bf16.msra.mxu0 0
        %3472 = vmatprep.subr.bf16.mxu0 0
        %3473 = vmatpush1.bf16.msra.mxu0 0
        %3474 = vmatprep.subr.bf16.mxu0 0
        %3475 = vmatpush1.bf16.msra.mxu0 0
        %3476 = vmatprep.subr.bf16.mxu0 0
        %3477 = vmatpush1.bf16.msra.mxu0 0
        %3478 = vmatprep.subr.bf16.mxu0 0
        %3479 = vmatpush1.bf16.msra.mxu0 %v3462
        %3480 = vmatprep.subr.bf16.mxu0 0
        %3481 = vmatpush2.bf16.msra.mxu0 0
        %3482 = vmatprep.subr.bf16.mxu0 0
        %3483 = vmatpush2.bf16.msra.mxu0 0
        %3484 = vmatprep.subr.bf16.mxu0 0
        %3485 = vmatpush2.bf16.msra.mxu0 0
        %3486 = vmatprep.subr.bf16.mxu0 0
        %3487 = vmatpush2.bf16.msra.mxu0 0
        %3488 = vmatprep.subr.bf16.mxu0 0
        %3489 = vmatpush2.bf16.msra.mxu0 0
        %3490 = vmatprep.subr.bf16.mxu0 0
        %3491 = vmatpush2.bf16.msra.mxu0 0
        %3492 = vmatprep.subr.bf16.mxu0 0
        %3493 = vmatpush2.bf16.msra.mxu0 0
        %3494 = vmatprep.subr.bf16.mxu0 0
        %3495 = vmatpush2.bf16.msra.mxu0 0
        %3496 = vmatprep.mubr.bf16.mxu0 0
        %3497 = vmatmul.mubr.bf16.gmra.mxu0 %v3459
        %v3498 = vpop.f32.mrf.mxu0
        %v3499 = vadd.f32 0.0, %v3498
        %v3500 = vpop.f32.mrf.mxu0
        %v3501 = vpop.f32.mrf.mxu0
        %v3502 = vpop.f32.mrf.mxu0
        %3503 = vdwg.mxu0
        %v3505 = vsel %vm1367, %v3405, 0
        %v3508 = vsel %vm1607, %v3410, 0
        %3510 = vmatprep.subr.bf16.mxu0 0
        %3511 = vmatpush1.bf16.msra.mxu0 0
        %3512 = vmatprep.subr.bf16.mxu0 0
        %3513 = vmatpush1.bf16.msra.mxu0 0
        %3514 = vmatprep.subr.bf16.mxu0 0
        %3515 = vmatpush1.bf16.msra.mxu0 0
        %3516 = vmatprep.subr.bf16.mxu0 0
        %3517 = vmatpush1.bf16.msra.mxu0 0
        %3518 = vmatprep.subr.bf16.mxu0 0
        %3519 = vmatpush1.bf16.msra.mxu0 0
        %3520 = vmatprep.subr.bf16.mxu0 0
        %3521 = vmatpush1.bf16.msra.mxu0 0
        %3522 = vmatprep.subr.bf16.mxu0 0
        %3523 = vmatpush1.bf16.msra.mxu0 0
        %3524 = vmatprep.subr.bf16.mxu0 0
        %3525 = vmatpush1.bf16.msra.mxu0 %v3508
        %3526 = vmatprep.subr.bf16.mxu0 0
        %3527 = vmatpush2.bf16.msra.mxu0 0
        %3528 = vmatprep.subr.bf16.mxu0 0
        %3529 = vmatpush2.bf16.msra.mxu0 0
        %3530 = vmatprep.subr.bf16.mxu0 0
        %3531 = vmatpush2.bf16.msra.mxu0 0
        %3532 = vmatprep.subr.bf16.mxu0 0
        %3533 = vmatpush2.bf16.msra.mxu0 0
        %3534 = vmatprep.subr.bf16.mxu0 0
        %3535 = vmatpush2.bf16.msra.mxu0 0
        %3536 = vmatprep.subr.bf16.mxu0 0
        %3537 = vmatpush2.bf16.msra.mxu0 0
        %3538 = vmatprep.subr.bf16.mxu0 0
        %3539 = vmatpush2.bf16.msra.mxu0 0
        %3540 = vmatprep.subr.bf16.mxu0 0
        %3541 = vmatpush2.bf16.msra.mxu0 0
        %3542 = vmatprep.mubr.bf16.mxu0 0
        %3543 = vmatmul.mubr.bf16.gmra.mxu0 %v3505
        %v3544 = vpop.f32.mrf.mxu0
        %v3545 = vadd.f32 0.0, %v3544
        %v3546 = vpop.f32.mrf.mxu0
        %v3547 = vpop.f32.mrf.mxu0
        %v3548 = vpop.f32.mrf.mxu0
        %3549 = vdwg.mxu0
        %v3551 = vsel %vm1367, %v3406, 0
        %v3554 = vsel %vm1607, %v3411, 0
        %3556 = vmatprep.subr.bf16.mxu0 0
        %3557 = vmatpush1.bf16.msra.mxu0 0
        %3558 = vmatprep.subr.bf16.mxu0 0
        %3559 = vmatpush1.bf16.msra.mxu0 0
        %3560 = vmatprep.subr.bf16.mxu0 0
        %3561 = vmatpush1.bf16.msra.mxu0 0
        %3562 = vmatprep.subr.bf16.mxu0 0
        %3563 = vmatpush1.bf16.msra.mxu0 0
        %3564 = vmatprep.subr.bf16.mxu0 0
        %3565 = vmatpush1.bf16.msra.mxu0 0
        %3566 = vmatprep.subr.bf16.mxu0 0
        %3567 = vmatpush1.bf16.msra.mxu0 0
        %3568 = vmatprep.subr.bf16.mxu0 0
        %3569 = vmatpush1.bf16.msra.mxu0 0
        %3570 = vmatprep.subr.bf16.mxu0 0
        %3571 = vmatpush1.bf16.msra.mxu0 %v3554
        %3572 = vmatprep.subr.bf16.mxu0 0
        %3573 = vmatpush2.bf16.msra.mxu0 0
        %3574 = vmatprep.subr.bf16.mxu0 0
        %3575 = vmatpush2.bf16.msra.mxu0 0
        %3576 = vmatprep.subr.bf16.mxu0 0
        %3577 = vmatpush2.bf16.msra.mxu0 0
        %3578 = vmatprep.subr.bf16.mxu0 0
        %3579 = vmatpush2.bf16.msra.mxu0 0
        %3580 = vmatprep.subr.bf16.mxu0 0
        %3581 = vmatpush2.bf16.msra.mxu0 0
        %3582 = vmatprep.subr.bf16.mxu0 0
        %3583 = vmatpush2.bf16.msra.mxu0 0
        %3584 = vmatprep.subr.bf16.mxu0 0
        %3585 = vmatpush2.bf16.msra.mxu0 0
        %3586 = vmatprep.subr.bf16.mxu0 0
        %3587 = vmatpush2.bf16.msra.mxu0 0
        %3588 = vmatprep.mubr.bf16.mxu0 0
        %3589 = vmatmul.mubr.bf16.gmra.mxu0 %v3551
        %v3590 = vpop.f32.mrf.mxu0
        %v3591 = vadd.f32 0.0, %v3590
        %v3592 = vpop.f32.mrf.mxu0
        %v3593 = vpop.f32.mrf.mxu0
        %v3594 = vpop.f32.mrf.mxu0
        %3595 = vdwg.mxu0
        %v3596 = vadd.f32 %v3453, %v3499
        %v3597 = vadd.f32 %v3596, %v3545
        %v3598 = vadd.f32 %v3597, %v3591
        %s3599 = scalar_lea.vmem %s9, 1
        %v3600 = vld [vmem:[%s3599] sm:$0x1]
        %v3602 = vlaneseq
        %v3603 = vshrl.u32 %v3602, 7
        %v3604 = vsub.s32 0, %v3603
        %v3605 = vrot.slane %v3600, %v3604
        %v3607 = vadd.f32 %v3598, %v3605
        %v3608 = vadd.f32 %v2204, %v3607
        %s3609 = scalar_lea.vmem %s10, 1
        %v3610 = vld [vmem:[%s3609] sm:$0x1]
        %s3611 = scalar_lea.vmem %s11, 1
        %v3612 = vld [vmem:[%s3611] sm:$0x1]
        %v3613 = vsel %vm645, %v3608, 0.0
        %3614 = vadd.xlane.f32.xlu0 %v3613
        %v3615 = vpop.xlane.xlu0 %3614
        %v3616 = vmul.f32 %v3615, %v1998
        %v3617 = vsub.f32 %v3608, %v3616
        %v3618 = vmul.f32 %v3617, %v3617
        %v3619 = vsel %vm645, %v3618, 0.0
        %3620 = vadd.xlane.f32.xlu0 %v3619
        %v3621 = vpop.xlane.xlu0 %3620
        %v3622 = vmul.f32 %v3621, %v1998
        %v3623 = vadd.f32 %v3622, 1e-05
        %v3624 = vrsqrt.pop %v3623
        %v3625 = vmul.f32 %v3617, %v3624
        %v3627 = vlaneseq
        %v3628 = vshrl.u32 %v3627, 7
        %v3629 = vsub.s32 0, %v3628
        %v3630 = vrot.slane %v3610, %v3629
        %v3632 = vmul.f32 %v3625, %v3630
        %v3634 = vlaneseq
        %v3635 = vshrl.u32 %v3634, 7
        %v3636 = vsub.s32 0, %v3635
        %v3637 = vrot.slane %v3612, %v3636
        %v3639 = vadd.f32 %v3632, %v3637
        %v3640 = vpack.c.bf16 %v3639, %v3639
        %s3641 = scalar_lea.vmem %s12, 16
        %v3642 = vld [vmem:[%s3641] sm:$0xf]
        %v3643 = vld [vmem:[%s3641 + $0x4] sm:$0xf]
        %v3644 = vld [vmem:[%s3641 + $0x8] sm:$0xf]
        %v3645 = vld [vmem:[%s3641 + $0xc] sm:$0xf]
        %s3646 = scalar_lea.vmem %s13, 1
        %v3647 = vld [vmem:[%s3646] sm:$0x1]
        %v3649 = vlaneseq
        %v3650 = vshrl.u32 %v3649, 7
        %v3651 = vsub.s32 0, %v3650
        %v3652 = vrot.slane %v3647, %v3651
        %v3658 = vunpack.c.l.b16 %v3642
        %v3659 = vunpack.c.l.b16 %v3643
        %v3660 = vunpack.c.l.b16 %v3644
        %v3661 = vunpack.c.l.b16 %v3645
        %v3662 = vpack.c.b16 %v3659, %v3658
        %v3663 = vpack.c.b16 %v3661, %v3660
        %v3667 = vsel %vm645, %v3640, 0
        %3669 = vmatprep.subr.bf16.mxu0 0
        %3670 = vmatpush1.bf16.msra.mxu0 0
        %3671 = vmatprep.subr.bf16.mxu0 0
        %3672 = vmatpush1.bf16.msra.mxu0 0
        %3673 = vmatprep.subr.bf16.mxu0 0
        %3674 = vmatpush1.bf16.msra.mxu0 0
        %3675 = vmatprep.subr.bf16.mxu0 0
        %3676 = vmatpush1.bf16.msra.mxu0 0
        %3677 = vmatprep.subr.bf16.mxu0 0
        %3678 = vmatpush1.bf16.msra.mxu0 0
        %3679 = vmatprep.subr.bf16.mxu0 0
        %3680 = vmatpush1.bf16.msra.mxu0 0
        %3681 = vmatprep.subr.bf16.mxu0 0
        %3682 = vmatpush1.bf16.msra.mxu0 %v3663
        %3683 = vmatprep.subr.bf16.mxu0 0
        %3684 = vmatpush1.bf16.msra.mxu0 %v3662
        %3685 = vmatprep.subr.bf16.mxu0 0
        %3686 = vmatpush2.bf16.msra.mxu0 0
        %3687 = vmatprep.subr.bf16.mxu0 0
        %3688 = vmatpush2.bf16.msra.mxu0 0
        %3689 = vmatprep.subr.bf16.mxu0 0
        %3690 = vmatpush2.bf16.msra.mxu0 0
        %3691 = vmatprep.subr.bf16.mxu0 0
        %3692 = vmatpush2.bf16.msra.mxu0 0
        %3693 = vmatprep.subr.bf16.mxu0 0
        %3694 = vmatpush2.bf16.msra.mxu0 0
        %3695 = vmatprep.subr.bf16.mxu0 0
        %3696 = vmatpush2.bf16.msra.mxu0 0
        %3697 = vmatprep.subr.bf16.mxu0 0
        %3698 = vmatpush2.bf16.msra.mxu0 0
        %3699 = vmatprep.subr.bf16.mxu0 0
        %3700 = vmatpush2.bf16.msra.mxu0 0
        %3701 = vmatprep.mubr.bf16.mxu0 0
        %3702 = vmatmul.mubr.bf16.gmra.mxu0 %v3667
        %v3703 = vpop.f32.mrf.mxu0
        %v3704 = vadd.f32 %v3652, %v3703
        %v3705 = vpop.f32.mrf.mxu0
        %v3706 = vpop.f32.mrf.mxu0
        %v3707 = vpop.f32.mrf.mxu0
        %3708 = vdwg.mxu0
        %v3709 = vmax.f32 %v3704, 0.0
        %v3710 = vpack.c.bf16 %v3709, %v3709
        %s3711 = scalar_lea.vmem %s14, 32
        %v3712 = vld [vmem:[%s3711] sm:$0xf]
        %v3713 = vld [vmem:[%s3711 + $0x4] sm:$0xf]
        %v3714 = vld [vmem:[%s3711 + $0x8] sm:$0xf]
        %v3715 = vld [vmem:[%s3711 + $0xc] sm:$0xf]
        %v3716 = vld [vmem:[%s3711 + $0x10] sm:$0xf]
        %v3717 = vld [vmem:[%s3711 + $0x14] sm:$0xf]
        %v3718 = vld [vmem:[%s3711 + $0x18] sm:$0xf]
        %v3719 = vld [vmem:[%s3711 + $0x1c] sm:$0xf]
        %s3720 = scalar_lea.vmem %s15, 1
        %v3721 = vld [vmem:[%s3720] sm:$0x1]
        %v3723 = vlaneseq
        %v3724 = vshrl.u32 %v3723, 7
        %v3725 = vsub.s32 0, %v3724
        %v3726 = vrot.slane %v3721, %v3725
        %v3736 = vunpack.c.l.b16 %v3712
        %v3737 = vunpack.c.l.b16 %v3713
        %v3738 = vunpack.c.l.b16 %v3714
        %v3739 = vunpack.c.l.b16 %v3715
        %v3740 = vunpack.c.l.b16 %v3716
        %v3741 = vunpack.c.l.b16 %v3717
        %v3742 = vunpack.c.l.b16 %v3718
        %v3743 = vunpack.c.l.b16 %v3719
        %v3744 = vpack.c.b16 %v3737, %v3736
        %v3745 = vpack.c.b16 %v3739, %v3738
        %v3746 = vpack.c.b16 %v3741, %v3740
        %v3747 = vpack.c.b16 %v3743, %v3742
        %v3753 = vsel %vm2131, %v3710, 0
        %3755 = vmatprep.subr.bf16.mxu0 0
        %3756 = vmatpush1.bf16.msra.mxu0 0
        %3757 = vmatprep.subr.bf16.mxu0 0
        %3758 = vmatpush1.bf16.msra.mxu0 0
        %3759 = vmatprep.subr.bf16.mxu0 0
        %3760 = vmatpush1.bf16.msra.mxu0 0
        %3761 = vmatprep.subr.bf16.mxu0 0
        %3762 = vmatpush1.bf16.msra.mxu0 0
        %3763 = vmatprep.subr.bf16.mxu0 0
        %3764 = vmatpush1.bf16.msra.mxu0 %v3747
        %3765 = vmatprep.subr.bf16.mxu0 0
        %3766 = vmatpush1.bf16.msra.mxu0 %v3746
        %3767 = vmatprep.subr.bf16.mxu0 0
        %3768 = vmatpush1.bf16.msra.mxu0 %v3745
        %3769 = vmatprep.subr.bf16.mxu0 0
        %3770 = vmatpush1.bf16.msra.mxu0 %v3744
        %3771 = vmatprep.subr.bf16.mxu0 0
        %3772 = vmatpush2.bf16.msra.mxu0 0
        %3773 = vmatprep.subr.bf16.mxu0 0
        %3774 = vmatpush2.bf16.msra.mxu0 0
        %3775 = vmatprep.subr.bf16.mxu0 0
        %3776 = vmatpush2.bf16.msra.mxu0 0
        %3777 = vmatprep.subr.bf16.mxu0 0
        %3778 = vmatpush2.bf16.msra.mxu0 0
        %3779 = vmatprep.subr.bf16.mxu0 0
        %3780 = vmatpush2.bf16.msra.mxu0 0
        %3781 = vmatprep.subr.bf16.mxu0 0
        %3782 = vmatpush2.bf16.msra.mxu0 0
        %3783 = vmatprep.subr.bf16.mxu0 0
        %3784 = vmatpush2.bf16.msra.mxu0 0
        %3785 = vmatprep.subr.bf16.mxu0 0
        %3786 = vmatpush2.bf16.msra.mxu0 0
        %3787 = vmatprep.mubr.bf16.mxu0 0
        %3788 = vmatmul.mubr.bf16.gmra.mxu0 %v3753
        %v3789 = vpop.f32.mrf.mxu0
        %v3790 = vadd.f32 %v3726, %v3789
        %v3791 = vpop.f32.mrf.mxu0
        %v3792 = vpop.f32.mrf.mxu0
        %v3793 = vpop.f32.mrf.mxu0
        %3794 = vdwg.mxu0
        %v3795 = vadd.f32 %v3639, %v3790
        %s3796 = scalar_lea.vmem %s16, 1
        %v3797 = vld [vmem:[%s3796] sm:$0x1]
        %s3798 = scalar_lea.vmem %s17, 1
        %v3799 = vld [vmem:[%s3798] sm:$0x1]
        %v3800 = vsel %vm645, %v3795, 0.0
        %3801 = vadd.xlane.f32.xlu0 %v3800
        %v3802 = vpop.xlane.xlu0 %3801
        %v3803 = vmul.f32 %v3802, %v1998
        %v3804 = vsub.f32 %v3795, %v3803
        %v3805 = vmul.f32 %v3804, %v3804
        %v3806 = vsel %vm645, %v3805, 0.0
        %3807 = vadd.xlane.f32.xlu0 %v3806
        %v3808 = vpop.xlane.xlu0 %3807
        %v3809 = vmul.f32 %v3808, %v1998
        %v3810 = vadd.f32 %v3809, 1e-05
        %v3811 = vrsqrt.pop %v3810
        %v3812 = vmul.f32 %v3804, %v3811
        %v3814 = vlaneseq
        %v3815 = vshrl.u32 %v3814, 7
        %v3816 = vsub.s32 0, %v3815
        %v3817 = vrot.slane %v3797, %v3816
        %v3819 = vmul.f32 %v3812, %v3817
        %v3821 = vlaneseq
        %v3822 = vshrl.u32 %v3821, 7
        %v3823 = vsub.s32 0, %v3822
        %v3824 = vrot.slane %v3799, %v3823
        %v3826 = vadd.f32 %v3819, %v3824
        %3827 = vst.msk [vmem:[%s577] sm:$0xff] %vm645, %v3826
        %s3828 = sand.u32 %s428, 1
        %s3829 = scalar_lea.sflag [#allocation3], %s3828
        %s3830 = sand.u32 %s428, 1
        %s3831 = smul.addr %s3830, 8
        %s3832 = scalar_lea.vmem [#allocation2], %s3831
        // Predicated region
        $region93: #{tpu_custom_call.1} parent=91 // pred_check
          %p3833 = pneg %p438
        $region94: #{tpu_custom_call.1} parent=91 // pred_check_branch
          %3835 = sbr.rel (%p3833) target = $region96
        $region95: #{tpu_custom_call.1} parent=91 // pred_region
          %s3837 = ssub.s32 128, 128
          %3838 = vsyncadd %s3829, %s3837
          %s3839 = smul.addr %s32, 128
          %s3840 = scalar_lea.hbm %s18, %s3839
          %s3842 = sshll.u32 %s3832, 4
          %s3843 = int_to_ptr.vmem [resolvable:$true] %s3842
          %3845 = dma.vmem_to_hbm [thread:$0]  %s3843, 128, %s3840, %s3829
        $region96: #{tpu_custom_call.1} parent=91 // pred_fallthru
          _
      $region92: #{tpu_custom_call.1} parent=5 // pred_fallthru
        _
      %p3846 = scmp.le.s32.totalorder 2, %s27
      // Predicated region
      $region97: #{tpu_custom_call.1} parent=5 // pred_check
        %p3847 = pneg %p3846
      $region98: #{tpu_custom_call.1} parent=5 // pred_check_branch
        %3849 = sbr.rel (%p3847) target = $region100
      $region99: #{tpu_custom_call.1} parent=5 // pred_region
        %s3850 = ssub.s32 %s27, 2
        // Predicated region
        $region101: #{tpu_custom_call.1} parent=99 // pred_check
          %p3851 = pneg %p444
        $region102: #{tpu_custom_call.1} parent=99 // pred_check_branch
          %3853 = sbr.rel (%p3851) target = $region104
        $region103: #{tpu_custom_call.1} parent=99 // pred_region
          %s3854 = sand.u32 %s429, 1
          %s3855 = scalar_lea.sflag [#allocation3], %s3854
          %s3856 = sand.u32 %s429, 1
          %s3857 = smul.addr %s3856, 8
          %s3858 = scalar_lea.vmem [#allocation2], %s3857
          %3859 = dma.done %s3855, 128
        $region104: #{tpu_custom_call.1} parent=99 // pred_fallthru
          _
      $region100: #{tpu_custom_call.1} parent=5 // pred_fallthru
        _
    $region6: #{tpu_custom_call.1} parent=1 // loop_footer
      %s31 = sadd.s32 1, %s27
    $region7: #{tpu_custom_call.1} parent=1 // loop_footer_branch
      %26 = sbr.rel target = $region3
    $region8: #{tpu_custom_call.1} parent=1 // loop_exit
      _
    %3860 = vsyncpa [#allocation3], 1
    %s3861 = scalar_lea.sflag [#allocation3], 1
    %3862 = vsyncpa %s3861, 1

</llo_original>
